<compile_context>
chip_gen: v5e
topology: v5e:2x2
jax: 0.10.0
libtpu: 0.0.40
codegen_flags: <defaults>
</compile_context>

<pallas_src>
from functools import partial

import jax
import jax.numpy as jnp
from jax.experimental import pallas as pl
from jax.experimental.pallas import tpu as pltpu


def _gelu(x):
    # exact (erf) GELU to match torch.nn.GELU default
    # TODO(synk): jax.nn.gelu(approximate=True) moves this to the EUP if exact
    # torch parity is not required.
    return 0.5 * x * (1.0 + jax.lax.erf(x * 0.7071067811865476))


def _layernorm_noaffine(h, eps=1e-5):
    # affine (gamma/beta) is folded into the downstream weights offline;
    # centered two-pass variance for accuracy.
    mu = jnp.mean(h, axis=-1, keepdims=True)
    c = h - mu
    var = jnp.mean(c * c, axis=-1, keepdims=True)
    return c * jax.lax.rsqrt(var + eps)


def _bdot(x, w_bf16):
    # bf16 operands, f32 accumulation on the MXU
    return jnp.dot(x.astype(jnp.bfloat16), w_bf16,
                   preferred_element_type=jnp.float32)


def kd_loss_kernel(label_ref,                                   # scalar prefetch (SMEM)
                   x_ts_ref, cls_tab_ref,
                   projw_ref, projb_ref,
                   p1w1_ref, p1b1_ref, p1w2_ref, p1b2_ref,
                   p2wa_ref, p2wb_ref, p2b_ref,
                   tw1_ref, tb1_ref, tw2_ref, tb2_ref,
                   fctw_ref, fctb_ref,
                   T_ref, kl_ref,
                   cls_buf, gather_sem):
    _, TB, C = x_ts_ref.shape
    row0 = pl.program_id(0) * TB

    # ---- cls_embed gather: issue per-row DMAs from the HBM table early so
    # ---- they overlap the proj/MLP matmuls below ----
    copies = []
    for r in range(TB):
        cp = pltpu.make_async_copy(
            cls_tab_ref.at[pl.ds(label_ref[row0 + r], 1), :],
            cls_buf.at[pl.ds(r, 1), :],
            gather_sem.at[r])
        cp.start()
        copies.append(cp)

    # teacher rows first, student rows after (stacked in the wrapper)
    x2 = x_ts_ref[...].reshape(2 * TB, C)                       # [2TB, C] f32
    xt = x2[:TB]
    xs = x2[TB:]

    # ---- fused teacher/student branch (shared weights), bf16 MXU / f32 acc ----
    h = _bdot(x2, projw_ref[...]) + projb_ref[...]              # proj
    h = _gelu(_bdot(h, p1w1_ref[...]) + p1b1_ref[...])          # mlp_pre1.fc1
    h = _bdot(h, p1w2_ref[...]) + p1b2_ref[...]                 # mlp_pre1.fc2
    h = _layernorm_noaffine(h)                                  # affine folded into proj2
    x_t = h[:TB]
    x_s = h[TB:]

    for cp in copies:                                           # gather is needed now
        cp.wait()

    # proj2(cat((x_t, x_s), 1)) + cls_embed(label)   (LN affine pre-folded)
    out = (_bdot(x_t, p2wa_ref[...]) + _bdot(x_s, p2wb_ref[...])
           + p2b_ref[...] + cls_buf[...])

    # ---- T_layer (Mlp, LN affine folded into fc_T) -> fc_T -> sigmoid * 8 ----
    t = _gelu(_bdot(out, tw1_ref[...]) + tb1_ref[...])
    t = _bdot(t, tw2_ref[...]) + tb2_ref[...]
    t = _layernorm_noaffine(t)
    # fc_T as a lane reduction (avoids an N=1 skinny matmul on the MXU)
    t_logit = jnp.sum(t * fctw_ref[...], axis=-1, keepdims=True) + fctb_ref[...]
    T = jax.nn.sigmoid(t_logit) * 8.0                           # [TB, 1]

    # ---- KD KL divergence tail (f32), algebraically simplified:
    #      kl_row = (1/zt) * sum_c exp(lt)*(lt - ls) + log zs - log zt
    inv_T = pl.reciprocal(T, approx=True)                       # EUP, reused
    ls = xs * inv_T
    lt = xt * inv_T
    ls = ls - jnp.max(ls, axis=-1, keepdims=True)
    lt = lt - jnp.max(lt, axis=-1, keepdims=True)
    exp_ls = jnp.exp(ls)
    exp_lt = jnp.exp(lt)
    zs = jnp.sum(exp_ls, axis=-1, keepdims=True)
    zt = jnp.sum(exp_lt, axis=-1, keepdims=True)
    kl_row = (jnp.sum(exp_lt * (lt - ls), axis=-1, keepdims=True)
              * pl.reciprocal(zt, approx=True)
              + jnp.log(zs) - jnp.log(zt))                      # [TB, 1]

    T_ref[...] = T.astype(jnp.float32)
    kl_ref[...] = kl_row.astype(jnp.float32)


def init_params(key, num_classes, dim):
    """Deterministic parameter init (PyTorch-style uniform for Linear layers)."""
    ks = jax.random.split(key, 8)

    def lin(k, fan_in, fan_out):
        k1, k2 = jax.random.split(k)
        bound = 1.0 / jnp.sqrt(jnp.float32(fan_in))
        w = jax.random.uniform(k1, (fan_out, fan_in), jnp.float32, -bound, bound)
        b = jax.random.uniform(k2, (fan_out,), jnp.float32, -bound, bound)
        return w, b

    return {
        "proj":      lin(ks[0], num_classes, dim),
        "pre1_fc1":  lin(ks[1], dim, 4 * dim),
        "pre1_fc2":  lin(ks[2], 4 * dim, dim),
        "pre1_ln":   (jnp.ones((dim,), jnp.float32), jnp.zeros((dim,), jnp.float32)),
        "proj2":     lin(ks[3], 2 * dim, dim),
        "T_fc1":     lin(ks[4], dim, 4 * dim),
        "T_fc2":     lin(ks[5], 4 * dim, dim),
        "T_ln":      (jnp.ones((dim,), jnp.float32), jnp.zeros((dim,), jnp.float32)),
        "fc_T":      lin(ks[6], dim, 1),
        "cls_embed": jax.random.normal(ks[7], (num_classes, dim), jnp.float32),
    }


def prepare_params(params):
    """One-time weight preprocessing: transposes, bias reshapes, proj2 split,
    LayerNorm-affine folding, bf16 casts.  Keep this OUT of the per-call path."""
    bf = lambda w: w.T.astype(jnp.bfloat16)      # [out,in] -> [in,out], bf16
    r = lambda b: b.reshape(1, -1)

    projw, projb = params["proj"]
    p1w1, p1b1 = params["pre1_fc1"]
    p1w2, p1b2 = params["pre1_fc2"]
    p1g, p1bt = params["pre1_ln"]
    p2w, p2b = params["proj2"]
    tw1, tb1 = params["T_fc1"]
    tw2, tb2 = params["T_fc2"]
    tg, tbt = params["T_ln"]
    fctw, fctb = params["fc_T"]

    dim = p2w.shape[0]
    p2wT = p2w.T                                 # [2*dim, dim]
    p2wa = p2wT[:dim]                            # applied to x_t
    p2wb = p2wT[dim:]                            # applied to x_s

    # fold mlp_pre1 LayerNorm affine (gamma, beta) into proj2
    p2wa_f = p1g[:, None] * p2wa
    p2wb_f = p1g[:, None] * p2wb
    p2b_f = p2b + p1bt @ p2wa + p1bt @ p2wb

    # fold T_layer LayerNorm affine into fc_T
    fctw_row = fctw[0]                           # [dim]
    fctw_f = tg * fctw_row
    fctb_f = fctb + jnp.sum(tbt * fctw_row)

    return dict(
        cls_tab=params["cls_embed"].astype(jnp.float32),   # stays in HBM
        projw=bf(projw), projb=r(projb),
        p1w1=bf(p1w1), p1b1=r(p1b1),
        p1w2=bf(p1w2), p1b2=r(p1b2),
        p2wa=p2wa_f.astype(jnp.bfloat16),
        p2wb=p2wb_f.astype(jnp.bfloat16),
        p2b=r(p2b_f),
        tw1=bf(tw1), tb1=r(tb1),
        tw2=bf(tw2), tb2=r(tb2),
        fctw=r(fctw_f).astype(jnp.float32),
        fctb=fctb_f.reshape(1, 1),
    )


def _const_spec(arr):
    """Full-array block with a constant index_map: DMA'd once, VMEM-resident
    across every grid step."""
    zeros = (0,) * arr.ndim
    return pl.BlockSpec(arr.shape, lambda i, lbl, _z=zeros: _z)


@partial(jax.jit, static_argnames=("tile_b",))
def learnable_kd_loss(x_s_logit, x_t_logit, label, prep, *, tile_b=8):
    B, C = x_s_logit.shape
    dim = prep["p2b"].shape[-1]
    assert B % tile_b == 0, "batch must be a multiple of the batch tile"
    grid = (B // tile_b,)

    # teacher/student stacking is free layout plumbing in the wrapper
    x_ts = jnp.stack([x_t_logit, x_s_logit], axis=0).astype(jnp.float32)  # [2,B,C]
    label_i32 = label.astype(jnp.int32)

    w = prep
    weight_args = (w["projw"], w["projb"],
                   w["p1w1"], w["p1b1"], w["p1w2"], w["p1b2"],
                   w["p2wa"], w["p2wb"], w["p2b"],
                   w["tw1"], w["tb1"], w["tw2"], w["tb2"],
                   w["fctw"], w["fctb"])

    in_specs = ([pl.BlockSpec((2, tile_b, C), lambda i, lbl: (0, i, 0)),  # x_ts
                 pl.BlockSpec(memory_space=pl.ANY)]                       # cls_tab (HBM)
                + [_const_spec(a) for a in weight_args])

    out_specs = (pl.BlockSpec((tile_b, 1), lambda i, lbl: (i, 0)),        # T
                 pl.BlockSpec((tile_b, 1), lambda i, lbl: (i, 0)))        # kl per row

    T, kl_rows = pl.pallas_call(
        kd_loss_kernel,
        out_shape=(jax.ShapeDtypeStruct((B, 1), jnp.float32),
                   jax.ShapeDtypeStruct((B, 1), jnp.float32)),
        grid_spec=pltpu.PrefetchScalarGridSpec(
            num_scalar_prefetch=1,                 # label -> SMEM
            grid=grid,
            in_specs=in_specs,
            out_specs=out_specs,
            scratch_shapes=[pltpu.VMEM((tile_b, dim), jnp.float32),   # gathered cls rows
                            pltpu.SemaphoreType.DMA((tile_b,))]),
        compiler_params=pltpu.CompilerParams(
            dimension_semantics=("parallel",),
            vmem_limit_bytes=32 * 1024 * 1024),
    )(label_i32, x_ts, w["cls_tab"], *weight_args)

    # loss = (sum_kl * T^2 / B).sum(-1).mean(0) == sum(kl_rows)/B * mean(T^2)
    loss = jnp.sum(kl_rows) / B * jnp.mean(T * T)
    return loss, T


def reference(x_s_logit, x_t_logit, label, params):
    """Pure-JAX f32 reference of the PyTorch forward."""
    def linear(x, wb):
        wt, b = wb
        return x @ wt.T + b

    def mlp(x, fc1, fc2, ln):
        h = _gelu(linear(x, fc1))
        h = linear(h, fc2)
        g, bt = ln
        mu = h.mean(-1, keepdims=True)
        var = ((h - mu) ** 2).mean(-1, keepdims=True)
        return (h - mu) / jnp.sqrt(var + 1e-5) * g + bt

    x_t = mlp(linear(x_t_logit, params["proj"]),
              params["pre1_fc1"], params["pre1_fc2"], params["pre1_ln"])
    x_s = mlp(linear(x_s_logit, params["proj"]),
              params["pre1_fc1"], params["pre1_fc2"], params["pre1_ln"])
    out = linear(jnp.concatenate([x_t, x_s], axis=1), params["proj2"])
    out = out + params["cls_embed"][label]
    T = mlp(out, params["T_fc1"], params["T_fc2"], params["T_ln"])
    T = jax.nn.sigmoid(linear(T, params["fc_T"])) * 8.0
    log_ps = jax.nn.log_softmax(x_s_logit / T, axis=-1)
    p_t = jax.nn.softmax(x_t_logit / T, axis=-1)
    kl = jnp.sum(p_t * (jnp.log(p_t) - log_ps))
    B = x_s_logit.shape[0]
    loss = (kl * T ** 2 / B).sum(-1).mean(0)
    return loss, T


if __name__ == "__main__":
    # small, tile-friendly shapes; B=16 with tile_b=8 exercises a 2-step grid.
    B, num_classes, dim = 16, 128, 128
    tile_b = 8

    key = jax.random.PRNGKey(0)
    k_p, k_s, k_t, k_l = jax.random.split(key, 4)
    params = init_params(k_p, num_classes, dim)
    prep = prepare_params(params)            # one-time weight preprocessing

    x_s_logit = jax.random.normal(k_s, (B, num_classes), jnp.float32)
    x_t_logit = jax.random.normal(k_t, (B, num_classes), jnp.float32)
    label = jax.random.randint(k_l, (B,), 0, num_classes)

    loss, T = learnable_kd_loss(x_s_logit, x_t_logit, label, prep, tile_b=tile_b)
    loss = jax.block_until_ready(loss)
    T = jax.block_until_ready(T)

    # kernel uses bf16 matmul operands (f32 accumulation) + approx reciprocals;
    # compare against the f32 reference at bf16-appropriate tolerances.
    loss_ref, T_ref = reference(x_s_logit, x_t_logit, label, params)
    assert jnp.allclose(T, T_ref, rtol=2e-2, atol=2e-3), (T.ravel(), T_ref.ravel())
    assert jnp.allclose(loss, loss_ref, rtol=2e-2, atol=2e-3), (loss, loss_ref)

    print("KERNEL_OK")
</pallas_src>

<mosaic_0001>
module attributes {stable_mosaic.version = 11 : i64} {
  func.func @kd_loss_kernel(%arg0: i32, %arg1: memref<16xi32, #tpu.memory_space<smem>>, %arg2: memref<2x8x128xf32, #tpu.memory_space<vmem>>, %arg3: memref<128x128xf32, #tpu.memory_space<any>>, %arg4: memref<128x128xbf16, #tpu.memory_space<vmem>>, %arg5: memref<1x128xf32, #tpu.memory_space<vmem>>, %arg6: memref<128x512xbf16, #tpu.memory_space<vmem>>, %arg7: memref<1x512xf32, #tpu.memory_space<vmem>>, %arg8: memref<512x128xbf16, #tpu.memory_space<vmem>>, %arg9: memref<1x128xf32, #tpu.memory_space<vmem>>, %arg10: memref<128x128xbf16, #tpu.memory_space<vmem>>, %arg11: memref<128x128xbf16, #tpu.memory_space<vmem>>, %arg12: memref<1x128xf32, #tpu.memory_space<vmem>>, %arg13: memref<128x512xbf16, #tpu.memory_space<vmem>>, %arg14: memref<1x512xf32, #tpu.memory_space<vmem>>, %arg15: memref<512x128xbf16, #tpu.memory_space<vmem>>, %arg16: memref<1x128xf32, #tpu.memory_space<vmem>>, %arg17: memref<1x128xf32, #tpu.memory_space<vmem>>, %arg18: memref<1x1xf32, #tpu.memory_space<vmem>>, %arg19: memref<8x1xf32, #tpu.memory_space<vmem>>, %arg20: memref<8x1xf32, #tpu.memory_space<vmem>>, %arg21: memref<8x128xf32, #tpu.memory_space<vmem>>, %arg22: memref<8x!tpu.dma_semaphore, #tpu.memory_space<semaphore_mem>>) attributes {dimension_semantics = [#tpu.dimension_semantics<parallel>], iteration_bounds = array<i64: 2>, scalar_prefetch = 1 : i64, scratch_operands = 2 : i64, tpu.core_type = #tpu.core_type<tc>, window_params = [{transform_indices = @transform_0, window_bounds = array<i64: 2, 8, 128>}, {}, {pipeline_mode = #tpu.pipeline_mode<synchronous>, transform_indices = @transform_2, window_bounds = array<i64: 128, 128>}, {pipeline_mode = #tpu.pipeline_mode<synchronous>, transform_indices = @transform_3, window_bounds = array<i64: 1, 128>}, {pipeline_mode = #tpu.pipeline_mode<synchronous>, transform_indices = @transform_4, window_bounds = array<i64: 128, 512>}, {pipeline_mode = #tpu.pipeline_mode<synchronous>, transform_indices = @transform_5, window_bounds = array<i64: 1, 512>}, {pipeline_mode = #tpu.pipeline_mode<synchronous>, transform_indices = @transform_6, window_bounds = array<i64: 512, 128>}, {pipeline_mode = #tpu.pipeline_mode<synchronous>, transform_indices = @transform_7, window_bounds = array<i64: 1, 128>}, {pipeline_mode = #tpu.pipeline_mode<synchronous>, transform_indices = @transform_8, window_bounds = array<i64: 128, 128>}, {pipeline_mode = #tpu.pipeline_mode<synchronous>, transform_indices = @transform_9, window_bounds = array<i64: 128, 128>}, {pipeline_mode = #tpu.pipeline_mode<synchronous>, transform_indices = @transform_10, window_bounds = array<i64: 1, 128>}, {pipeline_mode = #tpu.pipeline_mode<synchronous>, transform_indices = @transform_11, window_bounds = array<i64: 128, 512>}, {pipeline_mode = #tpu.pipeline_mode<synchronous>, transform_indices = @transform_12, window_bounds = array<i64: 1, 512>}, {pipeline_mode = #tpu.pipeline_mode<synchronous>, transform_indices = @transform_13, window_bounds = array<i64: 512, 128>}, {pipeline_mode = #tpu.pipeline_mode<synchronous>, transform_indices = @transform_14, window_bounds = array<i64: 1, 128>}, {pipeline_mode = #tpu.pipeline_mode<synchronous>, transform_indices = @transform_15, window_bounds = array<i64: 1, 128>}, {pipeline_mode = #tpu.pipeline_mode<synchronous>, transform_indices = @transform_16, window_bounds = array<i64: 1, 1>}, {transform_indices = @transform_17, window_bounds = array<i64: 8, 1>}, {transform_indices = @transform_18, window_bounds = array<i64: 8, 1>}]} {
    %c8_i32 = arith.constant 8 : i32
    %0 = arith.muli %arg0, %c8_i32 : i32
    %c0_i32 = arith.constant 0 : i32
    %1 = arith.addi %0, %c0_i32 : i32
    %2 = arith.index_cast %1 : i32 to index
    %3 = memref.load %arg1[%2] : memref<16xi32, #tpu.memory_space<smem>>
    %c0_i32_0 = arith.constant 0 : i32
    %c0_i32_1 = arith.constant 0 : i32
    %4 = tpu.memref_slice %arg3[%3, %c0_i32_1] : memref<128x128xf32, #tpu.memory_space<any>> -> memref<1x128xf32, #tpu.memory_space<any>>
    %c0_i32_2 = arith.constant 0 : i32
    %c0_i32_3 = arith.constant 0 : i32
    %5 = tpu.memref_slice %arg21[%c0_i32_2, %c0_i32_3] : memref<8x128xf32, #tpu.memory_space<vmem>> -> memref<1x128xf32, #tpu.memory_space<vmem>>
    %6 = tpu.memref_slice %arg22[%c0_i32_0] : memref<8x!tpu.dma_semaphore, #tpu.memory_space<semaphore_mem>> -> memref<1x!tpu.dma_semaphore, #tpu.memory_space<semaphore_mem>>
    %7 = tpu.memref_squeeze %6 : memref<1x!tpu.dma_semaphore, #tpu.memory_space<semaphore_mem>> -> memref<!tpu.dma_semaphore, #tpu.memory_space<semaphore_mem>>
    tpu.enqueue_dma source(%4 : memref<1x128xf32, #tpu.memory_space<any>>) target(%5 : memref<1x128xf32, #tpu.memory_space<vmem>>) target_semaphore(%7 : memref<!tpu.dma_semaphore, #tpu.memory_space<semaphore_mem>>)
    %c1_i32 = arith.constant 1 : i32
    %8 = arith.addi %0, %c1_i32 : i32
    %9 = arith.index_cast %8 : i32 to index
    %10 = memref.load %arg1[%9] : memref<16xi32, #tpu.memory_space<smem>>
    %c1_i32_4 = arith.constant 1 : i32
    %c0_i32_5 = arith.constant 0 : i32
    %11 = tpu.memref_slice %arg3[%10, %c0_i32_5] : memref<128x128xf32, #tpu.memory_space<any>> -> memref<1x128xf32, #tpu.memory_space<any>>
    %c1_i32_6 = arith.constant 1 : i32
    %c0_i32_7 = arith.constant 0 : i32
    %12 = tpu.memref_slice %arg21[%c1_i32_6, %c0_i32_7] : memref<8x128xf32, #tpu.memory_space<vmem>> -> memref<1x128xf32, #tpu.memory_space<vmem>>
    %13 = tpu.memref_slice %arg22[%c1_i32_4] : memref<8x!tpu.dma_semaphore, #tpu.memory_space<semaphore_mem>> -> memref<1x!tpu.dma_semaphore, #tpu.memory_space<semaphore_mem>>
    %14 = tpu.memref_squeeze %13 : memref<1x!tpu.dma_semaphore, #tpu.memory_space<semaphore_mem>> -> memref<!tpu.dma_semaphore, #tpu.memory_space<semaphore_mem>>
    tpu.enqueue_dma source(%11 : memref<1x128xf32, #tpu.memory_space<any>>) target(%12 : memref<1x128xf32, #tpu.memory_space<vmem>>) target_semaphore(%14 : memref<!tpu.dma_semaphore, #tpu.memory_space<semaphore_mem>>)
    %c2_i32 = arith.constant 2 : i32
    %15 = arith.addi %0, %c2_i32 : i32
    %16 = arith.index_cast %15 : i32 to index
    %17 = memref.load %arg1[%16] : memref<16xi32, #tpu.memory_space<smem>>
    %c2_i32_8 = arith.constant 2 : i32
    %c0_i32_9 = arith.constant 0 : i32
    %18 = tpu.memref_slice %arg3[%17, %c0_i32_9] : memref<128x128xf32, #tpu.memory_space<any>> -> memref<1x128xf32, #tpu.memory_space<any>>
    %c2_i32_10 = arith.constant 2 : i32
    %c0_i32_11 = arith.constant 0 : i32
    %19 = tpu.memref_slice %arg21[%c2_i32_10, %c0_i32_11] : memref<8x128xf32, #tpu.memory_space<vmem>> -> memref<1x128xf32, #tpu.memory_space<vmem>>
    %20 = tpu.memref_slice %arg22[%c2_i32_8] : memref<8x!tpu.dma_semaphore, #tpu.memory_space<semaphore_mem>> -> memref<1x!tpu.dma_semaphore, #tpu.memory_space<semaphore_mem>>
    %21 = tpu.memref_squeeze %20 : memref<1x!tpu.dma_semaphore, #tpu.memory_space<semaphore_mem>> -> memref<!tpu.dma_semaphore, #tpu.memory_space<semaphore_mem>>
    tpu.enqueue_dma source(%18 : memref<1x128xf32, #tpu.memory_space<any>>) target(%19 : memref<1x128xf32, #tpu.memory_space<vmem>>) target_semaphore(%21 : memref<!tpu.dma_semaphore, #tpu.memory_space<semaphore_mem>>)
    %c3_i32 = arith.constant 3 : i32
    %22 = arith.addi %0, %c3_i32 : i32
    %23 = arith.index_cast %22 : i32 to index
    %24 = memref.load %arg1[%23] : memref<16xi32, #tpu.memory_space<smem>>
    %c3_i32_12 = arith.constant 3 : i32
    %c0_i32_13 = arith.constant 0 : i32
    %25 = tpu.memref_slice %arg3[%24, %c0_i32_13] : memref<128x128xf32, #tpu.memory_space<any>> -> memref<1x128xf32, #tpu.memory_space<any>>
    %c3_i32_14 = arith.constant 3 : i32
    %c0_i32_15 = arith.constant 0 : i32
    %26 = tpu.memref_slice %arg21[%c3_i32_14, %c0_i32_15] : memref<8x128xf32, #tpu.memory_space<vmem>> -> memref<1x128xf32, #tpu.memory_space<vmem>>
    %27 = tpu.memref_slice %arg22[%c3_i32_12] : memref<8x!tpu.dma_semaphore, #tpu.memory_space<semaphore_mem>> -> memref<1x!tpu.dma_semaphore, #tpu.memory_space<semaphore_mem>>
    %28 = tpu.memref_squeeze %27 : memref<1x!tpu.dma_semaphore, #tpu.memory_space<semaphore_mem>> -> memref<!tpu.dma_semaphore, #tpu.memory_space<semaphore_mem>>
    tpu.enqueue_dma source(%25 : memref<1x128xf32, #tpu.memory_space<any>>) target(%26 : memref<1x128xf32, #tpu.memory_space<vmem>>) target_semaphore(%28 : memref<!tpu.dma_semaphore, #tpu.memory_space<semaphore_mem>>)
    %c4_i32 = arith.constant 4 : i32
    %29 = arith.addi %0, %c4_i32 : i32
    %30 = arith.index_cast %29 : i32 to index
    %31 = memref.load %arg1[%30] : memref<16xi32, #tpu.memory_space<smem>>
    %c4_i32_16 = arith.constant 4 : i32
    %c0_i32_17 = arith.constant 0 : i32
    %32 = tpu.memref_slice %arg3[%31, %c0_i32_17] : memref<128x128xf32, #tpu.memory_space<any>> -> memref<1x128xf32, #tpu.memory_space<any>>
    %c4_i32_18 = arith.constant 4 : i32
    %c0_i32_19 = arith.constant 0 : i32
    %33 = tpu.memref_slice %arg21[%c4_i32_18, %c0_i32_19] : memref<8x128xf32, #tpu.memory_space<vmem>> -> memref<1x128xf32, #tpu.memory_space<vmem>>
    %34 = tpu.memref_slice %arg22[%c4_i32_16] : memref<8x!tpu.dma_semaphore, #tpu.memory_space<semaphore_mem>> -> memref<1x!tpu.dma_semaphore, #tpu.memory_space<semaphore_mem>>
    %35 = tpu.memref_squeeze %34 : memref<1x!tpu.dma_semaphore, #tpu.memory_space<semaphore_mem>> -> memref<!tpu.dma_semaphore, #tpu.memory_space<semaphore_mem>>
    tpu.enqueue_dma source(%32 : memref<1x128xf32, #tpu.memory_space<any>>) target(%33 : memref<1x128xf32, #tpu.memory_space<vmem>>) target_semaphore(%35 : memref<!tpu.dma_semaphore, #tpu.memory_space<semaphore_mem>>)
    %c5_i32 = arith.constant 5 : i32
    %36 = arith.addi %0, %c5_i32 : i32
    %37 = arith.index_cast %36 : i32 to index
    %38 = memref.load %arg1[%37] : memref<16xi32, #tpu.memory_space<smem>>
    %c5_i32_20 = arith.constant 5 : i32
    %c0_i32_21 = arith.constant 0 : i32
    %39 = tpu.memref_slice %arg3[%38, %c0_i32_21] : memref<128x128xf32, #tpu.memory_space<any>> -> memref<1x128xf32, #tpu.memory_space<any>>
    %c5_i32_22 = arith.constant 5 : i32
    %c0_i32_23 = arith.constant 0 : i32
    %40 = tpu.memref_slice %arg21[%c5_i32_22, %c0_i32_23] : memref<8x128xf32, #tpu.memory_space<vmem>> -> memref<1x128xf32, #tpu.memory_space<vmem>>
    %41 = tpu.memref_slice %arg22[%c5_i32_20] : memref<8x!tpu.dma_semaphore, #tpu.memory_space<semaphore_mem>> -> memref<1x!tpu.dma_semaphore, #tpu.memory_space<semaphore_mem>>
    %42 = tpu.memref_squeeze %41 : memref<1x!tpu.dma_semaphore, #tpu.memory_space<semaphore_mem>> -> memref<!tpu.dma_semaphore, #tpu.memory_space<semaphore_mem>>
    tpu.enqueue_dma source(%39 : memref<1x128xf32, #tpu.memory_space<any>>) target(%40 : memref<1x128xf32, #tpu.memory_space<vmem>>) target_semaphore(%42 : memref<!tpu.dma_semaphore, #tpu.memory_space<semaphore_mem>>)
    %c6_i32 = arith.constant 6 : i32
    %43 = arith.addi %0, %c6_i32 : i32
    %44 = arith.index_cast %43 : i32 to index
    %45 = memref.load %arg1[%44] : memref<16xi32, #tpu.memory_space<smem>>
    %c6_i32_24 = arith.constant 6 : i32
    %c0_i32_25 = arith.constant 0 : i32
    %46 = tpu.memref_slice %arg3[%45, %c0_i32_25] : memref<128x128xf32, #tpu.memory_space<any>> -> memref<1x128xf32, #tpu.memory_space<any>>
    %c6_i32_26 = arith.constant 6 : i32
    %c0_i32_27 = arith.constant 0 : i32
    %47 = tpu.memref_slice %arg21[%c6_i32_26, %c0_i32_27] : memref<8x128xf32, #tpu.memory_space<vmem>> -> memref<1x128xf32, #tpu.memory_space<vmem>>
    %48 = tpu.memref_slice %arg22[%c6_i32_24] : memref<8x!tpu.dma_semaphore, #tpu.memory_space<semaphore_mem>> -> memref<1x!tpu.dma_semaphore, #tpu.memory_space<semaphore_mem>>
    %49 = tpu.memref_squeeze %48 : memref<1x!tpu.dma_semaphore, #tpu.memory_space<semaphore_mem>> -> memref<!tpu.dma_semaphore, #tpu.memory_space<semaphore_mem>>
    tpu.enqueue_dma source(%46 : memref<1x128xf32, #tpu.memory_space<any>>) target(%47 : memref<1x128xf32, #tpu.memory_space<vmem>>) target_semaphore(%49 : memref<!tpu.dma_semaphore, #tpu.memory_space<semaphore_mem>>)
    %c7_i32 = arith.constant 7 : i32
    %50 = arith.addi %0, %c7_i32 : i32
    %51 = arith.index_cast %50 : i32 to index
    %52 = memref.load %arg1[%51] : memref<16xi32, #tpu.memory_space<smem>>
    %c7_i32_28 = arith.constant 7 : i32
    %c0_i32_29 = arith.constant 0 : i32
    %53 = tpu.memref_slice %arg3[%52, %c0_i32_29] : memref<128x128xf32, #tpu.memory_space<any>> -> memref<1x128xf32, #tpu.memory_space<any>>
    %c7_i32_30 = arith.constant 7 : i32
    %c0_i32_31 = arith.constant 0 : i32
    %54 = tpu.memref_slice %arg21[%c7_i32_30, %c0_i32_31] : memref<8x128xf32, #tpu.memory_space<vmem>> -> memref<1x128xf32, #tpu.memory_space<vmem>>
    %55 = tpu.memref_slice %arg22[%c7_i32_28] : memref<8x!tpu.dma_semaphore, #tpu.memory_space<semaphore_mem>> -> memref<1x!tpu.dma_semaphore, #tpu.memory_space<semaphore_mem>>
    %56 = tpu.memref_squeeze %55 : memref<1x!tpu.dma_semaphore, #tpu.memory_space<semaphore_mem>> -> memref<!tpu.dma_semaphore, #tpu.memory_space<semaphore_mem>>
    tpu.enqueue_dma source(%53 : memref<1x128xf32, #tpu.memory_space<any>>) target(%54 : memref<1x128xf32, #tpu.memory_space<vmem>>) target_semaphore(%56 : memref<!tpu.dma_semaphore, #tpu.memory_space<semaphore_mem>>)
    %c0 = arith.constant 0 : index
    %c0_32 = arith.constant 0 : index
    %c0_33 = arith.constant 0 : index
    %57 = vector.load %arg2[%c0, %c0_32, %c0_33] : memref<2x8x128xf32, #tpu.memory_space<vmem>>, vector<2x8x128xf32>
    %58 = vector.shape_cast %57 : vector<2x8x128xf32> to vector<16x128xf32>
    %59 = vector.extract_strided_slice %58 {offsets = [0, 0], sizes = [8, 128], strides = [1, 1]} : vector<16x128xf32> to vector<8x128xf32>
    %60 = vector.extract_strided_slice %58 {offsets = [8, 0], sizes = [8, 128], strides = [1, 1]} : vector<16x128xf32> to vector<8x128xf32>
    %c0_34 = arith.constant 0 : index
    %c0_35 = arith.constant 0 : index
    %61 = vector.load %arg4[%c0_34, %c0_35] : memref<128x128xbf16, #tpu.memory_space<vmem>>, vector<128x128xbf16>
    %62 = arith.truncf %58 : vector<16x128xf32> to vector<16x128xbf16>
    %cst = arith.constant dense<0.000000e+00> : vector<16x128xf32>
    %63 = tpu.matmul %62, %61, %cst {dimension_numbers = #tpu.dot_dimension_numbers<[1], [0], [0], [1], [0, 0, 1, 1], [], []>} : vector<16x128xbf16>, vector<128x128xbf16>, vector<16x128xf32> -> vector<16x128xf32>
    %c0_36 = arith.constant 0 : index
    %c0_37 = arith.constant 0 : index
    %64 = vector.load %arg5[%c0_36, %c0_37] : memref<1x128xf32, #tpu.memory_space<vmem>>, vector<1x128xf32>
    %65 = vector.broadcast %64 : vector<1x128xf32> to vector<16x128xf32>
    %66 = arith.addf %63, %65 : vector<16x128xf32>
    %c0_38 = arith.constant 0 : index
    %c0_39 = arith.constant 0 : index
    %67 = vector.load %arg6[%c0_38, %c0_39] : memref<128x512xbf16, #tpu.memory_space<vmem>>, vector<128x512xbf16>
    %68 = arith.truncf %66 : vector<16x128xf32> to vector<16x128xbf16>
    %cst_40 = arith.constant dense<0.000000e+00> : vector<16x512xf32>
    %69 = tpu.matmul %68, %67, %cst_40 {dimension_numbers = #tpu.dot_dimension_numbers<[1], [0], [0], [1], [0, 0, 1, 1], [], []>} : vector<16x128xbf16>, vector<128x512xbf16>, vector<16x512xf32> -> vector<16x512xf32>
    %c0_41 = arith.constant 0 : index
    %c0_42 = arith.constant 0 : index
    %70 = vector.load %arg7[%c0_41, %c0_42] : memref<1x512xf32, #tpu.memory_space<vmem>>, vector<1x512xf32>
    %71 = vector.broadcast %70 : vector<1x512xf32> to vector<16x512xf32>
    %72 = arith.addf %69, %71 : vector<16x512xf32>
    %cst_43 = arith.constant 5.000000e-01 : f32
    %73 = vector.broadcast %cst_43 : f32 to vector<16x512xf32>
    %74 = arith.mulf %73, %72 : vector<16x512xf32>
    %cst_44 = arith.constant 0.707106769 : f32
    %75 = vector.broadcast %cst_44 : f32 to vector<16x512xf32>
    %76 = arith.mulf %72, %75 : vector<16x512xf32>
    %77 = math.erf %76 : vector<16x512xf32>
    %cst_45 = arith.constant 1.000000e+00 : f32
    %78 = vector.broadcast %cst_45 : f32 to vector<16x512xf32>
    %79 = arith.addf %78, %77 : vector<16x512xf32>
    %80 = arith.mulf %74, %79 : vector<16x512xf32>
    %c0_46 = arith.constant 0 : index
    %c0_47 = arith.constant 0 : index
    %81 = vector.load %arg8[%c0_46, %c0_47] : memref<512x128xbf16, #tpu.memory_space<vmem>>, vector<512x128xbf16>
    %82 = arith.truncf %80 : vector<16x512xf32> to vector<16x512xbf16>
    %cst_48 = arith.constant dense<0.000000e+00> : vector<16x128xf32>
    %83 = tpu.matmul %82, %81, %cst_48 {dimension_numbers = #tpu.dot_dimension_numbers<[1], [0], [0], [1], [0, 0, 1, 1], [], []>} : vector<16x512xbf16>, vector<512x128xbf16>, vector<16x128xf32> -> vector<16x128xf32>
    %c0_49 = arith.constant 0 : index
    %c0_50 = arith.constant 0 : index
    %84 = vector.load %arg9[%c0_49, %c0_50] : memref<1x128xf32, #tpu.memory_space<vmem>>, vector<1x128xf32>
    %85 = vector.broadcast %84 : vector<1x128xf32> to vector<16x128xf32>
    %86 = arith.addf %83, %85 : vector<16x128xf32>
    %cst_51 = arith.constant dense<0.000000e+00> : vector<16xf32>
    %87 = vector.multi_reduction <add>, %86, %cst_51 [1] : vector<16x128xf32> to vector<16xf32>
    %88 = vector.shape_cast %87 : vector<16xf32> to vector<16x1xf32>
    %cst_52 = arith.constant 1.280000e+02 : f32
    %89 = vector.broadcast %cst_52 : f32 to vector<16x1xf32>
    %90 = arith.divf %88, %89 : vector<16x1xf32>
    %91 = vector.broadcast %90 : vector<16x1xf32> to vector<16x128xf32>
    %92 = arith.subf %86, %91 : vector<16x128xf32>
    %93 = arith.mulf %92, %92 : vector<16x128xf32>
    %cst_53 = arith.constant dense<0.000000e+00> : vector<16xf32>
    %94 = vector.multi_reduction <add>, %93, %cst_53 [1] : vector<16x128xf32> to vector<16xf32>
    %95 = vector.shape_cast %94 : vector<16xf32> to vector<16x1xf32>
    %cst_54 = arith.constant 1.280000e+02 : f32
    %96 = vector.broadcast %cst_54 : f32 to vector<16x1xf32>
    %97 = arith.divf %95, %96 : vector<16x1xf32>
    %cst_55 = arith.constant 9.99999974E-6 : f32
    %98 = vector.broadcast %cst_55 : f32 to vector<16x1xf32>
    %99 = arith.addf %97, %98 : vector<16x1xf32>
    %100 = math.rsqrt %99 : vector<16x1xf32>
    %101 = vector.broadcast %100 : vector<16x1xf32> to vector<16x128xf32>
    %102 = arith.mulf %92, %101 : vector<16x128xf32>
    %103 = vector.extract_strided_slice %102 {offsets = [0, 0], sizes = [8, 128], strides = [1, 1]} : vector<16x128xf32> to vector<8x128xf32>
    %104 = vector.extract_strided_slice %102 {offsets = [8, 0], sizes = [8, 128], strides = [1, 1]} : vector<16x128xf32> to vector<8x128xf32>
    %c0_i32_56 = arith.constant 0 : i32
    %c0_i32_57 = arith.constant 0 : i32
    %105 = tpu.memref_slice %arg3[%3, %c0_i32_57] : memref<128x128xf32, #tpu.memory_space<any>> -> memref<1x128xf32, #tpu.memory_space<any>>
    %c0_i32_58 = arith.constant 0 : i32
    %c0_i32_59 = arith.constant 0 : i32
    %106 = tpu.memref_slice %arg21[%c0_i32_58, %c0_i32_59] : memref<8x128xf32, #tpu.memory_space<vmem>> -> memref<1x128xf32, #tpu.memory_space<vmem>>
    %107 = tpu.memref_slice %arg22[%c0_i32_56] : memref<8x!tpu.dma_semaphore, #tpu.memory_space<semaphore_mem>> -> memref<1x!tpu.dma_semaphore, #tpu.memory_space<semaphore_mem>>
    %108 = tpu.memref_squeeze %107 : memref<1x!tpu.dma_semaphore, #tpu.memory_space<semaphore_mem>> -> memref<!tpu.dma_semaphore, #tpu.memory_space<semaphore_mem>>
    tpu.wait_dma2 semaphore(%108 : memref<!tpu.dma_semaphore, #tpu.memory_space<semaphore_mem>>) src(%105 : memref<1x128xf32, #tpu.memory_space<any>>) dst(%106 : memref<1x128xf32, #tpu.memory_space<vmem>>)
    %c1_i32_60 = arith.constant 1 : i32
    %c0_i32_61 = arith.constant 0 : i32
    %109 = tpu.memref_slice %arg3[%10, %c0_i32_61] : memref<128x128xf32, #tpu.memory_space<any>> -> memref<1x128xf32, #tpu.memory_space<any>>
    %c1_i32_62 = arith.constant 1 : i32
    %c0_i32_63 = arith.constant 0 : i32
    %110 = tpu.memref_slice %arg21[%c1_i32_62, %c0_i32_63] : memref<8x128xf32, #tpu.memory_space<vmem>> -> memref<1x128xf32, #tpu.memory_space<vmem>>
    %111 = tpu.memref_slice %arg22[%c1_i32_60] : memref<8x!tpu.dma_semaphore, #tpu.memory_space<semaphore_mem>> -> memref<1x!tpu.dma_semaphore, #tpu.memory_space<semaphore_mem>>
    %112 = tpu.memref_squeeze %111 : memref<1x!tpu.dma_semaphore, #tpu.memory_space<semaphore_mem>> -> memref<!tpu.dma_semaphore, #tpu.memory_space<semaphore_mem>>
    tpu.wait_dma2 semaphore(%112 : memref<!tpu.dma_semaphore, #tpu.memory_space<semaphore_mem>>) src(%109 : memref<1x128xf32, #tpu.memory_space<any>>) dst(%110 : memref<1x128xf32, #tpu.memory_space<vmem>>)
    %c2_i32_64 = arith.constant 2 : i32
    %c0_i32_65 = arith.constant 0 : i32
    %113 = tpu.memref_slice %arg3[%17, %c0_i32_65] : memref<128x128xf32, #tpu.memory_space<any>> -> memref<1x128xf32, #tpu.memory_space<any>>
    %c2_i32_66 = arith.constant 2 : i32
    %c0_i32_67 = arith.constant 0 : i32
    %114 = tpu.memref_slice %arg21[%c2_i32_66, %c0_i32_67] : memref<8x128xf32, #tpu.memory_space<vmem>> -> memref<1x128xf32, #tpu.memory_space<vmem>>
    %115 = tpu.memref_slice %arg22[%c2_i32_64] : memref<8x!tpu.dma_semaphore, #tpu.memory_space<semaphore_mem>> -> memref<1x!tpu.dma_semaphore, #tpu.memory_space<semaphore_mem>>
    %116 = tpu.memref_squeeze %115 : memref<1x!tpu.dma_semaphore, #tpu.memory_space<semaphore_mem>> -> memref<!tpu.dma_semaphore, #tpu.memory_space<semaphore_mem>>
    tpu.wait_dma2 semaphore(%116 : memref<!tpu.dma_semaphore, #tpu.memory_space<semaphore_mem>>) src(%113 : memref<1x128xf32, #tpu.memory_space<any>>) dst(%114 : memref<1x128xf32, #tpu.memory_space<vmem>>)
    %c3_i32_68 = arith.constant 3 : i32
    %c0_i32_69 = arith.constant 0 : i32
    %117 = tpu.memref_slice %arg3[%24, %c0_i32_69] : memref<128x128xf32, #tpu.memory_space<any>> -> memref<1x128xf32, #tpu.memory_space<any>>
    %c3_i32_70 = arith.constant 3 : i32
    %c0_i32_71 = arith.constant 0 : i32
    %118 = tpu.memref_slice %arg21[%c3_i32_70, %c0_i32_71] : memref<8x128xf32, #tpu.memory_space<vmem>> -> memref<1x128xf32, #tpu.memory_space<vmem>>
    %119 = tpu.memref_slice %arg22[%c3_i32_68] : memref<8x!tpu.dma_semaphore, #tpu.memory_space<semaphore_mem>> -> memref<1x!tpu.dma_semaphore, #tpu.memory_space<semaphore_mem>>
    %120 = tpu.memref_squeeze %119 : memref<1x!tpu.dma_semaphore, #tpu.memory_space<semaphore_mem>> -> memref<!tpu.dma_semaphore, #tpu.memory_space<semaphore_mem>>
    tpu.wait_dma2 semaphore(%120 : memref<!tpu.dma_semaphore, #tpu.memory_space<semaphore_mem>>) src(%117 : memref<1x128xf32, #tpu.memory_space<any>>) dst(%118 : memref<1x128xf32, #tpu.memory_space<vmem>>)
    %c4_i32_72 = arith.constant 4 : i32
    %c0_i32_73 = arith.constant 0 : i32
    %121 = tpu.memref_slice %arg3[%31, %c0_i32_73] : memref<128x128xf32, #tpu.memory_space<any>> -> memref<1x128xf32, #tpu.memory_space<any>>
    %c4_i32_74 = arith.constant 4 : i32
    %c0_i32_75 = arith.constant 0 : i32
    %122 = tpu.memref_slice %arg21[%c4_i32_74, %c0_i32_75] : memref<8x128xf32, #tpu.memory_space<vmem>> -> memref<1x128xf32, #tpu.memory_space<vmem>>
    %123 = tpu.memref_slice %arg22[%c4_i32_72] : memref<8x!tpu.dma_semaphore, #tpu.memory_space<semaphore_mem>> -> memref<1x!tpu.dma_semaphore, #tpu.memory_space<semaphore_mem>>
    %124 = tpu.memref_squeeze %123 : memref<1x!tpu.dma_semaphore, #tpu.memory_space<semaphore_mem>> -> memref<!tpu.dma_semaphore, #tpu.memory_space<semaphore_mem>>
    tpu.wait_dma2 semaphore(%124 : memref<!tpu.dma_semaphore, #tpu.memory_space<semaphore_mem>>) src(%121 : memref<1x128xf32, #tpu.memory_space<any>>) dst(%122 : memref<1x128xf32, #tpu.memory_space<vmem>>)
    %c5_i32_76 = arith.constant 5 : i32
    %c0_i32_77 = arith.constant 0 : i32
    %125 = tpu.memref_slice %arg3[%38, %c0_i32_77] : memref<128x128xf32, #tpu.memory_space<any>> -> memref<1x128xf32, #tpu.memory_space<any>>
    %c5_i32_78 = arith.constant 5 : i32
    %c0_i32_79 = arith.constant 0 : i32
    %126 = tpu.memref_slice %arg21[%c5_i32_78, %c0_i32_79] : memref<8x128xf32, #tpu.memory_space<vmem>> -> memref<1x128xf32, #tpu.memory_space<vmem>>
    %127 = tpu.memref_slice %arg22[%c5_i32_76] : memref<8x!tpu.dma_semaphore, #tpu.memory_space<semaphore_mem>> -> memref<1x!tpu.dma_semaphore, #tpu.memory_space<semaphore_mem>>
    %128 = tpu.memref_squeeze %127 : memref<1x!tpu.dma_semaphore, #tpu.memory_space<semaphore_mem>> -> memref<!tpu.dma_semaphore, #tpu.memory_space<semaphore_mem>>
    tpu.wait_dma2 semaphore(%128 : memref<!tpu.dma_semaphore, #tpu.memory_space<semaphore_mem>>) src(%125 : memref<1x128xf32, #tpu.memory_space<any>>) dst(%126 : memref<1x128xf32, #tpu.memory_space<vmem>>)
    %c6_i32_80 = arith.constant 6 : i32
    %c0_i32_81 = arith.constant 0 : i32
    %129 = tpu.memref_slice %arg3[%45, %c0_i32_81] : memref<128x128xf32, #tpu.memory_space<any>> -> memref<1x128xf32, #tpu.memory_space<any>>
    %c6_i32_82 = arith.constant 6 : i32
    %c0_i32_83 = arith.constant 0 : i32
    %130 = tpu.memref_slice %arg21[%c6_i32_82, %c0_i32_83] : memref<8x128xf32, #tpu.memory_space<vmem>> -> memref<1x128xf32, #tpu.memory_space<vmem>>
    %131 = tpu.memref_slice %arg22[%c6_i32_80] : memref<8x!tpu.dma_semaphore, #tpu.memory_space<semaphore_mem>> -> memref<1x!tpu.dma_semaphore, #tpu.memory_space<semaphore_mem>>
    %132 = tpu.memref_squeeze %131 : memref<1x!tpu.dma_semaphore, #tpu.memory_space<semaphore_mem>> -> memref<!tpu.dma_semaphore, #tpu.memory_space<semaphore_mem>>
    tpu.wait_dma2 semaphore(%132 : memref<!tpu.dma_semaphore, #tpu.memory_space<semaphore_mem>>) src(%129 : memref<1x128xf32, #tpu.memory_space<any>>) dst(%130 : memref<1x128xf32, #tpu.memory_space<vmem>>)
    %c7_i32_84 = arith.constant 7 : i32
    %c0_i32_85 = arith.constant 0 : i32
    %133 = tpu.memref_slice %arg3[%52, %c0_i32_85] : memref<128x128xf32, #tpu.memory_space<any>> -> memref<1x128xf32, #tpu.memory_space<any>>
    %c7_i32_86 = arith.constant 7 : i32
    %c0_i32_87 = arith.constant 0 : i32
    %134 = tpu.memref_slice %arg21[%c7_i32_86, %c0_i32_87] : memref<8x128xf32, #tpu.memory_space<vmem>> -> memref<1x128xf32, #tpu.memory_space<vmem>>
    %135 = tpu.memref_slice %arg22[%c7_i32_84] : memref<8x!tpu.dma_semaphore, #tpu.memory_space<semaphore_mem>> -> memref<1x!tpu.dma_semaphore, #tpu.memory_space<semaphore_mem>>
    %136 = tpu.memref_squeeze %135 : memref<1x!tpu.dma_semaphore, #tpu.memory_space<semaphore_mem>> -> memref<!tpu.dma_semaphore, #tpu.memory_space<semaphore_mem>>
    tpu.wait_dma2 semaphore(%136 : memref<!tpu.dma_semaphore, #tpu.memory_space<semaphore_mem>>) src(%133 : memref<1x128xf32, #tpu.memory_space<any>>) dst(%134 : memref<1x128xf32, #tpu.memory_space<vmem>>)
    %c0_88 = arith.constant 0 : index
    %c0_89 = arith.constant 0 : index
    %137 = vector.load %arg10[%c0_88, %c0_89] : memref<128x128xbf16, #tpu.memory_space<vmem>>, vector<128x128xbf16>
    %138 = arith.truncf %103 : vector<8x128xf32> to vector<8x128xbf16>
    %cst_90 = arith.constant dense<0.000000e+00> : vector<8x128xf32>
    %139 = tpu.matmul %138, %137, %cst_90 {dimension_numbers = #tpu.dot_dimension_numbers<[1], [0], [0], [1], [0, 0, 1, 1], [], []>} : vector<8x128xbf16>, vector<128x128xbf16>, vector<8x128xf32> -> vector<8x128xf32>
    %c0_91 = arith.constant 0 : index
    %c0_92 = arith.constant 0 : index
    %140 = vector.load %arg11[%c0_91, %c0_92] : memref<128x128xbf16, #tpu.memory_space<vmem>>, vector<128x128xbf16>
    %141 = arith.truncf %104 : vector<8x128xf32> to vector<8x128xbf16>
    %cst_93 = arith.constant dense<0.000000e+00> : vector<8x128xf32>
    %142 = tpu.matmul %141, %140, %cst_93 {dimension_numbers = #tpu.dot_dimension_numbers<[1], [0], [0], [1], [0, 0, 1, 1], [], []>} : vector<8x128xbf16>, vector<128x128xbf16>, vector<8x128xf32> -> vector<8x128xf32>
    %143 = arith.addf %139, %142 : vector<8x128xf32>
    %c0_94 = arith.constant 0 : index
    %c0_95 = arith.constant 0 : index
    %144 = vector.load %arg12[%c0_94, %c0_95] : memref<1x128xf32, #tpu.memory_space<vmem>>, vector<1x128xf32>
    %145 = vector.broadcast %144 : vector<1x128xf32> to vector<8x128xf32>
    %146 = arith.addf %143, %145 : vector<8x128xf32>
    %c0_96 = arith.constant 0 : index
    %c0_97 = arith.constant 0 : index
    %147 = vector.load %arg21[%c0_96, %c0_97] : memref<8x128xf32, #tpu.memory_space<vmem>>, vector<8x128xf32>
    %148 = arith.addf %146, %147 : vector<8x128xf32>
    %c0_98 = arith.constant 0 : index
    %c0_99 = arith.constant 0 : index
    %149 = vector.load %arg13[%c0_98, %c0_99] : memref<128x512xbf16, #tpu.memory_space<vmem>>, vector<128x512xbf16>
    %150 = arith.truncf %148 : vector<8x128xf32> to vector<8x128xbf16>
    %cst_100 = arith.constant dense<0.000000e+00> : vector<8x512xf32>
    %151 = tpu.matmul %150, %149, %cst_100 {dimension_numbers = #tpu.dot_dimension_numbers<[1], [0], [0], [1], [0, 0, 1, 1], [], []>} : vector<8x128xbf16>, vector<128x512xbf16>, vector<8x512xf32> -> vector<8x512xf32>
    %c0_101 = arith.constant 0 : index
    %c0_102 = arith.constant 0 : index
    %152 = vector.load %arg14[%c0_101, %c0_102] : memref<1x512xf32, #tpu.memory_space<vmem>>, vector<1x512xf32>
    %153 = vector.broadcast %152 : vector<1x512xf32> to vector<8x512xf32>
    %154 = arith.addf %151, %153 : vector<8x512xf32>
    %cst_103 = arith.constant 5.000000e-01 : f32
    %155 = vector.broadcast %cst_103 : f32 to vector<8x512xf32>
    %156 = arith.mulf %155, %154 : vector<8x512xf32>
    %cst_104 = arith.constant 0.707106769 : f32
    %157 = vector.broadcast %cst_104 : f32 to vector<8x512xf32>
    %158 = arith.mulf %154, %157 : vector<8x512xf32>
    %159 = math.erf %158 : vector<8x512xf32>
    %cst_105 = arith.constant 1.000000e+00 : f32
    %160 = vector.broadcast %cst_105 : f32 to vector<8x512xf32>
    %161 = arith.addf %160, %159 : vector<8x512xf32>
    %162 = arith.mulf %156, %161 : vector<8x512xf32>
    %c0_106 = arith.constant 0 : index
    %c0_107 = arith.constant 0 : index
    %163 = vector.load %arg15[%c0_106, %c0_107] : memref<512x128xbf16, #tpu.memory_space<vmem>>, vector<512x128xbf16>
    %164 = arith.truncf %162 : vector<8x512xf32> to vector<8x512xbf16>
    %cst_108 = arith.constant dense<0.000000e+00> : vector<8x128xf32>
    %165 = tpu.matmul %164, %163, %cst_108 {dimension_numbers = #tpu.dot_dimension_numbers<[1], [0], [0], [1], [0, 0, 1, 1], [], []>} : vector<8x512xbf16>, vector<512x128xbf16>, vector<8x128xf32> -> vector<8x128xf32>
    %c0_109 = arith.constant 0 : index
    %c0_110 = arith.constant 0 : index
    %166 = vector.load %arg16[%c0_109, %c0_110] : memref<1x128xf32, #tpu.memory_space<vmem>>, vector<1x128xf32>
    %167 = vector.broadcast %166 : vector<1x128xf32> to vector<8x128xf32>
    %168 = arith.addf %165, %167 : vector<8x128xf32>
    %cst_111 = arith.constant dense<0.000000e+00> : vector<8xf32>
    %169 = vector.multi_reduction <add>, %168, %cst_111 [1] : vector<8x128xf32> to vector<8xf32>
    %170 = vector.shape_cast %169 : vector<8xf32> to vector<8x1xf32>
    %cst_112 = arith.constant 1.280000e+02 : f32
    %171 = vector.broadcast %cst_112 : f32 to vector<8x1xf32>
    %172 = arith.divf %170, %171 : vector<8x1xf32>
    %173 = vector.broadcast %172 : vector<8x1xf32> to vector<8x128xf32>
    %174 = arith.subf %168, %173 : vector<8x128xf32>
    %175 = arith.mulf %174, %174 : vector<8x128xf32>
    %cst_113 = arith.constant dense<0.000000e+00> : vector<8xf32>
    %176 = vector.multi_reduction <add>, %175, %cst_113 [1] : vector<8x128xf32> to vector<8xf32>
    %177 = vector.shape_cast %176 : vector<8xf32> to vector<8x1xf32>
    %cst_114 = arith.constant 1.280000e+02 : f32
    %178 = vector.broadcast %cst_114 : f32 to vector<8x1xf32>
    %179 = arith.divf %177, %178 : vector<8x1xf32>
    %cst_115 = arith.constant 9.99999974E-6 : f32
    %180 = vector.broadcast %cst_115 : f32 to vector<8x1xf32>
    %181 = arith.addf %179, %180 : vector<8x1xf32>
    %182 = math.rsqrt %181 : vector<8x1xf32>
    %183 = vector.broadcast %182 : vector<8x1xf32> to vector<8x128xf32>
    %184 = arith.mulf %174, %183 : vector<8x128xf32>
    %c0_116 = arith.constant 0 : index
    %c0_117 = arith.constant 0 : index
    %185 = vector.load %arg17[%c0_116, %c0_117] : memref<1x128xf32, #tpu.memory_space<vmem>>, vector<1x128xf32>
    %186 = vector.broadcast %185 : vector<1x128xf32> to vector<8x128xf32>
    %187 = arith.mulf %184, %186 : vector<8x128xf32>
    %cst_118 = arith.constant dense<0.000000e+00> : vector<8xf32>
    %188 = vector.multi_reduction <add>, %187, %cst_118 [1] : vector<8x128xf32> to vector<8xf32>
    %189 = vector.shape_cast %188 : vector<8xf32> to vector<8x1xf32>
    %c0_119 = arith.constant 0 : index
    %c0_120 = arith.constant 0 : index
    %190 = vector.load %arg18[%c0_119, %c0_120] : memref<1x1xf32, #tpu.memory_space<vmem>>, vector<1x1xf32>
    %191 = vector.broadcast %190 : vector<1x1xf32> to vector<8x1xf32>
    %192 = arith.addf %189, %191 : vector<8x1xf32>
    %193 = arith.negf %192 : vector<8x1xf32>
    %194 = math.exp %193 : vector<8x1xf32>
    %cst_121 = arith.constant 1.000000e+00 : f32
    %195 = vector.broadcast %cst_121 : f32 to vector<8x1xf32>
    %196 = arith.addf %195, %194 : vector<8x1xf32>
    %197 = arith.divf %195, %196 : vector<8x1xf32>
    %cst_122 = arith.constant 8.000000e+00 : f32
    %198 = vector.broadcast %cst_122 : f32 to vector<8x1xf32>
    %199 = arith.mulf %197, %198 : vector<8x1xf32>
    %200 = tpu.reciprocal %199 {approx = true} : vector<8x1xf32> -> vector<8x1xf32>
    %201 = vector.broadcast %200 : vector<8x1xf32> to vector<8x128xf32>
    %202 = arith.mulf %60, %201 : vector<8x128xf32>
    %203 = vector.broadcast %200 : vector<8x1xf32> to vector<8x128xf32>
    %204 = arith.mulf %59, %203 : vector<8x128xf32>
    %cst_123 = arith.constant dense<0xFF800000> : vector<8xf32>
    %205 = vector.multi_reduction <maximumf>, %202, %cst_123 [1] : vector<8x128xf32> to vector<8xf32>
    %206 = vector.shape_cast %205 : vector<8xf32> to vector<8x1xf32>
    %207 = vector.broadcast %206 : vector<8x1xf32> to vector<8x128xf32>
    %208 = arith.subf %202, %207 : vector<8x128xf32>
    %cst_124 = arith.constant dense<0xFF800000> : vector<8xf32>
    %209 = vector.multi_reduction <maximumf>, %204, %cst_124 [1] : vector<8x128xf32> to vector<8xf32>
    %210 = vector.shape_cast %209 : vector<8xf32> to vector<8x1xf32>
    %211 = vector.broadcast %210 : vector<8x1xf32> to vector<8x128xf32>
    %212 = arith.subf %204, %211 : vector<8x128xf32>
    %213 = math.exp %208 : vector<8x128xf32>
    %214 = math.exp %212 : vector<8x128xf32>
    %cst_125 = arith.constant dense<0.000000e+00> : vector<8xf32>
    %215 = vector.multi_reduction <add>, %213, %cst_125 [1] : vector<8x128xf32> to vector<8xf32>
    %216 = vector.shape_cast %215 : vector<8xf32> to vector<8x1xf32>
    %cst_126 = arith.constant dense<0.000000e+00> : vector<8xf32>
    %217 = vector.multi_reduction <add>, %214, %cst_126 [1] : vector<8x128xf32> to vector<8xf32>
    %218 = vector.shape_cast %217 : vector<8xf32> to vector<8x1xf32>
    %219 = arith.subf %212, %208 : vector<8x128xf32>
    %220 = arith.mulf %214, %219 : vector<8x128xf32>
    %cst_127 = arith.constant dense<0.000000e+00> : vector<8xf32>
    %221 = vector.multi_reduction <add>, %220, %cst_127 [1] : vector<8x128xf32> to vector<8xf32>
    %222 = vector.shape_cast %221 : vector<8xf32> to vector<8x1xf32>
    %223 = tpu.reciprocal %218 {approx = true} : vector<8x1xf32> -> vector<8x1xf32>
    %224 = arith.mulf %222, %223 : vector<8x1xf32>
    %225 = math.log %216 : vector<8x1xf32>
    %226 = arith.addf %224, %225 : vector<8x1xf32>
    %227 = math.log %218 : vector<8x1xf32>
    %228 = arith.subf %226, %227 : vector<8x1xf32>
    %c0_128 = arith.constant 0 : index
    %c0_129 = arith.constant 0 : index
    %229 = vector.load %arg19[%c0_128, %c0_129] : memref<8x1xf32, #tpu.memory_space<vmem>>, vector<8x1xf32>
    tpu.vector_store %arg19[%c0_128, %c0_129], %199 {strides = array<i32>} : memref<8x1xf32, #tpu.memory_space<vmem>>, vector<8x1xf32>,
    %c0_130 = arith.constant 0 : index
    %c0_131 = arith.constant 0 : index
    %230 = vector.load %arg20[%c0_130, %c0_131] : memref<8x1xf32, #tpu.memory_space<vmem>>, vector<8x1xf32>
    tpu.vector_store %arg20[%c0_130, %c0_131], %228 {strides = array<i32>} : memref<8x1xf32, #tpu.memory_space<vmem>>, vector<8x1xf32>,
    return
  }
  func.func @transform_0(%arg0: i32, %arg1: memref<16xi32, #tpu.memory_space<smem>>) -> (i32, i32, i32) {
    %c0_i32 = arith.constant 0 : i32
    %c0_i32_0 = arith.constant 0 : i32
    %c0_i32_1 = arith.constant 0 : i32
    return %c0_i32, %arg0, %c0_i32_0 : i32, i32, i32
  }
  func.func @transform_2(%arg0: i32, %arg1: memref<16xi32, #tpu.memory_space<smem>>) -> (i32, i32) {
    %c0_i32 = arith.constant 0 : i32
    %c0_i32_0 = arith.constant 0 : i32
    %c0_i32_1 = arith.constant 0 : i32
    return %c0_i32, %c0_i32_0 : i32, i32
  }
  func.func @transform_3(%arg0: i32, %arg1: memref<16xi32, #tpu.memory_space<smem>>) -> (i32, i32) {
    %c0_i32 = arith.constant 0 : i32
    %c0_i32_0 = arith.constant 0 : i32
    %c0_i32_1 = arith.constant 0 : i32
    return %c0_i32, %c0_i32_0 : i32, i32
  }
  func.func @transform_4(%arg0: i32, %arg1: memref<16xi32, #tpu.memory_space<smem>>) -> (i32, i32) {
    %c0_i32 = arith.constant 0 : i32
    %c0_i32_0 = arith.constant 0 : i32
    %c0_i32_1 = arith.constant 0 : i32
    return %c0_i32, %c0_i32_0 : i32, i32
  }
  func.func @transform_5(%arg0: i32, %arg1: memref<16xi32, #tpu.memory_space<smem>>) -> (i32, i32) {
    %c0_i32 = arith.constant 0 : i32
    %c0_i32_0 = arith.constant 0 : i32
    %c0_i32_1 = arith.constant 0 : i32
    return %c0_i32, %c0_i32_0 : i32, i32
  }
  func.func @transform_6(%arg0: i32, %arg1: memref<16xi32, #tpu.memory_space<smem>>) -> (i32, i32) {
    %c0_i32 = arith.constant 0 : i32
    %c0_i32_0 = arith.constant 0 : i32
    %c0_i32_1 = arith.constant 0 : i32
    return %c0_i32, %c0_i32_0 : i32, i32
  }
  func.func @transform_7(%arg0: i32, %arg1: memref<16xi32, #tpu.memory_space<smem>>) -> (i32, i32) {
    %c0_i32 = arith.constant 0 : i32
    %c0_i32_0 = arith.constant 0 : i32
    %c0_i32_1 = arith.constant 0 : i32
    return %c0_i32, %c0_i32_0 : i32, i32
  }
  func.func @transform_8(%arg0: i32, %arg1: memref<16xi32, #tpu.memory_space<smem>>) -> (i32, i32) {
    %c0_i32 = arith.constant 0 : i32
    %c0_i32_0 = arith.constant 0 : i32
    %c0_i32_1 = arith.constant 0 : i32
    return %c0_i32, %c0_i32_0 : i32, i32
  }
  func.func @transform_9(%arg0: i32, %arg1: memref<16xi32, #tpu.memory_space<smem>>) -> (i32, i32) {
    %c0_i32 = arith.constant 0 : i32
    %c0_i32_0 = arith.constant 0 : i32
    %c0_i32_1 = arith.constant 0 : i32
    return %c0_i32, %c0_i32_0 : i32, i32
  }
  func.func @transform_10(%arg0: i32, %arg1: memref<16xi32, #tpu.memory_space<smem>>) -> (i32, i32) {
    %c0_i32 = arith.constant 0 : i32
    %c0_i32_0 = arith.constant 0 : i32
    %c0_i32_1 = arith.constant 0 : i32
    return %c0_i32, %c0_i32_0 : i32, i32
  }
  func.func @transform_11(%arg0: i32, %arg1: memref<16xi32, #tpu.memory_space<smem>>) -> (i32, i32) {
    %c0_i32 = arith.constant 0 : i32
    %c0_i32_0 = arith.constant 0 : i32
    %c0_i32_1 = arith.constant 0 : i32
    return %c0_i32, %c0_i32_0 : i32, i32
  }
  func.func @transform_12(%arg0: i32, %arg1: memref<16xi32, #tpu.memory_space<smem>>) -> (i32, i32) {
    %c0_i32 = arith.constant 0 : i32
    %c0_i32_0 = arith.constant 0 : i32
    %c0_i32_1 = arith.constant 0 : i32
    return %c0_i32, %c0_i32_0 : i32, i32
  }
  func.func @transform_13(%arg0: i32, %arg1: memref<16xi32, #tpu.memory_space<smem>>) -> (i32, i32) {
    %c0_i32 = arith.constant 0 : i32
    %c0_i32_0 = arith.constant 0 : i32
    %c0_i32_1 = arith.constant 0 : i32
    return %c0_i32, %c0_i32_0 : i32, i32
  }
  func.func @transform_14(%arg0: i32, %arg1: memref<16xi32, #tpu.memory_space<smem>>) -> (i32, i32) {
    %c0_i32 = arith.constant 0 : i32
    %c0_i32_0 = arith.constant 0 : i32
    %c0_i32_1 = arith.constant 0 : i32
    return %c0_i32, %c0_i32_0 : i32, i32
  }
  func.func @transform_15(%arg0: i32, %arg1: memref<16xi32, #tpu.memory_space<smem>>) -> (i32, i32) {
    %c0_i32 = arith.constant 0 : i32
    %c0_i32_0 = arith.constant 0 : i32
    %c0_i32_1 = arith.constant 0 : i32
    return %c0_i32, %c0_i32_0 : i32, i32
  }
  func.func @transform_16(%arg0: i32, %arg1: memref<16xi32, #tpu.memory_space<smem>>) -> (i32, i32) {
    %c0_i32 = arith.constant 0 : i32
    %c0_i32_0 = arith.constant 0 : i32
    %c0_i32_1 = arith.constant 0 : i32
    return %c0_i32, %c0_i32_0 : i32, i32
  }
  func.func @transform_17(%arg0: i32, %arg1: memref<16xi32, #tpu.memory_space<smem>>) -> (i32, i32) {
    %c0_i32 = arith.constant 0 : i32
    %c0_i32_0 = arith.constant 0 : i32
    return %arg0, %c0_i32 : i32, i32
  }
  func.func @transform_18(%arg0: i32, %arg1: memref<16xi32, #tpu.memory_space<smem>>) -> (i32, i32) {
    %c0_i32 = arith.constant 0 : i32
    %c0_i32_0 = arith.constant 0 : i32
    return %arg0, %c0_i32 : i32, i32
  }
}

</mosaic_0001>

<llo_original>
// kernel: learnable_kd_loss.1
$region0: #{learnable_kd_loss.1}
  #allocation0 [shape = 'u32[]', space=smem, size = 0x4, offset = 0x4, fixed_abs, tag = 'smem constant byte address 0x4 - core index']
  #allocation1 [shape = 'u32[72,128]{1,0:T(1,128)}', space=vmem, size = 0x9000, scoped, tag = 'internal scratch']
  #allocation2 [shape = 'f32[8,128]{1,0:T(8,128)}', space=vmem, size = 0x1000, scoped, tag = 'scratch operand']
  #allocation3 [shape = 's32[8]{0}', space=sflag, size = 0x20, scoped, tag = 'scratch operand']
  #allocation4 [shape = 's32[1]{0}', space=sflag, size = 0x4, scoped, tag = 'scoped memory for learnable_kd_loss.1']
  #allocation5 [shape = 'u8[512]{0}', space=smem, size = 0x200, scoped, tag = 'prefetched SMEM operand 0']
  #allocation6 [shape = 'f32[1,1]{1,0:T(1,128)S(1)}', space=vmem, size = 0x200, scoped, tag = 'scoped memory for learnable_kd_loss.1']
  #allocation18 [shape = 's32[]', space=sflag, size = 0x4, offset = 0, fixed_abs, tag = 'sflag constant byte address 0x0 - dummy sync flag']
  #allocation19 [shape = 's32[]', space=sflag, size = 0x4, offset = 0, fixed_abs, tag = 'sflag constant byte address 0x0 - dummy sync flag']
  #allocation20 [shape = 'u32[]', space=smem, size = 0x4, offset = 0x44, fixed_abs, tag = 'smem constant byte address 0x44 - assertion arg 0']
  #allocation21 [shape = 'u32[]', space=smem, size = 0x4, offset = 0x48, fixed_abs, tag = 'smem constant byte address 0x48 - assertion arg 1']
  #allocation22 [shape = 's32[]', space=sflag, size = 0x4, offset = 0, fixed_abs, tag = 'sflag constant byte address 0x0 - dummy sync flag']
  #allocation23 [shape = 's32[]', space=sflag, size = 0x4, offset = 0, fixed_abs, tag = 'sflag constant byte address 0x0 - dummy sync flag']
  #allocation24 [shape = 's32[]', space=sflag, size = 0x4, offset = 0, fixed_abs, tag = 'sflag constant byte address 0x0 - dummy sync flag']
  #allocation25 [shape = 's32[]', space=sflag, size = 0x4, offset = 0, fixed_abs, tag = 'sflag constant byte address 0x0 - dummy sync flag']
  #allocation26 [shape = 's32[]', space=sflag, size = 0x4, offset = 0, fixed_abs, tag = 'sflag constant byte address 0x0 - dummy sync flag']
  #allocation27 [shape = 's32[]', space=sflag, size = 0x4, offset = 0, fixed_abs, tag = 'sflag constant byte address 0x0 - dummy sync flag']
  #allocation28 [shape = 's32[]', space=sflag, size = 0x4, offset = 0, fixed_abs, tag = 'sflag constant byte address 0x0 - dummy sync flag']
  #allocation29 [shape = 's32[]', space=sflag, size = 0x4, offset = 0, fixed_abs, tag = 'sflag constant byte address 0x0 - dummy sync flag']
  #allocation30 [shape = 's32[]', space=sflag, size = 0x4, offset = 0, fixed_abs, tag = 'sflag constant byte address 0x0 - dummy sync flag']
  #allocation31 [shape = 's32[]', space=sflag, size = 0x4, offset = 0, fixed_abs, tag = 'sflag constant byte address 0x0 - dummy sync flag']
  #allocation32 [shape = 's32[]', space=sflag, size = 0x4, offset = 0, fixed_abs, tag = 'sflag constant byte address 0x0 - dummy sync flag']
  #allocation33 [shape = 's32[]', space=sflag, size = 0x4, offset = 0, fixed_abs, tag = 'sflag constant byte address 0x0 - dummy sync flag']
  #allocation34 [shape = 's32[]', space=sflag, size = 0x4, offset = 0, fixed_abs, tag = 'sflag constant byte address 0x0 - dummy sync flag']
  #allocation35 [shape = 's32[]', space=sflag, size = 0x4, offset = 0, fixed_abs, tag = 'sflag constant byte address 0x0 - dummy sync flag']
  %s0 = inlined_call_operand.vmem [shape: s32[16], index: 0, kind: input, shape index: {}]
  %s1 = inlined_call_operand.vmem [shape: f32[2,16,128], index: 1, kind: input, shape index: {}]
  %s2 = inlined_call_operand.hbm [shape: f32[128,128], index: 2, kind: input, shape index: {}]
  %s3 = inlined_call_operand.vmem [shape: bf16[128,128], index: 3, kind: input, shape index: {}]
  %s4 = inlined_call_operand.vmem [shape: f32[1,128], index: 4, kind: input, shape index: {}]
  %s5 = inlined_call_operand.hbm [shape: bf16[128,512], index: 5, kind: input, shape index: {}]
  %s6 = inlined_call_operand.vmem [shape: f32[1,512], index: 6, kind: input, shape index: {}]
  %s7 = inlined_call_operand.hbm [shape: bf16[512,128], index: 7, kind: input, shape index: {}]
  %s8 = inlined_call_operand.vmem [shape: f32[1,128], index: 8, kind: input, shape index: {}]
  %s9 = inlined_call_operand.hbm [shape: bf16[128,128], index: 9, kind: input, shape index: {}]
  %s10 = inlined_call_operand.hbm [shape: bf16[128,128], index: 10, kind: input, shape index: {}]
  %s11 = inlined_call_operand.vmem [shape: f32[1,128], index: 11, kind: input, shape index: {}]
  %s12 = inlined_call_operand.hbm [shape: bf16[128,512], index: 12, kind: input, shape index: {}]
  %s13 = inlined_call_operand.vmem [shape: f32[1,512], index: 13, kind: input, shape index: {}]
  %s14 = inlined_call_operand.hbm [shape: bf16[512,128], index: 14, kind: input, shape index: {}]
  %s15 = inlined_call_operand.vmem [shape: f32[1,128], index: 15, kind: input, shape index: {}]
  %s16 = inlined_call_operand.vmem [shape: f32[1,128], index: 16, kind: input, shape index: {}]
  %s17 = inlined_call_operand.<no memory space> [shape: f32[1,1], index: 17, kind: input, shape index: {}]
  %s18 = inlined_call_operand.vmem [shape: f32[16,1], index: 18, kind: output, shape index: {0}]
  %s19 = inlined_call_operand.vmem [shape: f32[16,1], index: 19, kind: output, shape index: {1}]
  %20 = xla_tuple %s18, %s19
  %s21 = sld [smem:[#allocation0]]
  $region199: #{learnable_kd_loss.1} parent=0
    _
  %s23 = ssub.s32 1, %s21
  %s24 = scalar_select 0, %s23, %s21
  %s26 = sshll.u32 %s0, 4
  %s27 = int_to_ptr.vmem [resolvable:$true] %s26
  %29 = dma.vmem_to_smem %s27, 16, [#allocation5], [#allocation4]
  %v30 = vstv %s17
  %31 = vst [vmem:[#allocation6] sm:$0x1] %v30
  %33 = dma.done [#allocation4], 16
  %34 = sfence
  $region1: #{learnable_kd_loss.1} parent=0
    #allocation7 [shape = 'u8[16384]{0}', space=vmem, size = 0x4000, scoped, tag = 'input window, operand 1']
    #allocation8 [shape = 'u8[131072]{0}', space=vmem, size = 0x20000, scoped, tag = 'input window, operand 5, single buffered']
    #allocation9 [shape = 's32[2]{0}', space=sflag, size = 0x8, scoped, tag = 'scoped memory for learnable_kd_loss.1']
    #allocation10 [shape = 'u8[131072]{0}', space=vmem, size = 0x20000, scoped, tag = 'input window, operand 7, single buffered']
    #allocation11 [shape = 's32[1]{0}', space=sflag, size = 0x4, scoped, tag = 'scoped memory for learnable_kd_loss.1']
    #allocation12 [shape = 'u8[32768]{0}', space=vmem, size = 0x8000, scoped, tag = 'input window, operand 9, single buffered']
    #allocation13 [shape = 'u8[32768]{0}', space=vmem, size = 0x8000, scoped, tag = 'input window, operand 10, single buffered']
    #allocation14 [shape = 's32[1]{0}', space=sflag, size = 0x4, scoped, tag = 'scoped memory for learnable_kd_loss.1']
    #allocation15 [shape = 'u8[131072]{0}', space=vmem, size = 0x20000, scoped, tag = 'input window, operand 12, single buffered']
    #allocation16 [shape = 'u8[131072]{0}', space=vmem, size = 0x20000, scoped, tag = 'input window, operand 14, single buffered']
    #allocation17 [shape = 's32[1]{0}', space=sflag, size = 0x4, scoped, tag = 'scoped memory for learnable_kd_loss.1']
    %35 = vsyncpa [#allocation9], 0
    %36 = vsyncpa [#allocation11], 0
    %37 = vsyncpa [#allocation14], 0
    %38 = vsyncpa [#allocation17], 0
    loop: start=0, step=1, limit=4
    $region2: #{learnable_kd_loss.1} parent=1 // loop_pre_header
      _
    $region3: #{learnable_kd_loss.1} parent=1 // loop_header
      %s40 = sphi 0, %s44
      %p41 = scmp.ge.s32.totalorder %s40, 4
      %s50 = sphi 0, %s52
      %s53 = sphi 0, %s50
      %s54 = sphi 0, %s53
      %s70 = sphi 0, %s54
      %s74 = sphi 0, %s74
      %s76 = sphi 0, %s74
      %s77 = sphi 0, %s76
      %s91 = sphi 0, %s77
      %s95 = sphi 0, %s95
      %s97 = sphi 0, %s95
      %s98 = sphi 0, %s97
      %s112 = sphi 0, %s98
      %s116 = sphi 0, %s116
      %s118 = sphi 0, %s116
      %s119 = sphi 0, %s118
      %s133 = sphi 0, %s119
      %s137 = sphi 0, %s137
      %s139 = sphi 0, %s137
      %s140 = sphi 0, %s139
      %s154 = sphi 0, %s140
      %s158 = sphi 0, %s158
      %s160 = sphi 0, %s158
      %s161 = sphi 0, %s160
      %s175 = sphi 0, %s161
      %s179 = sphi 0, %s179
      %s181 = sphi 0, %s179
      %s182 = sphi 0, %s181
      %s196 = sphi 0, %s182
      %s200 = sphi 0, %s200
      %s202 = sphi 0, %s200
      %s203 = sphi 0, %s202
      %s217 = sphi 0, %s203
      %s221 = sphi 0, %s221
      %s223 = sphi 0, %s221
      %s224 = sphi 0, %s223
      %s238 = sphi 0, %s224
      %s242 = sphi 0, %s242
      %s244 = sphi 0, %s242
      %s245 = sphi 0, %s244
      %s259 = sphi 0, %s245
      %s263 = sphi 0, %s263
      %s265 = sphi 0, %s263
      %s266 = sphi 0, %s265
      %s280 = sphi 0, %s266
      %s284 = sphi 0, %s284
      %s286 = sphi 0, %s284
      %s287 = sphi 0, %s286
      %s301 = sphi 0, %s287
      %s305 = sphi 0, %s305
      %s307 = sphi 0, %s305
      %s308 = sphi 0, %s307
      %s322 = sphi 0, %s308
      %s326 = sphi 0, %s326
      %s328 = sphi 0, %s326
      %s329 = sphi 0, %s328
      %s343 = sphi 0, %s329
      %s347 = sphi 0, %s347
      %s349 = sphi 0, %s347
      %s350 = sphi 0, %s349
      %s364 = sphi 0, %s350
      %s368 = sphi 0, %s368
      %s370 = sphi 0, %s368
      %s371 = sphi 0, %s370
      %s385 = sphi 0, %s371
      %s391 = sphi 0, %s393
      %s394 = sphi 0, %s391
      %s395 = sphi 0, %s394
      %s411 = sphi 0, %s395
      %s417 = sphi 0, %s419
      %s420 = sphi 0, %s417
      %s421 = sphi 0, %s420
      %s437 = sphi 0, %s421
    $region4: #{learnable_kd_loss.1} parent=1 // loop_header_branch
      %43 = sbr.rel (%p41) target = $region8
    $region5: #{learnable_kd_loss.1} parent=1 // loop_body
      %s45 = ssub.s32 %s40, 1
      %s46 = ssub.s32 %s40, 2
      %s47 = sadd.s32 %s40, 1
      %s48 = ssub.s32 %s40, %s47
      %p49 = scmp.eq.s32.totalorder %s48, 0
      %s51 = sadd.s32 %s50, 1
      %s52 = scalar_select %p49, %s50, %s51
      %p55 = pneg %p49
      %p56 = scmp.eq.s32.totalorder %s40, 1
      %p57 = por %p55, %p56
      %p58 = scmp.ne.s32.totalorder %s50, %s53
      %p59 = scmp.eq.s32.totalorder %s40, 0
      %p60 = por %p58, %p59
      %p61 = scmp.ne.s32.totalorder %s50, %s53
      %p62 = scmp.eq.s32.totalorder %s45, 1
      %p63 = por %p61, %p62
      %p64 = scmp.ne.s32.totalorder %s53, %s54
      %p65 = scmp.eq.s32.totalorder %s45, 0
      %p66 = por %p64, %p65
      %p67 = scmp.ne.s32.totalorder %s53, %s54
      %p68 = scmp.eq.s32.totalorder %s46, 1
      %p69 = por %p67, %p68
      %p71 = scmp.ne.s32.totalorder %s54, %s70
      %p72 = scmp.eq.s32.totalorder %s46, 0
      %p73 = por %p71, %p72
      %s75 = sadd.s32 %s74, 1
      %p78 = scmp.eq.s32.totalorder %s40, 1
      %p79 = scmp.ne.s32.totalorder %s74, %s76
      %p80 = scmp.eq.s32.totalorder %s40, 0
      %p81 = por %p79, %p80
      %p82 = scmp.ne.s32.totalorder %s74, %s76
      %p83 = scmp.eq.s32.totalorder %s45, 1
      %p84 = por %p82, %p83
      %p85 = scmp.ne.s32.totalorder %s76, %s77
      %p86 = scmp.eq.s32.totalorder %s45, 0
      %p87 = por %p85, %p86
      %p88 = scmp.ne.s32.totalorder %s76, %s77
      %p89 = scmp.eq.s32.totalorder %s46, 1
      %p90 = por %p88, %p89
      %p92 = scmp.ne.s32.totalorder %s77, %s91
      %p93 = scmp.eq.s32.totalorder %s46, 0
      %p94 = por %p92, %p93
      %s96 = sadd.s32 %s95, 1
      %p99 = scmp.eq.s32.totalorder %s40, 1
      %p100 = scmp.ne.s32.totalorder %s95, %s97
      %p101 = scmp.eq.s32.totalorder %s40, 0
      %p102 = por %p100, %p101
      %p103 = scmp.ne.s32.totalorder %s95, %s97
      %p104 = scmp.eq.s32.totalorder %s45, 1
      %p105 = por %p103, %p104
      %p106 = scmp.ne.s32.totalorder %s97, %s98
      %p107 = scmp.eq.s32.totalorder %s45, 0
      %p108 = por %p106, %p107
      %p109 = scmp.ne.s32.totalorder %s97, %s98
      %p110 = scmp.eq.s32.totalorder %s46, 1
      %p111 = por %p109, %p110
      %p113 = scmp.ne.s32.totalorder %s98, %s112
      %p114 = scmp.eq.s32.totalorder %s46, 0
      %p115 = por %p113, %p114
      %s117 = sadd.s32 %s116, 1
      %p120 = scmp.eq.s32.totalorder %s40, 1
      %p121 = scmp.ne.s32.totalorder %s116, %s118
      %p122 = scmp.eq.s32.totalorder %s40, 0
      %p123 = por %p121, %p122
      %p124 = scmp.ne.s32.totalorder %s116, %s118
      %p125 = scmp.eq.s32.totalorder %s45, 1
      %p126 = por %p124, %p125
      %p127 = scmp.ne.s32.totalorder %s118, %s119
      %p128 = scmp.eq.s32.totalorder %s45, 0
      %p129 = por %p127, %p128
      %p130 = scmp.ne.s32.totalorder %s118, %s119
      %p131 = scmp.eq.s32.totalorder %s46, 1
      %p132 = por %p130, %p131
      %p134 = scmp.ne.s32.totalorder %s119, %s133
      %p135 = scmp.eq.s32.totalorder %s46, 0
      %p136 = por %p134, %p135
      %s138 = sadd.s32 %s137, 1
      %p141 = scmp.eq.s32.totalorder %s40, 1
      %p142 = scmp.ne.s32.totalorder %s137, %s139
      %p143 = scmp.eq.s32.totalorder %s40, 0
      %p144 = por %p142, %p143
      %p145 = scmp.ne.s32.totalorder %s137, %s139
      %p146 = scmp.eq.s32.totalorder %s45, 1
      %p147 = por %p145, %p146
      %p148 = scmp.ne.s32.totalorder %s139, %s140
      %p149 = scmp.eq.s32.totalorder %s45, 0
      %p150 = por %p148, %p149
      %p151 = scmp.ne.s32.totalorder %s139, %s140
      %p152 = scmp.eq.s32.totalorder %s46, 1
      %p153 = por %p151, %p152
      %p155 = scmp.ne.s32.totalorder %s140, %s154
      %p156 = scmp.eq.s32.totalorder %s46, 0
      %p157 = por %p155, %p156
      %s159 = sadd.s32 %s158, 1
      %p162 = scmp.eq.s32.totalorder %s40, 1
      %p163 = scmp.ne.s32.totalorder %s158, %s160
      %p164 = scmp.eq.s32.totalorder %s40, 0
      %p165 = por %p163, %p164
      %p166 = scmp.ne.s32.totalorder %s158, %s160
      %p167 = scmp.eq.s32.totalorder %s45, 1
      %p168 = por %p166, %p167
      %p169 = scmp.ne.s32.totalorder %s160, %s161
      %p170 = scmp.eq.s32.totalorder %s45, 0
      %p171 = por %p169, %p170
      %p172 = scmp.ne.s32.totalorder %s160, %s161
      %p173 = scmp.eq.s32.totalorder %s46, 1
      %p174 = por %p172, %p173
      %p176 = scmp.ne.s32.totalorder %s161, %s175
      %p177 = scmp.eq.s32.totalorder %s46, 0
      %p178 = por %p176, %p177
      %s180 = sadd.s32 %s179, 1
      %p183 = scmp.eq.s32.totalorder %s40, 1
      %p184 = scmp.ne.s32.totalorder %s179, %s181
      %p185 = scmp.eq.s32.totalorder %s40, 0
      %p186 = por %p184, %p185
      %p187 = scmp.ne.s32.totalorder %s179, %s181
      %p188 = scmp.eq.s32.totalorder %s45, 1
      %p189 = por %p187, %p188
      %p190 = scmp.ne.s32.totalorder %s181, %s182
      %p191 = scmp.eq.s32.totalorder %s45, 0
      %p192 = por %p190, %p191
      %p193 = scmp.ne.s32.totalorder %s181, %s182
      %p194 = scmp.eq.s32.totalorder %s46, 1
      %p195 = por %p193, %p194
      %p197 = scmp.ne.s32.totalorder %s182, %s196
      %p198 = scmp.eq.s32.totalorder %s46, 0
      %p199 = por %p197, %p198
      %s201 = sadd.s32 %s200, 1
      %p204 = scmp.eq.s32.totalorder %s40, 1
      %p205 = scmp.ne.s32.totalorder %s200, %s202
      %p206 = scmp.eq.s32.totalorder %s40, 0
      %p207 = por %p205, %p206
      %p208 = scmp.ne.s32.totalorder %s200, %s202
      %p209 = scmp.eq.s32.totalorder %s45, 1
      %p210 = por %p208, %p209
      %p211 = scmp.ne.s32.totalorder %s202, %s203
      %p212 = scmp.eq.s32.totalorder %s45, 0
      %p213 = por %p211, %p212
      %p214 = scmp.ne.s32.totalorder %s202, %s203
      %p215 = scmp.eq.s32.totalorder %s46, 1
      %p216 = por %p214, %p215
      %p218 = scmp.ne.s32.totalorder %s203, %s217
      %p219 = scmp.eq.s32.totalorder %s46, 0
      %p220 = por %p218, %p219
      %s222 = sadd.s32 %s221, 1
      %p225 = scmp.eq.s32.totalorder %s40, 1
      %p226 = scmp.ne.s32.totalorder %s221, %s223
      %p227 = scmp.eq.s32.totalorder %s40, 0
      %p228 = por %p226, %p227
      %p229 = scmp.ne.s32.totalorder %s221, %s223
      %p230 = scmp.eq.s32.totalorder %s45, 1
      %p231 = por %p229, %p230
      %p232 = scmp.ne.s32.totalorder %s223, %s224
      %p233 = scmp.eq.s32.totalorder %s45, 0
      %p234 = por %p232, %p233
      %p235 = scmp.ne.s32.totalorder %s223, %s224
      %p236 = scmp.eq.s32.totalorder %s46, 1
      %p237 = por %p235, %p236
      %p239 = scmp.ne.s32.totalorder %s224, %s238
      %p240 = scmp.eq.s32.totalorder %s46, 0
      %p241 = por %p239, %p240
      %s243 = sadd.s32 %s242, 1
      %p246 = scmp.eq.s32.totalorder %s40, 1
      %p247 = scmp.ne.s32.totalorder %s242, %s244
      %p248 = scmp.eq.s32.totalorder %s40, 0
      %p249 = por %p247, %p248
      %p250 = scmp.ne.s32.totalorder %s242, %s244
      %p251 = scmp.eq.s32.totalorder %s45, 1
      %p252 = por %p250, %p251
      %p253 = scmp.ne.s32.totalorder %s244, %s245
      %p254 = scmp.eq.s32.totalorder %s45, 0
      %p255 = por %p253, %p254
      %p256 = scmp.ne.s32.totalorder %s244, %s245
      %p257 = scmp.eq.s32.totalorder %s46, 1
      %p258 = por %p256, %p257
      %p260 = scmp.ne.s32.totalorder %s245, %s259
      %p261 = scmp.eq.s32.totalorder %s46, 0
      %p262 = por %p260, %p261
      %s264 = sadd.s32 %s263, 1
      %p267 = scmp.eq.s32.totalorder %s40, 1
      %p268 = scmp.ne.s32.totalorder %s263, %s265
      %p269 = scmp.eq.s32.totalorder %s40, 0
      %p270 = por %p268, %p269
      %p271 = scmp.ne.s32.totalorder %s263, %s265
      %p272 = scmp.eq.s32.totalorder %s45, 1
      %p273 = por %p271, %p272
      %p274 = scmp.ne.s32.totalorder %s265, %s266
      %p275 = scmp.eq.s32.totalorder %s45, 0
      %p276 = por %p274, %p275
      %p277 = scmp.ne.s32.totalorder %s265, %s266
      %p278 = scmp.eq.s32.totalorder %s46, 1
      %p279 = por %p277, %p278
      %p281 = scmp.ne.s32.totalorder %s266, %s280
      %p282 = scmp.eq.s32.totalorder %s46, 0
      %p283 = por %p281, %p282
      %s285 = sadd.s32 %s284, 1
      %p288 = scmp.eq.s32.totalorder %s40, 1
      %p289 = scmp.ne.s32.totalorder %s284, %s286
      %p290 = scmp.eq.s32.totalorder %s40, 0
      %p291 = por %p289, %p290
      %p292 = scmp.ne.s32.totalorder %s284, %s286
      %p293 = scmp.eq.s32.totalorder %s45, 1
      %p294 = por %p292, %p293
      %p295 = scmp.ne.s32.totalorder %s286, %s287
      %p296 = scmp.eq.s32.totalorder %s45, 0
      %p297 = por %p295, %p296
      %p298 = scmp.ne.s32.totalorder %s286, %s287
      %p299 = scmp.eq.s32.totalorder %s46, 1
      %p300 = por %p298, %p299
      %p302 = scmp.ne.s32.totalorder %s287, %s301
      %p303 = scmp.eq.s32.totalorder %s46, 0
      %p304 = por %p302, %p303
      %s306 = sadd.s32 %s305, 1
      %p309 = scmp.eq.s32.totalorder %s40, 1
      %p310 = scmp.ne.s32.totalorder %s305, %s307
      %p311 = scmp.eq.s32.totalorder %s40, 0
      %p312 = por %p310, %p311
      %p313 = scmp.ne.s32.totalorder %s305, %s307
      %p314 = scmp.eq.s32.totalorder %s45, 1
      %p315 = por %p313, %p314
      %p316 = scmp.ne.s32.totalorder %s307, %s308
      %p317 = scmp.eq.s32.totalorder %s45, 0
      %p318 = por %p316, %p317
      %p319 = scmp.ne.s32.totalorder %s307, %s308
      %p320 = scmp.eq.s32.totalorder %s46, 1
      %p321 = por %p319, %p320
      %p323 = scmp.ne.s32.totalorder %s308, %s322
      %p324 = scmp.eq.s32.totalorder %s46, 0
      %p325 = por %p323, %p324
      %s327 = sadd.s32 %s326, 1
      %p330 = scmp.eq.s32.totalorder %s40, 1
      %p331 = scmp.ne.s32.totalorder %s326, %s328
      %p332 = scmp.eq.s32.totalorder %s40, 0
      %p333 = por %p331, %p332
      %p334 = scmp.ne.s32.totalorder %s326, %s328
      %p335 = scmp.eq.s32.totalorder %s45, 1
      %p336 = por %p334, %p335
      %p337 = scmp.ne.s32.totalorder %s328, %s329
      %p338 = scmp.eq.s32.totalorder %s45, 0
      %p339 = por %p337, %p338
      %p340 = scmp.ne.s32.totalorder %s328, %s329
      %p341 = scmp.eq.s32.totalorder %s46, 1
      %p342 = por %p340, %p341
      %p344 = scmp.ne.s32.totalorder %s329, %s343
      %p345 = scmp.eq.s32.totalorder %s46, 0
      %p346 = por %p344, %p345
      %s348 = sadd.s32 %s347, 1
      %p351 = scmp.eq.s32.totalorder %s40, 1
      %p352 = scmp.ne.s32.totalorder %s347, %s349
      %p353 = scmp.eq.s32.totalorder %s40, 0
      %p354 = por %p352, %p353
      %p355 = scmp.ne.s32.totalorder %s347, %s349
      %p356 = scmp.eq.s32.totalorder %s45, 1
      %p357 = por %p355, %p356
      %p358 = scmp.ne.s32.totalorder %s349, %s350
      %p359 = scmp.eq.s32.totalorder %s45, 0
      %p360 = por %p358, %p359
      %p361 = scmp.ne.s32.totalorder %s349, %s350
      %p362 = scmp.eq.s32.totalorder %s46, 1
      %p363 = por %p361, %p362
      %p365 = scmp.ne.s32.totalorder %s350, %s364
      %p366 = scmp.eq.s32.totalorder %s46, 0
      %p367 = por %p365, %p366
      %s369 = sadd.s32 %s368, 1
      %p372 = scmp.eq.s32.totalorder %s40, 1
      %p373 = scmp.ne.s32.totalorder %s368, %s370
      %p374 = scmp.eq.s32.totalorder %s40, 0
      %p375 = por %p373, %p374
      %p376 = scmp.ne.s32.totalorder %s368, %s370
      %p377 = scmp.eq.s32.totalorder %s45, 1
      %p378 = por %p376, %p377
      %p379 = scmp.ne.s32.totalorder %s370, %s371
      %p380 = scmp.eq.s32.totalorder %s45, 0
      %p381 = por %p379, %p380
      %p382 = scmp.ne.s32.totalorder %s370, %s371
      %p383 = scmp.eq.s32.totalorder %s46, 1
      %p384 = por %p382, %p383
      %p386 = scmp.ne.s32.totalorder %s371, %s385
      %p387 = scmp.eq.s32.totalorder %s46, 0
      %p388 = por %p386, %p387
      %s389 = ssub.s32 %s40, %s47
      %p390 = scmp.eq.s32.totalorder %s389, 0
      %s392 = sadd.s32 %s391, 1
      %s393 = scalar_select %p390, %s391, %s392
      %p396 = pneg %p390
      %p397 = scmp.eq.s32.totalorder %s40, 1
      %p398 = por %p396, %p397
      %p399 = scmp.ne.s32.totalorder %s391, %s394
      %p400 = scmp.eq.s32.totalorder %s40, 0
      %p401 = por %p399, %p400
      %p402 = scmp.ne.s32.totalorder %s391, %s394
      %p403 = scmp.eq.s32.totalorder %s45, 1
      %p404 = por %p402, %p403
      %p405 = scmp.ne.s32.totalorder %s394, %s395
      %p406 = scmp.eq.s32.totalorder %s45, 0
      %p407 = por %p405, %p406
      %p408 = scmp.ne.s32.totalorder %s394, %s395
      %p409 = scmp.eq.s32.totalorder %s46, 1
      %p410 = por %p408, %p409
      %p412 = scmp.ne.s32.totalorder %s395, %s411
      %p413 = scmp.eq.s32.totalorder %s46, 0
      %p414 = por %p412, %p413
      %s415 = ssub.s32 %s40, %s47
      %p416 = scmp.eq.s32.totalorder %s415, 0
      %s418 = sadd.s32 %s417, 1
      %s419 = scalar_select %p416, %s417, %s418
      %p422 = pneg %p416
      %p423 = scmp.eq.s32.totalorder %s40, 1
      %p424 = por %p422, %p423
      %p425 = scmp.ne.s32.totalorder %s417, %s420
      %p426 = scmp.eq.s32.totalorder %s40, 0
      %p427 = por %p425, %p426
      %p428 = scmp.ne.s32.totalorder %s417, %s420
      %p429 = scmp.eq.s32.totalorder %s45, 1
      %p430 = por %p428, %p429
      %p431 = scmp.ne.s32.totalorder %s420, %s421
      %p432 = scmp.eq.s32.totalorder %s45, 0
      %p433 = por %p431, %p432
      %p434 = scmp.ne.s32.totalorder %s420, %s421
      %p435 = scmp.eq.s32.totalorder %s46, 1
      %p436 = por %p434, %p435
      %p438 = scmp.ne.s32.totalorder %s421, %s437
      %p439 = scmp.eq.s32.totalorder %s46, 0
      %p440 = por %p438, %p439
      %p441 = scmp.le.s32.totalorder 1, %s40
      %p442 = scmp.lt.s32.totalorder %s40, 3
      %p443 = pnand %p441, %p442
      %p444 = pneg %p443
      // Predicated region
      $region9: #{learnable_kd_loss.1} parent=5 // pred_check
        _
      $region10: #{learnable_kd_loss.1} parent=5 // pred_check_branch
        %446 = sbr.rel (%p443) target = $region12
      $region11: #{learnable_kd_loss.1} parent=5 // pred_region
        %s447 = ssub.s32 %s40, 1
        // Predicated region
        $region13: #{learnable_kd_loss.1} parent=11 // pred_check
          %p448 = pneg %p87
        $region14: #{learnable_kd_loss.1} parent=11 // pred_check_branch
          %450 = sbr.rel (%p448) target = $region16
        $region15: #{learnable_kd_loss.1} parent=11 // pred_region
          _
        $region16: #{learnable_kd_loss.1} parent=11 // pred_fallthru
          _
        // Predicated region
        $region17: #{learnable_kd_loss.1} parent=11 // pred_check
          %p451 = pneg %p108
        $region18: #{learnable_kd_loss.1} parent=11 // pred_check_branch
          %453 = sbr.rel (%p451) target = $region20
        $region19: #{learnable_kd_loss.1} parent=11 // pred_region
          _
        $region20: #{learnable_kd_loss.1} parent=11 // pred_fallthru
          _
        // Predicated region
        $region21: #{learnable_kd_loss.1} parent=11 // pred_check
          %p454 = pneg %p129
        $region22: #{learnable_kd_loss.1} parent=11 // pred_check_branch
          %456 = sbr.rel (%p454) target = $region24
        $region23: #{learnable_kd_loss.1} parent=11 // pred_region
          %458 = vsyncadd [#allocation9], 0
          %s459 = sshll.u32 %s5, 4
          %s460 = int_to_ptr.hbm [resolvable:$true] %s459
          %s461 = sshll.u32 [#allocation8], 4
          %s462 = int_to_ptr.vmem [resolvable:$true] %s461
          %467 = dma.hbm_to_vmem [thread:$0]  %s460, 4096, %s462, [#allocation9], 256, 256, 16
        $region24: #{learnable_kd_loss.1} parent=11 // pred_fallthru
          _
        // Predicated region
        $region25: #{learnable_kd_loss.1} parent=11 // pred_check
          %p468 = pneg %p150
        $region26: #{learnable_kd_loss.1} parent=11 // pred_check_branch
          %470 = sbr.rel (%p468) target = $region28
        $region27: #{learnable_kd_loss.1} parent=11 // pred_region
          _
        $region28: #{learnable_kd_loss.1} parent=11 // pred_fallthru
          _
        // Predicated region
        $region29: #{learnable_kd_loss.1} parent=11 // pred_check
          %p471 = pneg %p171
        $region30: #{learnable_kd_loss.1} parent=11 // pred_check_branch
          %473 = sbr.rel (%p471) target = $region32
        $region31: #{learnable_kd_loss.1} parent=11 // pred_region
          %475 = vsyncadd [#allocation11], 0
          %s476 = sshll.u32 %s7, 4
          %s477 = int_to_ptr.hbm [resolvable:$true] %s476
          %s478 = sshll.u32 [#allocation10], 4
          %s479 = int_to_ptr.vmem [resolvable:$true] %s478
          %484 = dma.hbm_to_vmem [thread:$0]  %s477, 4096, %s479, [#allocation11], 64, 64, 4
        $region32: #{learnable_kd_loss.1} parent=11 // pred_fallthru
          _
        // Predicated region
        $region33: #{learnable_kd_loss.1} parent=11 // pred_check
          %p485 = pneg %p192
        $region34: #{learnable_kd_loss.1} parent=11 // pred_check_branch
          %487 = sbr.rel (%p485) target = $region36
        $region35: #{learnable_kd_loss.1} parent=11 // pred_region
          _
        $region36: #{learnable_kd_loss.1} parent=11 // pred_fallthru
          _
        // Predicated region
        $region37: #{learnable_kd_loss.1} parent=11 // pred_check
          %p488 = pneg %p213
        $region38: #{learnable_kd_loss.1} parent=11 // pred_check_branch
          %490 = sbr.rel (%p488) target = $region40
        $region39: #{learnable_kd_loss.1} parent=11 // pred_region
          %492 = vsyncadd [#allocation11], 0
          %s493 = sshll.u32 %s9, 4
          %s494 = int_to_ptr.hbm [resolvable:$true] %s493
          %s495 = sshll.u32 [#allocation12], 4
          %s496 = int_to_ptr.vmem [resolvable:$true] %s495
          %501 = dma.hbm_to_vmem [thread:$0]  %s494, 1024, %s496, [#allocation11], 64, 64, 4
        $region40: #{learnable_kd_loss.1} parent=11 // pred_fallthru
          _
        // Predicated region
        $region41: #{learnable_kd_loss.1} parent=11 // pred_check
          %p502 = pneg %p234
        $region42: #{learnable_kd_loss.1} parent=11 // pred_check_branch
          %504 = sbr.rel (%p502) target = $region44
        $region43: #{learnable_kd_loss.1} parent=11 // pred_region
          %506 = vsyncadd [#allocation14], 0
          %s507 = sshll.u32 %s10, 4
          %s508 = int_to_ptr.hbm [resolvable:$true] %s507
          %s509 = sshll.u32 [#allocation13], 4
          %s510 = int_to_ptr.vmem [resolvable:$true] %s509
          %515 = dma.hbm_to_vmem [thread:$0]  %s508, 1024, %s510, [#allocation14], 64, 64, 4
        $region44: #{learnable_kd_loss.1} parent=11 // pred_fallthru
          _
        // Predicated region
        $region45: #{learnable_kd_loss.1} parent=11 // pred_check
          %p516 = pneg %p255
        $region46: #{learnable_kd_loss.1} parent=11 // pred_check_branch
          %518 = sbr.rel (%p516) target = $region48
        $region47: #{learnable_kd_loss.1} parent=11 // pred_region
          _
        $region48: #{learnable_kd_loss.1} parent=11 // pred_fallthru
          _
        // Predicated region
        $region49: #{learnable_kd_loss.1} parent=11 // pred_check
          %p519 = pneg %p276
        $region50: #{learnable_kd_loss.1} parent=11 // pred_check_branch
          %521 = sbr.rel (%p519) target = $region52
        $region51: #{learnable_kd_loss.1} parent=11 // pred_region
          %523 = vsyncadd [#allocation14], 0
          %s524 = sshll.u32 %s12, 4
          %s525 = int_to_ptr.hbm [resolvable:$true] %s524
          %s526 = sshll.u32 [#allocation15], 4
          %s527 = int_to_ptr.vmem [resolvable:$true] %s526
          %532 = dma.hbm_to_vmem [thread:$0]  %s525, 4096, %s527, [#allocation14], 256, 256, 16
        $region52: #{learnable_kd_loss.1} parent=11 // pred_fallthru
          _
        // Predicated region
        $region53: #{learnable_kd_loss.1} parent=11 // pred_check
          %p533 = pneg %p297
        $region54: #{learnable_kd_loss.1} parent=11 // pred_check_branch
          %535 = sbr.rel (%p533) target = $region56
        $region55: #{learnable_kd_loss.1} parent=11 // pred_region
          _
        $region56: #{learnable_kd_loss.1} parent=11 // pred_fallthru
          _
        // Predicated region
        $region57: #{learnable_kd_loss.1} parent=11 // pred_check
          %p536 = pneg %p318
        $region58: #{learnable_kd_loss.1} parent=11 // pred_check_branch
          %538 = sbr.rel (%p536) target = $region60
        $region59: #{learnable_kd_loss.1} parent=11 // pred_region
          %540 = vsyncadd [#allocation17], 0
          %s541 = sshll.u32 %s14, 4
          %s542 = int_to_ptr.hbm [resolvable:$true] %s541
          %s543 = sshll.u32 [#allocation16], 4
          %s544 = int_to_ptr.vmem [resolvable:$true] %s543
          %549 = dma.hbm_to_vmem [thread:$0]  %s542, 4096, %s544, [#allocation17], 64, 64, 4
        $region60: #{learnable_kd_loss.1} parent=11 // pred_fallthru
          _
        // Predicated region
        $region61: #{learnable_kd_loss.1} parent=11 // pred_check
          %p550 = pneg %p339
        $region62: #{learnable_kd_loss.1} parent=11 // pred_check_branch
          %552 = sbr.rel (%p550) target = $region64
        $region63: #{learnable_kd_loss.1} parent=11 // pred_region
          _
        $region64: #{learnable_kd_loss.1} parent=11 // pred_fallthru
          _
        // Predicated region
        $region65: #{learnable_kd_loss.1} parent=11 // pred_check
          %p553 = pneg %p360
        $region66: #{learnable_kd_loss.1} parent=11 // pred_check_branch
          %555 = sbr.rel (%p553) target = $region68
        $region67: #{learnable_kd_loss.1} parent=11 // pred_region
          _
        $region68: #{learnable_kd_loss.1} parent=11 // pred_fallthru
          _
        // Predicated region
        $region69: #{learnable_kd_loss.1} parent=11 // pred_check
          %p556 = pneg %p381
        $region70: #{learnable_kd_loss.1} parent=11 // pred_check_branch
          %558 = sbr.rel (%p556) target = $region72
        $region71: #{learnable_kd_loss.1} parent=11 // pred_region
          _
        $region72: #{learnable_kd_loss.1} parent=11 // pred_fallthru
          _
      $region12: #{learnable_kd_loss.1} parent=5 // pred_fallthru
        _
      %p559 = scmp.lt.s32.totalorder %s40, 2
      // Predicated region
      $region73: #{learnable_kd_loss.1} parent=5 // pred_check
        %p560 = pneg %p559
      $region74: #{learnable_kd_loss.1} parent=5 // pred_check_branch
        %562 = sbr.rel (%p560) target = $region76
      $region75: #{learnable_kd_loss.1} parent=5 // pred_region
        // Predicated region
        $region77: #{learnable_kd_loss.1} parent=75 // pred_check
          %p563 = pneg %p60
        $region78: #{learnable_kd_loss.1} parent=75 // pred_check_branch
          %565 = sbr.rel (%p563) target = $region80
        $region79: #{learnable_kd_loss.1} parent=75 // pred_region
          %s566 = sand.u32 %s50, 1
          %s567 = sand.u32 %s50, 1
          %s568 = smul.addr %s567, 16
          %s569 = scalar_lea.vmem [#allocation7], %s568
          %s570 = smul.addr %s40, 8
          %s571 = scalar_lea.vmem %s1, %s570
          // Predicated region
          $region81: #{learnable_kd_loss.1} parent=79 // pred_check
            _
          $region82: #{learnable_kd_loss.1} parent=79 // pred_check_branch
            %573 = sbr.rel (0) target = $region84
          $region83: #{learnable_kd_loss.1} parent=79 // pred_region
            // Predicated region
            $region85: #{learnable_kd_loss.1} parent=83 // pred_check
              _
            $region86: #{learnable_kd_loss.1} parent=83 // pred_check_branch
              %575 = sbr.rel (0) target = $region88
            $region87: #{learnable_kd_loss.1} parent=83 // pred_region
              // Predicated region
              $region100: #{learnable_kd_loss.1} parent=87 // pred_check
                _
              $region101: #{learnable_kd_loss.1} parent=87 // pred_check_branch
                %593 = sbr.rel (0) target = $region103
              $region102: #{learnable_kd_loss.1} parent=87 // pred_region
                loop: start=0, step=1, limit=1
                $region104: #{learnable_kd_loss.1} parent=102 // loop_pre_header
                  _
                $region105: #{learnable_kd_loss.1} parent=102 // loop_header
                  %s595 = sphi 0, %s599
                  %p596 = scmp.ge.s32.totalorder %s595, 1
                  %s600 = sphi %s571, %s571
                  %s601 = sphi %s569, %s569
                $region106: #{learnable_kd_loss.1} parent=102 // loop_header_branch
                  %598 = sbr.rel (%p596) target = $region110
                $region107: #{learnable_kd_loss.1} parent=102 // loop_body
                  %v602 = vld [vmem:[%s600] sm:$0xff]
                  %603 = vst [vmem:[%s601] sm:$0xff] %v602
                  %v604 = vld [vmem:[%s600 + $0x10] sm:$0xff]
                  %605 = vst [vmem:[%s601 + $0x8] sm:$0xff] %v604
                $region108: #{learnable_kd_loss.1} parent=102 // loop_footer
                  %s599 = sadd.s32 1, %s595
                $region109: #{learnable_kd_loss.1} parent=102 // loop_footer_branch
                  %594 = sbr.rel target = $region105
                $region110: #{learnable_kd_loss.1} parent=102 // loop_exit
                  _
              $region103: #{learnable_kd_loss.1} parent=87 // pred_fallthru
                _
              // Predicated region
              $region111: #{learnable_kd_loss.1} parent=87 // pred_check
                _
              $region112: #{learnable_kd_loss.1} parent=87 // pred_check_branch
                %607 = sbr.rel target = $region114
              $region113: #{learnable_kd_loss.1} parent=87 // pred_region
                _
              $region114: #{learnable_kd_loss.1} parent=87 // pred_fallthru
                _
            $region88: #{learnable_kd_loss.1} parent=83 // pred_fallthru
              _
            // Predicated region
            $region89: #{learnable_kd_loss.1} parent=83 // pred_check
              _
            $region90: #{learnable_kd_loss.1} parent=83 // pred_check_branch
              %577 = sbr.rel target = $region92
            $region91: #{learnable_kd_loss.1} parent=83 // pred_region
              %s579 = ssub.s32 256, 1
              loop: start=0, step=1, limit=1
              $region93: #{learnable_kd_loss.1} parent=91 // loop_pre_header
                _
              $region94: #{learnable_kd_loss.1} parent=91 // loop_header
                %s581 = sphi 0, %s585
                %p582 = scmp.ge.s32.totalorder %s581, 1
                %s586 = sphi %s571, %s571
                %s587 = sphi %s569, %s569
              $region95: #{learnable_kd_loss.1} parent=91 // loop_header_branch
                %584 = sbr.rel (%p582) target = $region99
              $region96: #{learnable_kd_loss.1} parent=91 // loop_body
                %v588 = vld [vmem:[%s586] sm:%s579]
                %589 = vst [vmem:[%s587] sm:%s579] %v588
                %v590 = vld [vmem:[%s586 + $0x10] sm:%s579]
                %591 = vst [vmem:[%s587 + $0x8] sm:%s579] %v590
              $region97: #{learnable_kd_loss.1} parent=91 // loop_footer
                %s585 = sadd.s32 1, %s581
              $region98: #{learnable_kd_loss.1} parent=91 // loop_footer_branch
                %580 = sbr.rel target = $region94
              $region99: #{learnable_kd_loss.1} parent=91 // loop_exit
                _
            $region92: #{learnable_kd_loss.1} parent=83 // pred_fallthru
              _
          $region84: #{learnable_kd_loss.1} parent=79 // pred_fallthru
            _
          %608 = vnop
        $region80: #{learnable_kd_loss.1} parent=75 // pred_fallthru
          _
      $region76: #{learnable_kd_loss.1} parent=5 // pred_fallthru
        _
      %p609 = scmp.le.s32.totalorder 1, %s40
      %p610 = scmp.lt.s32.totalorder %s40, 3
      %p611 = pnand %p609, %p610
      %p612 = pneg %p611
      // Predicated region
      $region115: #{learnable_kd_loss.1} parent=5 // pred_check
        _
      $region116: #{learnable_kd_loss.1} parent=5 // pred_check_branch
        %614 = sbr.rel (%p611) target = $region118
      $region117: #{learnable_kd_loss.1} parent=5 // pred_region
        %s615 = ssub.s32 %s40, 1
        %s616 = sand.u32 %s53, 1
        %s617 = sand.u32 %s53, 1
        %s618 = smul.addr %s617, 16
        %s619 = scalar_lea.vmem [#allocation7], %s618
        // Predicated region
        $region119: #{learnable_kd_loss.1} parent=117 // pred_check
          %p620 = pneg %p66
        $region120: #{learnable_kd_loss.1} parent=117 // pred_check_branch
          %622 = sbr.rel (%p620) target = $region122
        $region121: #{learnable_kd_loss.1} parent=117 // pred_region
          _
        $region122: #{learnable_kd_loss.1} parent=117 // pred_fallthru
          _
        // Predicated region
        $region123: #{learnable_kd_loss.1} parent=117 // pred_check
          %p623 = pneg %p129
        $region124: #{learnable_kd_loss.1} parent=117 // pred_check_branch
          %625 = sbr.rel (%p623) target = $region126
        $region125: #{learnable_kd_loss.1} parent=117 // pred_region
          %627 = dma.done [#allocation9], 4096
        $region126: #{learnable_kd_loss.1} parent=117 // pred_fallthru
          _
        // Predicated region
        $region127: #{learnable_kd_loss.1} parent=117 // pred_check
          %p628 = pneg %p171
        $region128: #{learnable_kd_loss.1} parent=117 // pred_check_branch
          %630 = sbr.rel (%p628) target = $region130
        $region129: #{learnable_kd_loss.1} parent=117 // pred_region
          %632 = dma.done [#allocation11], 4096
        $region130: #{learnable_kd_loss.1} parent=117 // pred_fallthru
          _
        // Predicated region
        $region131: #{learnable_kd_loss.1} parent=117 // pred_check
          %p633 = pneg %p213
        $region132: #{learnable_kd_loss.1} parent=117 // pred_check_branch
          %635 = sbr.rel (%p633) target = $region134
        $region133: #{learnable_kd_loss.1} parent=117 // pred_region
          %637 = dma.done [#allocation11], 1024
        $region134: #{learnable_kd_loss.1} parent=117 // pred_fallthru
          _
        // Predicated region
        $region135: #{learnable_kd_loss.1} parent=117 // pred_check
          %p638 = pneg %p234
        $region136: #{learnable_kd_loss.1} parent=117 // pred_check_branch
          %640 = sbr.rel (%p638) target = $region138
        $region137: #{learnable_kd_loss.1} parent=117 // pred_region
          %642 = dma.done [#allocation14], 1024
        $region138: #{learnable_kd_loss.1} parent=117 // pred_fallthru
          _
        // Predicated region
        $region139: #{learnable_kd_loss.1} parent=117 // pred_check
          %p643 = pneg %p276
        $region140: #{learnable_kd_loss.1} parent=117 // pred_check_branch
          %645 = sbr.rel (%p643) target = $region142
        $region141: #{learnable_kd_loss.1} parent=117 // pred_region
          %647 = dma.done [#allocation14], 4096
        $region142: #{learnable_kd_loss.1} parent=117 // pred_fallthru
          _
        // Predicated region
        $region143: #{learnable_kd_loss.1} parent=117 // pred_check
          %p648 = pneg %p318
        $region144: #{learnable_kd_loss.1} parent=117 // pred_check_branch
          %650 = sbr.rel (%p648) target = $region146
        $region145: #{learnable_kd_loss.1} parent=117 // pred_region
          %652 = dma.done [#allocation17], 4096
        $region146: #{learnable_kd_loss.1} parent=117 // pred_fallthru
          _
        %s653 = sand.u32 %s53, 1
        %s654 = sand.u32 %s53, 1
        %s655 = smul.addr %s654, 16
        %s656 = scalar_lea.vmem [#allocation7], %s655
        %p657 = pneg %p66
        %p658 = pneg %p63
        %p659 = pneg %p87
        %p660 = pneg %p84
        %p661 = pneg %p108
        %p662 = pneg %p105
        %p663 = pneg %p129
        %p664 = pneg %p126
        %p665 = pneg %p150
        %p666 = pneg %p147
        %p667 = pneg %p171
        %p668 = pneg %p168
        %p669 = pneg %p192
        %p670 = pneg %p189
        %p671 = pneg %p213
        %p672 = pneg %p210
        %p673 = pneg %p234
        %p674 = pneg %p231
        %p675 = pneg %p255
        %p676 = pneg %p252
        %p677 = pneg %p276
        %p678 = pneg %p273
        %p679 = pneg %p297
        %p680 = pneg %p294
        %p681 = pneg %p318
        %p682 = pneg %p315
        %p683 = pneg %p339
        %p684 = pneg %p336
        %p685 = pneg %p360
        %p686 = pneg %p357
        %p687 = pneg %p381
        %p688 = pneg %p378
        %p689 = pneg %p407
        %p690 = pneg %p404
        %p691 = scmp.lt.s32.totalorder %s45, 1
        %s692 = scalar_select %p691, %s45, 1
        %s693 = smul.addr %s692, 8
        %s694 = scalar_lea.vmem %s18, %s693
        %p695 = pneg %p433
        %p696 = pneg %p430
        %p697 = scmp.lt.s32.totalorder %s45, 1
        %s698 = scalar_select %p697, %s45, 1
        %s699 = smul.addr %s698, 8
        %s700 = scalar_lea.vmem %s19, %s699
        %p701 = scmp.lt.s32.totalorder %s45, 1
        %s702 = scalar_select %p701, %s45, 1
        %s703 = smul.addr %s702, 8
        %s704 = scalar_lea.vmem %s18, %s703
        %p705 = scmp.lt.s32.totalorder %s45, 1
        %s706 = scalar_select %p705, %s45, 1
        %s707 = smul.addr %s706, 8
        %s708 = scalar_lea.vmem %s19, %s707
        %s709 = smul.u32 %s45, 8
        %s710 = sld [smem:[#allocation5 + %s709]]
        %s711 = scalar_lea.hbm %s2, %s710
        // Predicated region
        $region147: #{learnable_kd_loss.1} parent=117 // pred_check
          _
        $region148: #{learnable_kd_loss.1} parent=117 // pred_check_branch
          %713 = sbr.rel target = $region150
        $region149: #{learnable_kd_loss.1} parent=117 // pred_region
          %714 = sst [smem:[#allocation20]] [#allocation19]
          %715 = sst [smem:[#allocation21]] [#allocation18]
        $region150: #{learnable_kd_loss.1} parent=117 // pred_fallthru
          _
        %717 = shalt.err (0)
        %s719 = sshll.u32 %s711, 4
        %s720 = int_to_ptr.hbm [resolvable:$true] %s719
        %s721 = sshll.u32 [#allocation2], 4
        %s722 = int_to_ptr.vmem [resolvable:$true] %s721
        %724 = dma.hbm_to_vmem [thread:$0]  %s720, 16, %s722, [#allocation3]
        %s725 = sadd.s32 %s709, 1
        %s726 = sld [smem:[#allocation5 + %s725]]
        %s727 = scalar_lea.hbm %s2, %s726
        %s728 = scalar_lea.vmem [#allocation2], 1
        %s729 = scalar_lea.sflag [#allocation3], 1
        // Predicated region
        $region151: #{learnable_kd_loss.1} parent=117 // pred_check
          _
        $region152: #{learnable_kd_loss.1} parent=117 // pred_check_branch
          %731 = sbr.rel target = $region154
        $region153: #{learnable_kd_loss.1} parent=117 // pred_region
          %732 = sst [smem:[#allocation20]] [#allocation23]
          %733 = sst [smem:[#allocation21]] [#allocation22]
        $region154: #{learnable_kd_loss.1} parent=117 // pred_fallthru
          _
        %735 = shalt.err (0)
        %s737 = sshll.u32 %s727, 4
        %s738 = int_to_ptr.hbm [resolvable:$true] %s737
        %s739 = sshll.u32 %s728, 4
        %s740 = int_to_ptr.vmem [resolvable:$true] %s739
        %742 = dma.hbm_to_vmem [thread:$0]  %s738, 16, %s740, %s729
        %s743 = sadd.s32 %s709, 2
        %s744 = sld [smem:[#allocation5 + %s743]]
        %s745 = scalar_lea.hbm %s2, %s744
        %s746 = scalar_lea.vmem [#allocation2], 2
        %s747 = scalar_lea.sflag [#allocation3], 2
        // Predicated region
        $region155: #{learnable_kd_loss.1} parent=117 // pred_check
          _
        $region156: #{learnable_kd_loss.1} parent=117 // pred_check_branch
          %749 = sbr.rel target = $region158
        $region157: #{learnable_kd_loss.1} parent=117 // pred_region
          %750 = sst [smem:[#allocation20]] [#allocation25]
          %751 = sst [smem:[#allocation21]] [#allocation24]
        $region158: #{learnable_kd_loss.1} parent=117 // pred_fallthru
          _
        %753 = shalt.err (0)
        %s755 = sshll.u32 %s745, 4
        %s756 = int_to_ptr.hbm [resolvable:$true] %s755
        %s757 = sshll.u32 %s746, 4
        %s758 = int_to_ptr.vmem [resolvable:$true] %s757
        %760 = dma.hbm_to_vmem [thread:$0]  %s756, 16, %s758, %s747
        %s761 = sadd.s32 %s709, 3
        %s762 = sld [smem:[#allocation5 + %s761]]
        %s763 = scalar_lea.hbm %s2, %s762
        %s764 = scalar_lea.vmem [#allocation2], 3
        %s765 = scalar_lea.sflag [#allocation3], 3
        // Predicated region
        $region159: #{learnable_kd_loss.1} parent=117 // pred_check
          _
        $region160: #{learnable_kd_loss.1} parent=117 // pred_check_branch
          %767 = sbr.rel target = $region162
        $region161: #{learnable_kd_loss.1} parent=117 // pred_region
          %768 = sst [smem:[#allocation20]] [#allocation27]
          %769 = sst [smem:[#allocation21]] [#allocation26]
        $region162: #{learnable_kd_loss.1} parent=117 // pred_fallthru
          _
        %771 = shalt.err (0)
        %s773 = sshll.u32 %s763, 4
        %s774 = int_to_ptr.hbm [resolvable:$true] %s773
        %s775 = sshll.u32 %s764, 4
        %s776 = int_to_ptr.vmem [resolvable:$true] %s775
        %778 = dma.hbm_to_vmem [thread:$0]  %s774, 16, %s776, %s765
        %s779 = sadd.s32 %s709, 4
        %s780 = sld [smem:[#allocation5 + %s779]]
        %s781 = scalar_lea.hbm %s2, %s780
        %s782 = scalar_lea.vmem [#allocation2], 4
        %s783 = scalar_lea.sflag [#allocation3], 4
        // Predicated region
        $region163: #{learnable_kd_loss.1} parent=117 // pred_check
          _
        $region164: #{learnable_kd_loss.1} parent=117 // pred_check_branch
          %785 = sbr.rel target = $region166
        $region165: #{learnable_kd_loss.1} parent=117 // pred_region
          %786 = sst [smem:[#allocation20]] [#allocation29]
          %787 = sst [smem:[#allocation21]] [#allocation28]
        $region166: #{learnable_kd_loss.1} parent=117 // pred_fallthru
          _
        %789 = shalt.err (0)
        %s791 = sshll.u32 %s781, 4
        %s792 = int_to_ptr.hbm [resolvable:$true] %s791
        %s793 = sshll.u32 %s782, 4
        %s794 = int_to_ptr.vmem [resolvable:$true] %s793
        %796 = dma.hbm_to_vmem [thread:$0]  %s792, 16, %s794, %s783
        %s797 = sadd.s32 %s709, 5
        %s798 = sld [smem:[#allocation5 + %s797]]
        %s799 = scalar_lea.hbm %s2, %s798
        %s800 = scalar_lea.vmem [#allocation2], 5
        %s801 = scalar_lea.sflag [#allocation3], 5
        // Predicated region
        $region167: #{learnable_kd_loss.1} parent=117 // pred_check
          _
        $region168: #{learnable_kd_loss.1} parent=117 // pred_check_branch
          %803 = sbr.rel target = $region170
        $region169: #{learnable_kd_loss.1} parent=117 // pred_region
          %804 = sst [smem:[#allocation20]] [#allocation31]
          %805 = sst [smem:[#allocation21]] [#allocation30]
        $region170: #{learnable_kd_loss.1} parent=117 // pred_fallthru
          _
        %807 = shalt.err (0)
        %s809 = sshll.u32 %s799, 4
        %s810 = int_to_ptr.hbm [resolvable:$true] %s809
        %s811 = sshll.u32 %s800, 4
        %s812 = int_to_ptr.vmem [resolvable:$true] %s811
        %814 = dma.hbm_to_vmem [thread:$0]  %s810, 16, %s812, %s801
        %s815 = sadd.s32 %s709, 6
        %s816 = sld [smem:[#allocation5 + %s815]]
        %s817 = scalar_lea.hbm %s2, %s816
        %s818 = scalar_lea.vmem [#allocation2], 6
        %s819 = scalar_lea.sflag [#allocation3], 6
        // Predicated region
        $region171: #{learnable_kd_loss.1} parent=117 // pred_check
          _
        $region172: #{learnable_kd_loss.1} parent=117 // pred_check_branch
          %821 = sbr.rel target = $region174
        $region173: #{learnable_kd_loss.1} parent=117 // pred_region
          %822 = sst [smem:[#allocation20]] [#allocation33]
          %823 = sst [smem:[#allocation21]] [#allocation32]
        $region174: #{learnable_kd_loss.1} parent=117 // pred_fallthru
          _
        %825 = shalt.err (0)
        %s827 = sshll.u32 %s817, 4
        %s828 = int_to_ptr.hbm [resolvable:$true] %s827
        %s829 = sshll.u32 %s818, 4
        %s830 = int_to_ptr.vmem [resolvable:$true] %s829
        %832 = dma.hbm_to_vmem [thread:$0]  %s828, 16, %s830, %s819
        %s833 = sadd.s32 %s709, 7
        %s834 = sld [smem:[#allocation5 + %s833]]
        %s835 = scalar_lea.hbm %s2, %s834
        %s836 = scalar_lea.vmem [#allocation2], 7
        %s837 = scalar_lea.sflag [#allocation3], 7
        // Predicated region
        $region175: #{learnable_kd_loss.1} parent=117 // pred_check
          _
        $region176: #{learnable_kd_loss.1} parent=117 // pred_check_branch
          %839 = sbr.rel target = $region178
        $region177: #{learnable_kd_loss.1} parent=117 // pred_region
          %840 = sst [smem:[#allocation20]] [#allocation35]
          %841 = sst [smem:[#allocation21]] [#allocation34]
        $region178: #{learnable_kd_loss.1} parent=117 // pred_fallthru
          _
        %843 = shalt.err (0)
        %s845 = sshll.u32 %s835, 4
        %s846 = int_to_ptr.hbm [resolvable:$true] %s845
        %s847 = sshll.u32 %s836, 4
        %s848 = int_to_ptr.vmem [resolvable:$true] %s847
        %850 = dma.hbm_to_vmem [thread:$0]  %s846, 16, %s848, %s837
        %v851 = vld [vmem:[%s619] sm:$0xff]
        %v852 = vld [vmem:[%s619 + $0x8] sm:$0xff]
        %v853 = vld [vmem:[%s3] sm:$0xf]
        %v854 = vld [vmem:[%s3 + $0x4] sm:$0xf]
        %v855 = vld [vmem:[%s3 + $0x8] sm:$0xf]
        %v856 = vld [vmem:[%s3 + $0xc] sm:$0xf]
        %v857 = vld [vmem:[%s3 + $0x10] sm:$0xf]
        %v858 = vld [vmem:[%s3 + $0x14] sm:$0xf]
        %v859 = vld [vmem:[%s3 + $0x18] sm:$0xf]
        %v860 = vld [vmem:[%s3 + $0x1c] sm:$0xf]
        %v861 = vld [vmem:[%s3 + $0x20] sm:$0xf]
        %v862 = vld [vmem:[%s3 + $0x24] sm:$0xf]
        %v863 = vld [vmem:[%s3 + $0x28] sm:$0xf]
        %v864 = vld [vmem:[%s3 + $0x2c] sm:$0xf]
        %v865 = vld [vmem:[%s3 + $0x30] sm:$0xf]
        %v866 = vld [vmem:[%s3 + $0x34] sm:$0xf]
        %v867 = vld [vmem:[%s3 + $0x38] sm:$0xf]
        %v868 = vld [vmem:[%s3 + $0x3c] sm:$0xf]
        %v869 = vpack.c.bf16 %v852, %v851
        %v870 = vld [vmem:[%s4] sm:$0x1]
        %v872 = vperm.slane %v870, 0
        %v890 = vunpack.c.l.b16 %v853
        %v891 = vunpack.c.l.b16 %v854
        %v892 = vunpack.c.l.b16 %v855
        %v893 = vunpack.c.l.b16 %v856
        %v894 = vunpack.c.l.b16 %v857
        %v895 = vunpack.c.l.b16 %v858
        %v896 = vunpack.c.l.b16 %v859
        %v897 = vunpack.c.l.b16 %v860
        %v898 = vunpack.c.l.b16 %v861
        %v899 = vunpack.c.l.b16 %v862
        %v900 = vunpack.c.l.b16 %v863
        %v901 = vunpack.c.l.b16 %v864
        %v902 = vunpack.c.l.b16 %v865
        %v903 = vunpack.c.l.b16 %v866
        %v904 = vunpack.c.l.b16 %v867
        %v905 = vunpack.c.l.b16 %v868
        %v906 = vpack.c.b16 %v891, %v890
        %v907 = vpack.c.b16 %v893, %v892
        %v908 = vpack.c.b16 %v895, %v894
        %v909 = vpack.c.b16 %v897, %v896
        %v910 = vpack.c.b16 %v899, %v898
        %v911 = vpack.c.b16 %v901, %v900
        %v912 = vpack.c.b16 %v903, %v902
        %v913 = vpack.c.b16 %v905, %v904
        %922 = vmatpush.bf16.msra.mxu0 %v913
        %923 = vmatpush.bf16.msra.mxu0 %v912
        %924 = vmatpush.bf16.msra.mxu0 %v911
        %925 = vmatpush.bf16.msra.mxu0 %v910
        %926 = vmatpush.bf16.msra.mxu0 %v909
        %927 = vmatpush.bf16.msra.mxu0 %v908
        %928 = vmatpush.bf16.msra.mxu0 %v907
        %929 = vmatpush.bf16.msra.mxu0 %v906
        %930 = vmatmul.bf16.gmra.mxu0 %v869
        %v931 = vpop.f32.mrf.mxu0
        %v932 = vadd.f32 %v872, %v931
        %v933 = vpop.f32.mrf.mxu0
        %v934 = vadd.f32 %v872, %v933
        %935 = vdwg.mxu0
        %v936 = vld [vmem:[#allocation8] sm:$0xff]
        %v937 = vld [vmem:[#allocation8 + $0x8] sm:$0xff]
        %v938 = vld [vmem:[#allocation8 + $0x10] sm:$0xff]
        %v939 = vld [vmem:[#allocation8 + $0x18] sm:$0xff]
        %v940 = vld [vmem:[#allocation8 + $0x20] sm:$0xff]
        %v941 = vld [vmem:[#allocation8 + $0x28] sm:$0xff]
        %v942 = vld [vmem:[#allocation8 + $0x30] sm:$0xff]
        %v943 = vld [vmem:[#allocation8 + $0x38] sm:$0xff]
        %v944 = vld [vmem:[#allocation8 + $0x40] sm:$0xff]
        %v945 = vld [vmem:[#allocation8 + $0x48] sm:$0xff]
        %v946 = vld [vmem:[#allocation8 + $0x50] sm:$0xff]
        %v947 = vld [vmem:[#allocation8 + $0x58] sm:$0xff]
        %v948 = vld [vmem:[#allocation8 + $0x60] sm:$0xff]
        %v949 = vld [vmem:[#allocation8 + $0x68] sm:$0xff]
        %v950 = vld [vmem:[#allocation8 + $0x70] sm:$0xff]
        %v951 = vld [vmem:[#allocation8 + $0x78] sm:$0xff]
        %v952 = vld [vmem:[#allocation8 + $0x80] sm:$0xff]
        %v953 = vld [vmem:[#allocation8 + $0x88] sm:$0xff]
        %v954 = vld [vmem:[#allocation8 + $0x90] sm:$0xff]
        %v955 = vld [vmem:[#allocation8 + $0x98] sm:$0xff]
        %v956 = vld [vmem:[#allocation8 + $0xa0] sm:$0xff]
        %v957 = vld [vmem:[#allocation8 + $0xa8] sm:$0xff]
        %v958 = vld [vmem:[#allocation8 + $0xb0] sm:$0xff]
        %v959 = vld [vmem:[#allocation8 + $0xb8] sm:$0xff]
        %v960 = vld [vmem:[#allocation8 + $0xc0] sm:$0xff]
        %v961 = vld [vmem:[#allocation8 + $0xc8] sm:$0xff]
        %v962 = vld [vmem:[#allocation8 + $0xd0] sm:$0xff]
        %v963 = vld [vmem:[#allocation8 + $0xd8] sm:$0xff]
        %v964 = vld [vmem:[#allocation8 + $0xe0] sm:$0xff]
        %v965 = vld [vmem:[#allocation8 + $0xe8] sm:$0xff]
        %v966 = vld [vmem:[#allocation8 + $0xf0] sm:$0xff]
        %v967 = vld [vmem:[#allocation8 + $0xf8] sm:$0xff]
        %v968 = vpack.c.bf16 %v934, %v932
        %v969 = vld [vmem:[%s6] sm:$0xf]
        %v971 = vperm.slane %v969, 0
        %v972 = vperm.slane %v969, 1
        %v973 = vperm.slane %v969, 2
        %v974 = vperm.slane %v969, 3
        %v1011 = vunpack.c.l.b16 %v936
        %v1012 = vunpack.c.h.b16 %v936
        %v1013 = vunpack.c.l.b16 %v937
        %v1014 = vunpack.c.h.b16 %v937
        %v1015 = vunpack.c.l.b16 %v938
        %v1016 = vunpack.c.h.b16 %v938
        %v1017 = vunpack.c.l.b16 %v939
        %v1018 = vunpack.c.h.b16 %v939
        %v1019 = vunpack.c.l.b16 %v940
        %v1020 = vunpack.c.h.b16 %v940
        %v1021 = vunpack.c.l.b16 %v941
        %v1022 = vunpack.c.h.b16 %v941
        %v1023 = vunpack.c.l.b16 %v942
        %v1024 = vunpack.c.h.b16 %v942
        %v1025 = vunpack.c.l.b16 %v943
        %v1026 = vunpack.c.h.b16 %v943
        %v1027 = vunpack.c.l.b16 %v944
        %v1028 = vunpack.c.h.b16 %v944
        %v1029 = vunpack.c.l.b16 %v945
        %v1030 = vunpack.c.h.b16 %v945
        %v1031 = vunpack.c.l.b16 %v946
        %v1032 = vunpack.c.h.b16 %v946
        %v1033 = vunpack.c.l.b16 %v947
        %v1034 = vunpack.c.h.b16 %v947
        %v1035 = vunpack.c.l.b16 %v948
        %v1036 = vunpack.c.h.b16 %v948
        %v1037 = vunpack.c.l.b16 %v949
        %v1038 = vunpack.c.h.b16 %v949
        %v1039 = vunpack.c.l.b16 %v950
        %v1040 = vunpack.c.h.b16 %v950
        %v1041 = vunpack.c.l.b16 %v951
        %v1042 = vunpack.c.h.b16 %v951
        %v1043 = vunpack.c.l.b16 %v952
        %v1044 = vunpack.c.h.b16 %v952
        %v1045 = vunpack.c.l.b16 %v953
        %v1046 = vunpack.c.h.b16 %v953
        %v1047 = vunpack.c.l.b16 %v954
        %v1048 = vunpack.c.h.b16 %v954
        %v1049 = vunpack.c.l.b16 %v955
        %v1050 = vunpack.c.h.b16 %v955
        %v1051 = vunpack.c.l.b16 %v956
        %v1052 = vunpack.c.h.b16 %v956
        %v1053 = vunpack.c.l.b16 %v957
        %v1054 = vunpack.c.h.b16 %v957
        %v1055 = vunpack.c.l.b16 %v958
        %v1056 = vunpack.c.h.b16 %v958
        %v1057 = vunpack.c.l.b16 %v959
        %v1058 = vunpack.c.h.b16 %v959
        %v1059 = vunpack.c.l.b16 %v960
        %v1060 = vunpack.c.h.b16 %v960
        %v1061 = vunpack.c.l.b16 %v961
        %v1062 = vunpack.c.h.b16 %v961
        %v1063 = vunpack.c.l.b16 %v962
        %v1064 = vunpack.c.h.b16 %v962
        %v1065 = vunpack.c.l.b16 %v963
        %v1066 = vunpack.c.h.b16 %v963
        %v1067 = vunpack.c.l.b16 %v964
        %v1068 = vunpack.c.h.b16 %v964
        %v1069 = vunpack.c.l.b16 %v965
        %v1070 = vunpack.c.h.b16 %v965
        %v1071 = vunpack.c.l.b16 %v966
        %v1072 = vunpack.c.h.b16 %v966
        %v1073 = vunpack.c.l.b16 %v967
        %v1074 = vunpack.c.h.b16 %v967
        %v1075 = vpack.c.b16 %v1015, %v1011
        %v1076 = vpack.c.b16 %v1016, %v1012
        %v1077 = vpack.c.b16 %v1017, %v1013
        %v1078 = vpack.c.b16 %v1018, %v1014
        %v1079 = vpack.c.b16 %v1023, %v1019
        %v1080 = vpack.c.b16 %v1024, %v1020
        %v1081 = vpack.c.b16 %v1025, %v1021
        %v1082 = vpack.c.b16 %v1026, %v1022
        %v1083 = vpack.c.b16 %v1031, %v1027
        %v1084 = vpack.c.b16 %v1032, %v1028
        %v1085 = vpack.c.b16 %v1033, %v1029
        %v1086 = vpack.c.b16 %v1034, %v1030
        %v1087 = vpack.c.b16 %v1039, %v1035
        %v1088 = vpack.c.b16 %v1040, %v1036
        %v1089 = vpack.c.b16 %v1041, %v1037
        %v1090 = vpack.c.b16 %v1042, %v1038
        %v1091 = vpack.c.b16 %v1047, %v1043
        %v1092 = vpack.c.b16 %v1048, %v1044
        %v1093 = vpack.c.b16 %v1049, %v1045
        %v1094 = vpack.c.b16 %v1050, %v1046
        %v1095 = vpack.c.b16 %v1055, %v1051
        %v1096 = vpack.c.b16 %v1056, %v1052
        %v1097 = vpack.c.b16 %v1057, %v1053
        %v1098 = vpack.c.b16 %v1058, %v1054
        %v1099 = vpack.c.b16 %v1063, %v1059
        %v1100 = vpack.c.b16 %v1064, %v1060
        %v1101 = vpack.c.b16 %v1065, %v1061
        %v1102 = vpack.c.b16 %v1066, %v1062
        %v1103 = vpack.c.b16 %v1071, %v1067
        %v1104 = vpack.c.b16 %v1072, %v1068
        %v1105 = vpack.c.b16 %v1073, %v1069
        %v1106 = vpack.c.b16 %v1074, %v1070
        %1139 = vmatpush.bf16.msra.mxu0 %v1103
        %1140 = vmatpush.bf16.msra.mxu0 %v1099
        %1141 = vmatpush.bf16.msra.mxu0 %v1095
        %1142 = vmatpush.bf16.msra.mxu0 %v1091
        %1143 = vmatpush.bf16.msra.mxu0 %v1087
        %1144 = vmatpush.bf16.msra.mxu0 %v1083
        %1145 = vmatpush.bf16.msra.mxu0 %v1079
        %1146 = vmatpush.bf16.msra.mxu0 %v1075
        %1147 = vmatmul.bf16.gmra.mxu0 %v968
        %v1148 = vpop.f32.mrf.mxu0
        %v1149 = vadd.f32 %v971, %v1148
        %v1150 = vpop.f32.mrf.mxu0
        %v1151 = vadd.f32 %v971, %v1150
        %1152 = vdwg.mxu0
        %1153 = vmatpush.bf16.msra.mxu0 %v1104
        %1154 = vmatpush.bf16.msra.mxu0 %v1100
        %1155 = vmatpush.bf16.msra.mxu0 %v1096
        %1156 = vmatpush.bf16.msra.mxu0 %v1092
        %1157 = vmatpush.bf16.msra.mxu0 %v1088
        %1158 = vmatpush.bf16.msra.mxu0 %v1084
        %1159 = vmatpush.bf16.msra.mxu0 %v1080
        %1160 = vmatpush.bf16.msra.mxu0 %v1076
        %1161 = vmatmul.bf16.gmra.mxu0 %v968
        %v1162 = vpop.f32.mrf.mxu0
        %v1163 = vadd.f32 %v972, %v1162
        %v1164 = vpop.f32.mrf.mxu0
        %v1165 = vadd.f32 %v972, %v1164
        %1166 = vdwg.mxu0
        %1167 = vmatpush.bf16.msra.mxu0 %v1105
        %1168 = vmatpush.bf16.msra.mxu0 %v1101
        %1169 = vmatpush.bf16.msra.mxu0 %v1097
        %1170 = vmatpush.bf16.msra.mxu0 %v1093
        %1171 = vmatpush.bf16.msra.mxu0 %v1089
        %1172 = vmatpush.bf16.msra.mxu0 %v1085
        %1173 = vmatpush.bf16.msra.mxu0 %v1081
        %1174 = vmatpush.bf16.msra.mxu0 %v1077
        %1175 = vmatmul.bf16.gmra.mxu0 %v968
        %v1176 = vpop.f32.mrf.mxu0
        %v1177 = vadd.f32 %v973, %v1176
        %v1178 = vpop.f32.mrf.mxu0
        %v1179 = vadd.f32 %v973, %v1178
        %1180 = vdwg.mxu0
        %1181 = vmatpush.bf16.msra.mxu0 %v1106
        %1182 = vmatpush.bf16.msra.mxu0 %v1102
        %1183 = vmatpush.bf16.msra.mxu0 %v1098
        %1184 = vmatpush.bf16.msra.mxu0 %v1094
        %1185 = vmatpush.bf16.msra.mxu0 %v1090
        %1186 = vmatpush.bf16.msra.mxu0 %v1086
        %1187 = vmatpush.bf16.msra.mxu0 %v1082
        %1188 = vmatpush.bf16.msra.mxu0 %v1078
        %1189 = vmatmul.bf16.gmra.mxu0 %v968
        %v1190 = vpop.f32.mrf.mxu0
        %v1191 = vadd.f32 %v974, %v1190
        %v1192 = vpop.f32.mrf.mxu0
        %v1193 = vadd.f32 %v974, %v1192
        %1194 = vdwg.mxu0
        %v1195 = vmul.f32 %v1149, 0.5
        %v1196 = vmul.f32 %v1163, 0.5
        %v1197 = vmul.f32 %v1177, 0.5
        %v1198 = vmul.f32 %v1191, 0.5
        %v1199 = vmul.f32 %v1151, 0.5
        %v1200 = vmul.f32 %v1165, 0.5
        %v1201 = vmul.f32 %v1179, 0.5
        %v1202 = vmul.f32 %v1193, 0.5
        %v1203 = vmul.f32 %v1149, 0.70710677
        %v1204 = vmul.f32 %v1163, 0.70710677
        %v1205 = vmul.f32 %v1177, 0.70710677
        %v1206 = vmul.f32 %v1191, 0.70710677
        %v1207 = vmul.f32 %v1151, 0.70710677
        %v1208 = vmul.f32 %v1165, 0.70710677
        %v1209 = vmul.f32 %v1179, 0.70710677
        %v1210 = vmul.f32 %v1193, 0.70710677
        %v1211 = vmul.f32 %v1203, %v1203
        %v1212 = vmin.f32 16.0, %v1211
        %v1213 = vmul.f32 %v1212, 2.1237322e-06
        %v1214 = vadd.f32 %v1213, 0.00028619796
        %v1215 = vmul.f32 %v1212, %v1214
        %v1216 = vadd.f32 %v1215, 0.0036580483
        %v1217 = vmul.f32 %v1212, %v1216
        %v1218 = vadd.f32 %v1217, 0.05243302
        %v1219 = vmul.f32 %v1212, %v1218
        %v1220 = vadd.f32 %v1219, 0.18741608
        %v1221 = vmul.f32 %v1212, %v1220
        %v1222 = vadd.f32 %v1221, 1.1283791
        %v1223 = vmul.f32 %v1203, %v1222
        %v1224 = vmul.f32 %v1212, 3.8918573e-05
        %v1225 = vadd.f32 %v1224, 0.001143296
        %v1226 = vmul.f32 %v1212, %v1225
        %v1227 = vadd.f32 %v1226, 0.014752088
        %v1228 = vmul.f32 %v1212, %v1227
        %v1229 = vadd.f32 %v1228, 0.112945676
        %v1230 = vmul.f32 %v1212, %v1229
        %v1231 = vadd.f32 %v1230, 0.4994258
        %v1232 = vmul.f32 %v1212, %v1231
        %v1233 = vadd.f32 %v1232, 1.0
        %v1234 = vrcp.pop %v1233
        %v1235 = vmul.f32 %v1233, %v1234
        %v1236 = vsub.f32 1.0, %v1235
        %v1237 = vmul.f32 %v1234, %v1236
        %v1238 = vadd.f32 %v1234, %v1237
        %vm1239 = vweird.f32 %v1233
        %vm1240 = vweird.f32 %v1234
        %vm1241 = vmor %vm1239, %vm1240
        %v1242 = vsel %vm1241, %v1234, %v1238
        %v1243 = vand.u32 2147483647, %v1233
        %vm1244 = vcmp.eq.f32.partialorder %v1243, 8.507059e+37
        %v1245 = vand.u32 %v1233, 2147483648
        %v1246 = vor.u32 1.1754944e-38, %v1245
        %v1247 = vsel %vm1244, %v1246, %v1242
        %v1248 = vmul.f32 %v1223, %v1247
        %v1249 = vmin.f32 %v1248, 1.0
        %v1250 = vmax.f32 %v1249, -1.0
        %v1251 = vmul.f32 %v1204, %v1204
        %v1252 = vmin.f32 16.0, %v1251
        %v1253 = vmul.f32 %v1252, 2.1237322e-06
        %v1254 = vadd.f32 %v1253, 0.00028619796
        %v1255 = vmul.f32 %v1252, %v1254
        %v1256 = vadd.f32 %v1255, 0.0036580483
        %v1257 = vmul.f32 %v1252, %v1256
        %v1258 = vadd.f32 %v1257, 0.05243302
        %v1259 = vmul.f32 %v1252, %v1258
        %v1260 = vadd.f32 %v1259, 0.18741608
        %v1261 = vmul.f32 %v1252, %v1260
        %v1262 = vadd.f32 %v1261, 1.1283791
        %v1263 = vmul.f32 %v1204, %v1262
        %v1264 = vmul.f32 %v1252, 3.8918573e-05
        %v1265 = vadd.f32 %v1264, 0.001143296
        %v1266 = vmul.f32 %v1252, %v1265
        %v1267 = vadd.f32 %v1266, 0.014752088
        %v1268 = vmul.f32 %v1252, %v1267
        %v1269 = vadd.f32 %v1268, 0.112945676
        %v1270 = vmul.f32 %v1252, %v1269
        %v1271 = vadd.f32 %v1270, 0.4994258
        %v1272 = vmul.f32 %v1252, %v1271
        %v1273 = vadd.f32 %v1272, 1.0
        %v1274 = vrcp.pop %v1273
        %v1275 = vmul.f32 %v1273, %v1274
        %v1276 = vsub.f32 1.0, %v1275
        %v1277 = vmul.f32 %v1274, %v1276
        %v1278 = vadd.f32 %v1274, %v1277
        %vm1279 = vweird.f32 %v1273
        %vm1280 = vweird.f32 %v1274
        %vm1281 = vmor %vm1279, %vm1280
        %v1282 = vsel %vm1281, %v1274, %v1278
        %v1283 = vand.u32 2147483647, %v1273
        %vm1284 = vcmp.eq.f32.partialorder %v1283, 8.507059e+37
        %v1285 = vand.u32 %v1273, 2147483648
        %v1286 = vor.u32 1.1754944e-38, %v1285
        %v1287 = vsel %vm1284, %v1286, %v1282
        %v1288 = vmul.f32 %v1263, %v1287
        %v1289 = vmin.f32 %v1288, 1.0
        %v1290 = vmax.f32 %v1289, -1.0
        %v1291 = vmul.f32 %v1205, %v1205
        %v1292 = vmin.f32 16.0, %v1291
        %v1293 = vmul.f32 %v1292, 2.1237322e-06
        %v1294 = vadd.f32 %v1293, 0.00028619796
        %v1295 = vmul.f32 %v1292, %v1294
        %v1296 = vadd.f32 %v1295, 0.0036580483
        %v1297 = vmul.f32 %v1292, %v1296
        %v1298 = vadd.f32 %v1297, 0.05243302
        %v1299 = vmul.f32 %v1292, %v1298
        %v1300 = vadd.f32 %v1299, 0.18741608
        %v1301 = vmul.f32 %v1292, %v1300
        %v1302 = vadd.f32 %v1301, 1.1283791
        %v1303 = vmul.f32 %v1205, %v1302
        %v1304 = vmul.f32 %v1292, 3.8918573e-05
        %v1305 = vadd.f32 %v1304, 0.001143296
        %v1306 = vmul.f32 %v1292, %v1305
        %v1307 = vadd.f32 %v1306, 0.014752088
        %v1308 = vmul.f32 %v1292, %v1307
        %v1309 = vadd.f32 %v1308, 0.112945676
        %v1310 = vmul.f32 %v1292, %v1309
        %v1311 = vadd.f32 %v1310, 0.4994258
        %v1312 = vmul.f32 %v1292, %v1311
        %v1313 = vadd.f32 %v1312, 1.0
        %v1314 = vrcp.pop %v1313
        %v1315 = vmul.f32 %v1313, %v1314
        %v1316 = vsub.f32 1.0, %v1315
        %v1317 = vmul.f32 %v1314, %v1316
        %v1318 = vadd.f32 %v1314, %v1317
        %vm1319 = vweird.f32 %v1313
        %vm1320 = vweird.f32 %v1314
        %vm1321 = vmor %vm1319, %vm1320
        %v1322 = vsel %vm1321, %v1314, %v1318
        %v1323 = vand.u32 2147483647, %v1313
        %vm1324 = vcmp.eq.f32.partialorder %v1323, 8.507059e+37
        %v1325 = vand.u32 %v1313, 2147483648
        %v1326 = vor.u32 1.1754944e-38, %v1325
        %v1327 = vsel %vm1324, %v1326, %v1322
        %v1328 = vmul.f32 %v1303, %v1327
        %v1329 = vmin.f32 %v1328, 1.0
        %v1330 = vmax.f32 %v1329, -1.0
        %v1331 = vmul.f32 %v1206, %v1206
        %v1332 = vmin.f32 16.0, %v1331
        %v1333 = vmul.f32 %v1332, 2.1237322e-06
        %v1334 = vadd.f32 %v1333, 0.00028619796
        %v1335 = vmul.f32 %v1332, %v1334
        %v1336 = vadd.f32 %v1335, 0.0036580483
        %v1337 = vmul.f32 %v1332, %v1336
        %v1338 = vadd.f32 %v1337, 0.05243302
        %v1339 = vmul.f32 %v1332, %v1338
        %v1340 = vadd.f32 %v1339, 0.18741608
        %v1341 = vmul.f32 %v1332, %v1340
        %v1342 = vadd.f32 %v1341, 1.1283791
        %v1343 = vmul.f32 %v1206, %v1342
        %v1344 = vmul.f32 %v1332, 3.8918573e-05
        %v1345 = vadd.f32 %v1344, 0.001143296
        %v1346 = vmul.f32 %v1332, %v1345
        %v1347 = vadd.f32 %v1346, 0.014752088
        %v1348 = vmul.f32 %v1332, %v1347
        %v1349 = vadd.f32 %v1348, 0.112945676
        %v1350 = vmul.f32 %v1332, %v1349
        %v1351 = vadd.f32 %v1350, 0.4994258
        %v1352 = vmul.f32 %v1332, %v1351
        %v1353 = vadd.f32 %v1352, 1.0
        %v1354 = vrcp.pop %v1353
        %v1355 = vmul.f32 %v1353, %v1354
        %v1356 = vsub.f32 1.0, %v1355
        %v1357 = vmul.f32 %v1354, %v1356
        %v1358 = vadd.f32 %v1354, %v1357
        %vm1359 = vweird.f32 %v1353
        %vm1360 = vweird.f32 %v1354
        %vm1361 = vmor %vm1359, %vm1360
        %v1362 = vsel %vm1361, %v1354, %v1358
        %v1363 = vand.u32 2147483647, %v1353
        %vm1364 = vcmp.eq.f32.partialorder %v1363, 8.507059e+37
        %v1365 = vand.u32 %v1353, 2147483648
        %v1366 = vor.u32 1.1754944e-38, %v1365
        %v1367 = vsel %vm1364, %v1366, %v1362
        %v1368 = vmul.f32 %v1343, %v1367
        %v1369 = vmin.f32 %v1368, 1.0
        %v1370 = vmax.f32 %v1369, -1.0
        %v1371 = vmul.f32 %v1207, %v1207
        %v1372 = vmin.f32 16.0, %v1371
        %v1373 = vmul.f32 %v1372, 2.1237322e-06
        %v1374 = vadd.f32 %v1373, 0.00028619796
        %v1375 = vmul.f32 %v1372, %v1374
        %v1376 = vadd.f32 %v1375, 0.0036580483
        %v1377 = vmul.f32 %v1372, %v1376
        %v1378 = vadd.f32 %v1377, 0.05243302
        %v1379 = vmul.f32 %v1372, %v1378
        %v1380 = vadd.f32 %v1379, 0.18741608
        %v1381 = vmul.f32 %v1372, %v1380
        %v1382 = vadd.f32 %v1381, 1.1283791
        %v1383 = vmul.f32 %v1207, %v1382
        %v1384 = vmul.f32 %v1372, 3.8918573e-05
        %v1385 = vadd.f32 %v1384, 0.001143296
        %v1386 = vmul.f32 %v1372, %v1385
        %v1387 = vadd.f32 %v1386, 0.014752088
        %v1388 = vmul.f32 %v1372, %v1387
        %v1389 = vadd.f32 %v1388, 0.112945676
        %v1390 = vmul.f32 %v1372, %v1389
        %v1391 = vadd.f32 %v1390, 0.4994258
        %v1392 = vmul.f32 %v1372, %v1391
        %v1393 = vadd.f32 %v1392, 1.0
        %v1394 = vrcp.pop %v1393
        %v1395 = vmul.f32 %v1393, %v1394
        %v1396 = vsub.f32 1.0, %v1395
        %v1397 = vmul.f32 %v1394, %v1396
        %v1398 = vadd.f32 %v1394, %v1397
        %vm1399 = vweird.f32 %v1393
        %vm1400 = vweird.f32 %v1394
        %vm1401 = vmor %vm1399, %vm1400
        %v1402 = vsel %vm1401, %v1394, %v1398
        %v1403 = vand.u32 2147483647, %v1393
        %vm1404 = vcmp.eq.f32.partialorder %v1403, 8.507059e+37
        %v1405 = vand.u32 %v1393, 2147483648
        %v1406 = vor.u32 1.1754944e-38, %v1405
        %v1407 = vsel %vm1404, %v1406, %v1402
        %v1408 = vmul.f32 %v1383, %v1407
        %v1409 = vmin.f32 %v1408, 1.0
        %v1410 = vmax.f32 %v1409, -1.0
        %v1411 = vmul.f32 %v1208, %v1208
        %v1412 = vmin.f32 16.0, %v1411
        %v1413 = vmul.f32 %v1412, 2.1237322e-06
        %v1414 = vadd.f32 %v1413, 0.00028619796
        %v1415 = vmul.f32 %v1412, %v1414
        %v1416 = vadd.f32 %v1415, 0.0036580483
        %v1417 = vmul.f32 %v1412, %v1416
        %v1418 = vadd.f32 %v1417, 0.05243302
        %v1419 = vmul.f32 %v1412, %v1418
        %v1420 = vadd.f32 %v1419, 0.18741608
        %v1421 = vmul.f32 %v1412, %v1420
        %v1422 = vadd.f32 %v1421, 1.1283791
        %v1423 = vmul.f32 %v1208, %v1422
        %v1424 = vmul.f32 %v1412, 3.8918573e-05
        %v1425 = vadd.f32 %v1424, 0.001143296
        %v1426 = vmul.f32 %v1412, %v1425
        %v1427 = vadd.f32 %v1426, 0.014752088
        %v1428 = vmul.f32 %v1412, %v1427
        %v1429 = vadd.f32 %v1428, 0.112945676
        %v1430 = vmul.f32 %v1412, %v1429
        %v1431 = vadd.f32 %v1430, 0.4994258
        %v1432 = vmul.f32 %v1412, %v1431
        %v1433 = vadd.f32 %v1432, 1.0
        %v1434 = vrcp.pop %v1433
        %v1435 = vmul.f32 %v1433, %v1434
        %v1436 = vsub.f32 1.0, %v1435
        %v1437 = vmul.f32 %v1434, %v1436
        %v1438 = vadd.f32 %v1434, %v1437
        %vm1439 = vweird.f32 %v1433
        %vm1440 = vweird.f32 %v1434
        %vm1441 = vmor %vm1439, %vm1440
        %v1442 = vsel %vm1441, %v1434, %v1438
        %v1443 = vand.u32 2147483647, %v1433
        %vm1444 = vcmp.eq.f32.partialorder %v1443, 8.507059e+37
        %v1445 = vand.u32 %v1433, 2147483648
        %v1446 = vor.u32 1.1754944e-38, %v1445
        %v1447 = vsel %vm1444, %v1446, %v1442
        %v1448 = vmul.f32 %v1423, %v1447
        %v1449 = vmin.f32 %v1448, 1.0
        %v1450 = vmax.f32 %v1449, -1.0
        %v1451 = vmul.f32 %v1209, %v1209
        %v1452 = vmin.f32 16.0, %v1451
        %v1453 = vmul.f32 %v1452, 2.1237322e-06
        %v1454 = vadd.f32 %v1453, 0.00028619796
        %v1455 = vmul.f32 %v1452, %v1454
        %v1456 = vadd.f32 %v1455, 0.0036580483
        %v1457 = vmul.f32 %v1452, %v1456
        %v1458 = vadd.f32 %v1457, 0.05243302
        %v1459 = vmul.f32 %v1452, %v1458
        %v1460 = vadd.f32 %v1459, 0.18741608
        %v1461 = vmul.f32 %v1452, %v1460
        %v1462 = vadd.f32 %v1461, 1.1283791
        %v1463 = vmul.f32 %v1209, %v1462
        %v1464 = vmul.f32 %v1452, 3.8918573e-05
        %v1465 = vadd.f32 %v1464, 0.001143296
        %v1466 = vmul.f32 %v1452, %v1465
        %v1467 = vadd.f32 %v1466, 0.014752088
        %v1468 = vmul.f32 %v1452, %v1467
        %v1469 = vadd.f32 %v1468, 0.112945676
        %v1470 = vmul.f32 %v1452, %v1469
        %v1471 = vadd.f32 %v1470, 0.4994258
        %v1472 = vmul.f32 %v1452, %v1471
        %v1473 = vadd.f32 %v1472, 1.0
        %v1474 = vrcp.pop %v1473
        %v1475 = vmul.f32 %v1473, %v1474
        %v1476 = vsub.f32 1.0, %v1475
        %v1477 = vmul.f32 %v1474, %v1476
        %v1478 = vadd.f32 %v1474, %v1477
        %vm1479 = vweird.f32 %v1473
        %vm1480 = vweird.f32 %v1474
        %vm1481 = vmor %vm1479, %vm1480
        %v1482 = vsel %vm1481, %v1474, %v1478
        %v1483 = vand.u32 2147483647, %v1473
        %vm1484 = vcmp.eq.f32.partialorder %v1483, 8.507059e+37
        %v1485 = vand.u32 %v1473, 2147483648
        %v1486 = vor.u32 1.1754944e-38, %v1485
        %v1487 = vsel %vm1484, %v1486, %v1482
        %v1488 = vmul.f32 %v1463, %v1487
        %v1489 = vmin.f32 %v1488, 1.0
        %v1490 = vmax.f32 %v1489, -1.0
        %v1491 = vmul.f32 %v1210, %v1210
        %v1492 = vmin.f32 16.0, %v1491
        %v1493 = vmul.f32 %v1492, 2.1237322e-06
        %v1494 = vadd.f32 %v1493, 0.00028619796
        %v1495 = vmul.f32 %v1492, %v1494
        %v1496 = vadd.f32 %v1495, 0.0036580483
        %v1497 = vmul.f32 %v1492, %v1496
        %v1498 = vadd.f32 %v1497, 0.05243302
        %v1499 = vmul.f32 %v1492, %v1498
        %v1500 = vadd.f32 %v1499, 0.18741608
        %v1501 = vmul.f32 %v1492, %v1500
        %v1502 = vadd.f32 %v1501, 1.1283791
        %v1503 = vmul.f32 %v1210, %v1502
        %v1504 = vmul.f32 %v1492, 3.8918573e-05
        %v1505 = vadd.f32 %v1504, 0.001143296
        %v1506 = vmul.f32 %v1492, %v1505
        %v1507 = vadd.f32 %v1506, 0.014752088
        %v1508 = vmul.f32 %v1492, %v1507
        %v1509 = vadd.f32 %v1508, 0.112945676
        %v1510 = vmul.f32 %v1492, %v1509
        %v1511 = vadd.f32 %v1510, 0.4994258
        %v1512 = vmul.f32 %v1492, %v1511
        %v1513 = vadd.f32 %v1512, 1.0
        %v1514 = vrcp.pop %v1513
        %v1515 = vmul.f32 %v1513, %v1514
        %v1516 = vsub.f32 1.0, %v1515
        %v1517 = vmul.f32 %v1514, %v1516
        %v1518 = vadd.f32 %v1514, %v1517
        %vm1519 = vweird.f32 %v1513
        %vm1520 = vweird.f32 %v1514
        %vm1521 = vmor %vm1519, %vm1520
        %v1522 = vsel %vm1521, %v1514, %v1518
        %v1523 = vand.u32 2147483647, %v1513
        %vm1524 = vcmp.eq.f32.partialorder %v1523, 8.507059e+37
        %v1525 = vand.u32 %v1513, 2147483648
        %v1526 = vor.u32 1.1754944e-38, %v1525
        %v1527 = vsel %vm1524, %v1526, %v1522
        %v1528 = vmul.f32 %v1503, %v1527
        %v1529 = vmin.f32 %v1528, 1.0
        %v1530 = vmax.f32 %v1529, -1.0
        %v1531 = vadd.f32 %v1250, 1.0
        %v1532 = vadd.f32 %v1290, 1.0
        %v1533 = vadd.f32 %v1330, 1.0
        %v1534 = vadd.f32 %v1370, 1.0
        %v1535 = vadd.f32 %v1410, 1.0
        %v1536 = vadd.f32 %v1450, 1.0
        %v1537 = vadd.f32 %v1490, 1.0
        %v1538 = vadd.f32 %v1530, 1.0
        %v1539 = vmul.f32 %v1195, %v1531
        %v1540 = vmul.f32 %v1196, %v1532
        %v1541 = vmul.f32 %v1197, %v1533
        %v1542 = vmul.f32 %v1198, %v1534
        %v1543 = vmul.f32 %v1199, %v1535
        %v1544 = vmul.f32 %v1200, %v1536
        %v1545 = vmul.f32 %v1201, %v1537
        %v1546 = vmul.f32 %v1202, %v1538
        %v1547 = vld [vmem:[#allocation10] sm:$0xf]
        %v1548 = vld [vmem:[#allocation10 + $0x4] sm:$0xf]
        %v1549 = vld [vmem:[#allocation10 + $0x8] sm:$0xf]
        %v1550 = vld [vmem:[#allocation10 + $0xc] sm:$0xf]
        %v1551 = vld [vmem:[#allocation10 + $0x10] sm:$0xf]
        %v1552 = vld [vmem:[#allocation10 + $0x14] sm:$0xf]
        %v1553 = vld [vmem:[#allocation10 + $0x18] sm:$0xf]
        %v1554 = vld [vmem:[#allocation10 + $0x1c] sm:$0xf]
        %v1555 = vld [vmem:[#allocation10 + $0x20] sm:$0xf]
        %v1556 = vld [vmem:[#allocation10 + $0x24] sm:$0xf]
        %v1557 = vld [vmem:[#allocation10 + $0x28] sm:$0xf]
        %v1558 = vld [vmem:[#allocation10 + $0x2c] sm:$0xf]
        %v1559 = vld [vmem:[#allocation10 + $0x30] sm:$0xf]
        %v1560 = vld [vmem:[#allocation10 + $0x34] sm:$0xf]
        %v1561 = vld [vmem:[#allocation10 + $0x38] sm:$0xf]
        %v1562 = vld [vmem:[#allocation10 + $0x3c] sm:$0xf]
        %v1563 = vld [vmem:[#allocation10 + $0x40] sm:$0xf]
        %v1564 = vld [vmem:[#allocation10 + $0x44] sm:$0xf]
        %v1565 = vld [vmem:[#allocation10 + $0x48] sm:$0xf]
        %v1566 = vld [vmem:[#allocation10 + $0x4c] sm:$0xf]
        %v1567 = vld [vmem:[#allocation10 + $0x50] sm:$0xf]
        %v1568 = vld [vmem:[#allocation10 + $0x54] sm:$0xf]
        %v1569 = vld [vmem:[#allocation10 + $0x58] sm:$0xf]
        %v1570 = vld [vmem:[#allocation10 + $0x5c] sm:$0xf]
        %v1571 = vld [vmem:[#allocation10 + $0x60] sm:$0xf]
        %v1572 = vld [vmem:[#allocation10 + $0x64] sm:$0xf]
        %v1573 = vld [vmem:[#allocation10 + $0x68] sm:$0xf]
        %v1574 = vld [vmem:[#allocation10 + $0x6c] sm:$0xf]
        %v1575 = vld [vmem:[#allocation10 + $0x70] sm:$0xf]
        %v1576 = vld [vmem:[#allocation10 + $0x74] sm:$0xf]
        %v1577 = vld [vmem:[#allocation10 + $0x78] sm:$0xf]
        %v1578 = vld [vmem:[#allocation10 + $0x7c] sm:$0xf]
        %v1579 = vld [vmem:[#allocation10 + $0x80] sm:$0xf]
        %v1580 = vld [vmem:[#allocation10 + $0x84] sm:$0xf]
        %v1581 = vld [vmem:[#allocation10 + $0x88] sm:$0xf]
        %v1582 = vld [vmem:[#allocation10 + $0x8c] sm:$0xf]
        %v1583 = vld [vmem:[#allocation10 + $0x90] sm:$0xf]
        %v1584 = vld [vmem:[#allocation10 + $0x94] sm:$0xf]
        %v1585 = vld [vmem:[#allocation10 + $0x98] sm:$0xf]
        %v1586 = vld [vmem:[#allocation10 + $0x9c] sm:$0xf]
        %v1587 = vld [vmem:[#allocation10 + $0xa0] sm:$0xf]
        %v1588 = vld [vmem:[#allocation10 + $0xa4] sm:$0xf]
        %v1589 = vld [vmem:[#allocation10 + $0xa8] sm:$0xf]
        %v1590 = vld [vmem:[#allocation10 + $0xac] sm:$0xf]
        %v1591 = vld [vmem:[#allocation10 + $0xb0] sm:$0xf]
        %v1592 = vld [vmem:[#allocation10 + $0xb4] sm:$0xf]
        %v1593 = vld [vmem:[#allocation10 + $0xb8] sm:$0xf]
        %v1594 = vld [vmem:[#allocation10 + $0xbc] sm:$0xf]
        %v1595 = vld [vmem:[#allocation10 + $0xc0] sm:$0xf]
        %v1596 = vld [vmem:[#allocation10 + $0xc4] sm:$0xf]
        %v1597 = vld [vmem:[#allocation10 + $0xc8] sm:$0xf]
        %v1598 = vld [vmem:[#allocation10 + $0xcc] sm:$0xf]
        %v1599 = vld [vmem:[#allocation10 + $0xd0] sm:$0xf]
        %v1600 = vld [vmem:[#allocation10 + $0xd4] sm:$0xf]
        %v1601 = vld [vmem:[#allocation10 + $0xd8] sm:$0xf]
        %v1602 = vld [vmem:[#allocation10 + $0xdc] sm:$0xf]
        %v1603 = vld [vmem:[#allocation10 + $0xe0] sm:$0xf]
        %v1604 = vld [vmem:[#allocation10 + $0xe4] sm:$0xf]
        %v1605 = vld [vmem:[#allocation10 + $0xe8] sm:$0xf]
        %v1606 = vld [vmem:[#allocation10 + $0xec] sm:$0xf]
        %v1607 = vld [vmem:[#allocation10 + $0xf0] sm:$0xf]
        %v1608 = vld [vmem:[#allocation10 + $0xf4] sm:$0xf]
        %v1609 = vld [vmem:[#allocation10 + $0xf8] sm:$0xf]
        %v1610 = vld [vmem:[#allocation10 + $0xfc] sm:$0xf]
        %v1611 = vpack.c.bf16 %v1543, %v1539
        %v1612 = vpack.c.bf16 %v1544, %v1540
        %v1613 = vpack.c.bf16 %v1545, %v1541
        %v1614 = vpack.c.bf16 %v1546, %v1542
        %v1615 = vld [vmem:[%s8] sm:$0x1]
        %v1617 = vperm.slane %v1615, 0
        %v1683 = vunpack.c.l.b16 %v1547
        %v1684 = vunpack.c.l.b16 %v1548
        %v1685 = vunpack.c.l.b16 %v1549
        %v1686 = vunpack.c.l.b16 %v1550
        %v1687 = vunpack.c.l.b16 %v1551
        %v1688 = vunpack.c.l.b16 %v1552
        %v1689 = vunpack.c.l.b16 %v1553
        %v1690 = vunpack.c.l.b16 %v1554
        %v1691 = vunpack.c.l.b16 %v1555
        %v1692 = vunpack.c.l.b16 %v1556
        %v1693 = vunpack.c.l.b16 %v1557
        %v1694 = vunpack.c.l.b16 %v1558
        %v1695 = vunpack.c.l.b16 %v1559
        %v1696 = vunpack.c.l.b16 %v1560
        %v1697 = vunpack.c.l.b16 %v1561
        %v1698 = vunpack.c.l.b16 %v1562
        %v1699 = vunpack.c.l.b16 %v1563
        %v1700 = vunpack.c.l.b16 %v1564
        %v1701 = vunpack.c.l.b16 %v1565
        %v1702 = vunpack.c.l.b16 %v1566
        %v1703 = vunpack.c.l.b16 %v1567
        %v1704 = vunpack.c.l.b16 %v1568
        %v1705 = vunpack.c.l.b16 %v1569
        %v1706 = vunpack.c.l.b16 %v1570
        %v1707 = vunpack.c.l.b16 %v1571
        %v1708 = vunpack.c.l.b16 %v1572
        %v1709 = vunpack.c.l.b16 %v1573
        %v1710 = vunpack.c.l.b16 %v1574
        %v1711 = vunpack.c.l.b16 %v1575
        %v1712 = vunpack.c.l.b16 %v1576
        %v1713 = vunpack.c.l.b16 %v1577
        %v1714 = vunpack.c.l.b16 %v1578
        %v1715 = vunpack.c.l.b16 %v1579
        %v1716 = vunpack.c.l.b16 %v1580
        %v1717 = vunpack.c.l.b16 %v1581
        %v1718 = vunpack.c.l.b16 %v1582
        %v1719 = vunpack.c.l.b16 %v1583
        %v1720 = vunpack.c.l.b16 %v1584
        %v1721 = vunpack.c.l.b16 %v1585
        %v1722 = vunpack.c.l.b16 %v1586
        %v1723 = vunpack.c.l.b16 %v1587
        %v1724 = vunpack.c.l.b16 %v1588
        %v1725 = vunpack.c.l.b16 %v1589
        %v1726 = vunpack.c.l.b16 %v1590
        %v1727 = vunpack.c.l.b16 %v1591
        %v1728 = vunpack.c.l.b16 %v1592
        %v1729 = vunpack.c.l.b16 %v1593
        %v1730 = vunpack.c.l.b16 %v1594
        %v1731 = vunpack.c.l.b16 %v1595
        %v1732 = vunpack.c.l.b16 %v1596
        %v1733 = vunpack.c.l.b16 %v1597
        %v1734 = vunpack.c.l.b16 %v1598
        %v1735 = vunpack.c.l.b16 %v1599
        %v1736 = vunpack.c.l.b16 %v1600
        %v1737 = vunpack.c.l.b16 %v1601
        %v1738 = vunpack.c.l.b16 %v1602
        %v1739 = vunpack.c.l.b16 %v1603
        %v1740 = vunpack.c.l.b16 %v1604
        %v1741 = vunpack.c.l.b16 %v1605
        %v1742 = vunpack.c.l.b16 %v1606
        %v1743 = vunpack.c.l.b16 %v1607
        %v1744 = vunpack.c.l.b16 %v1608
        %v1745 = vunpack.c.l.b16 %v1609
        %v1746 = vunpack.c.l.b16 %v1610
        %v1747 = vpack.c.b16 %v1684, %v1683
        %v1748 = vpack.c.b16 %v1686, %v1685
        %v1749 = vpack.c.b16 %v1688, %v1687
        %v1750 = vpack.c.b16 %v1690, %v1689
        %v1751 = vpack.c.b16 %v1692, %v1691
        %v1752 = vpack.c.b16 %v1694, %v1693
        %v1753 = vpack.c.b16 %v1696, %v1695
        %v1754 = vpack.c.b16 %v1698, %v1697
        %v1755 = vpack.c.b16 %v1700, %v1699
        %v1756 = vpack.c.b16 %v1702, %v1701
        %v1757 = vpack.c.b16 %v1704, %v1703
        %v1758 = vpack.c.b16 %v1706, %v1705
        %v1759 = vpack.c.b16 %v1708, %v1707
        %v1760 = vpack.c.b16 %v1710, %v1709
        %v1761 = vpack.c.b16 %v1712, %v1711
        %v1762 = vpack.c.b16 %v1714, %v1713
        %v1763 = vpack.c.b16 %v1716, %v1715
        %v1764 = vpack.c.b16 %v1718, %v1717
        %v1765 = vpack.c.b16 %v1720, %v1719
        %v1766 = vpack.c.b16 %v1722, %v1721
        %v1767 = vpack.c.b16 %v1724, %v1723
        %v1768 = vpack.c.b16 %v1726, %v1725
        %v1769 = vpack.c.b16 %v1728, %v1727
        %v1770 = vpack.c.b16 %v1730, %v1729
        %v1771 = vpack.c.b16 %v1732, %v1731
        %v1772 = vpack.c.b16 %v1734, %v1733
        %v1773 = vpack.c.b16 %v1736, %v1735
        %v1774 = vpack.c.b16 %v1738, %v1737
        %v1775 = vpack.c.b16 %v1740, %v1739
        %v1776 = vpack.c.b16 %v1742, %v1741
        %v1777 = vpack.c.b16 %v1744, %v1743
        %v1778 = vpack.c.b16 %v1746, %v1745
        %1811 = vmatpush.bf16.msra.mxu0 %v1754
        %1812 = vmatpush.bf16.msra.mxu0 %v1753
        %1813 = vmatpush.bf16.msra.mxu0 %v1752
        %1814 = vmatpush.bf16.msra.mxu0 %v1751
        %1815 = vmatpush.bf16.msra.mxu0 %v1750
        %1816 = vmatpush.bf16.msra.mxu0 %v1749
        %1817 = vmatpush.bf16.msra.mxu0 %v1748
        %1818 = vmatpush.bf16.msra.mxu0 %v1747
        %1819 = vmatmul.bf16.gmra.mxu0 %v1611
        %v1820 = vpop.f32.mrf.mxu0
        %v1821 = vadd.f32 %v1617, %v1820
        %v1822 = vpop.f32.mrf.mxu0
        %v1823 = vadd.f32 %v1617, %v1822
        %1824 = vdwg.mxu0
        %1825 = vmatpush.bf16.msra.mxu0 %v1762
        %1826 = vmatpush.bf16.msra.mxu0 %v1761
        %1827 = vmatpush.bf16.msra.mxu0 %v1760
        %1828 = vmatpush.bf16.msra.mxu0 %v1759
        %1829 = vmatpush.bf16.msra.mxu0 %v1758
        %1830 = vmatpush.bf16.msra.mxu0 %v1757
        %1831 = vmatpush.bf16.msra.mxu0 %v1756
        %1832 = vmatpush.bf16.msra.mxu0 %v1755
        %1833 = vmatmul.bf16.gmra.mxu0 %v1612
        %v1834 = vpop.f32.mrf.mxu0
        %v1835 = vadd.f32 %v1821, %v1834
        %v1836 = vpop.f32.mrf.mxu0
        %v1837 = vadd.f32 %v1823, %v1836
        %1838 = vdwg.mxu0
        %1839 = vmatpush.bf16.msra.mxu0 %v1770
        %1840 = vmatpush.bf16.msra.mxu0 %v1769
        %1841 = vmatpush.bf16.msra.mxu0 %v1768
        %1842 = vmatpush.bf16.msra.mxu0 %v1767
        %1843 = vmatpush.bf16.msra.mxu0 %v1766
        %1844 = vmatpush.bf16.msra.mxu0 %v1765
        %1845 = vmatpush.bf16.msra.mxu0 %v1764
        %1846 = vmatpush.bf16.msra.mxu0 %v1763
        %1847 = vmatmul.bf16.gmra.mxu0 %v1613
        %v1848 = vpop.f32.mrf.mxu0
        %v1849 = vadd.f32 %v1835, %v1848
        %v1850 = vpop.f32.mrf.mxu0
        %v1851 = vadd.f32 %v1837, %v1850
        %1852 = vdwg.mxu0
        %1853 = vmatpush.bf16.msra.mxu0 %v1778
        %1854 = vmatpush.bf16.msra.mxu0 %v1777
        %1855 = vmatpush.bf16.msra.mxu0 %v1776
        %1856 = vmatpush.bf16.msra.mxu0 %v1775
        %1857 = vmatpush.bf16.msra.mxu0 %v1774
        %1858 = vmatpush.bf16.msra.mxu0 %v1773
        %1859 = vmatpush.bf16.msra.mxu0 %v1772
        %1860 = vmatpush.bf16.msra.mxu0 %v1771
        %1861 = vmatmul.bf16.gmra.mxu0 %v1614
        %v1862 = vpop.f32.mrf.mxu0
        %v1863 = vadd.f32 %v1849, %v1862
        %v1864 = vpop.f32.mrf.mxu0
        %v1865 = vadd.f32 %v1851, %v1864
        %1866 = vdwg.mxu0
        %1867 = vadd.xlane.f32.xlu0 %v1863
        %v1868 = vpop.xlane.xlu0 %1867
        %1869 = vadd.xlane.f32.xlu0 %v1865
        %v1870 = vpop.xlane.xlu0 %1869
        %v1871 = vrcp.pop 128.0
        %v1872 = vmul.f32 128.0, %v1871
        %v1873 = vsub.f32 1.0, %v1872
        %v1874 = vmul.f32 %v1871, %v1873
        %v1875 = vadd.f32 %v1871, %v1874
        %vm1876 = vweird.f32 %v1871
        %v1877 = vsel %vm1876, %v1871, %v1875
        %v1878 = vmul.f32 %v1868, %v1877
        %v1879 = vmul.f32 %v1870, %v1877
        %v1880 = vsub.f32 %v1863, %v1878
        %v1881 = vsub.f32 %v1865, %v1879
        %v1882 = vmul.f32 %v1880, %v1880
        %v1883 = vmul.f32 %v1881, %v1881
        %1884 = vadd.xlane.f32.xlu0 %v1882
        %v1885 = vpop.xlane.xlu0 %1884
        %1886 = vadd.xlane.f32.xlu0 %v1883
        %v1887 = vpop.xlane.xlu0 %1886
        %v1888 = vmul.f32 %v1885, %v1877
        %v1889 = vmul.f32 %v1887, %v1877
        %v1890 = vadd.f32 %v1888, 1e-05
        %v1891 = vadd.f32 %v1889, 1e-05
        %v1892 = vrsqrt.pop %v1890
        %v1893 = vmul.f32 %v1892, %v1890
        %v1894 = vmul.f32 %v1893, %v1892
        %v1895 = vmul.f32 0.5, %v1894
        %v1896 = vsub.f32 1.5, %v1895
        %v1897 = vmul.f32 %v1892, %v1896
        %vm1898 = vweird.f32 %v1890
        %vm1899 = vweird.f32 %v1892
        %vm1900 = vmor %vm1898, %vm1899
        %v1901 = vsel %vm1900, %v1892, %v1897
        %v1902 = vrsqrt.pop %v1891
        %v1903 = vmul.f32 %v1902, %v1891
        %v1904 = vmul.f32 %v1903, %v1902
        %v1905 = vmul.f32 0.5, %v1904
        %v1906 = vsub.f32 1.5, %v1905
        %v1907 = vmul.f32 %v1902, %v1906
        %vm1908 = vweird.f32 %v1891
        %vm1909 = vweird.f32 %v1902
        %vm1910 = vmor %vm1908, %vm1909
        %v1911 = vsel %vm1910, %v1902, %v1907
        %v1912 = vmul.f32 %v1880, %v1901
        %v1913 = vmul.f32 %v1881, %v1911
        %s1914 = smul.u32 1, 1
        %s1915 = sshll.u32 %s1914, 4
        %1916 = dma.done [#allocation3], %s1915
        %s1917 = sshll.u32 %s1914, 4
        %1918 = dma.done %s729, %s1917
        %s1919 = sshll.u32 %s1914, 4
        %1920 = dma.done %s747, %s1919
        %s1921 = sshll.u32 %s1914, 4
        %1922 = dma.done %s765, %s1921
        %s1923 = sshll.u32 %s1914, 4
        %1924 = dma.done %s783, %s1923
        %s1925 = sshll.u32 %s1914, 4
        %1926 = dma.done %s801, %s1925
        %s1927 = sshll.u32 %s1914, 4
        %1928 = dma.done %s819, %s1927
        %s1929 = sshll.u32 %s1914, 4
        %1930 = dma.done %s837, %s1929
        %v1931 = vld [vmem:[#allocation12] sm:$0xf]
        %v1932 = vld [vmem:[#allocation12 + $0x4] sm:$0xf]
        %v1933 = vld [vmem:[#allocation12 + $0x8] sm:$0xf]
        %v1934 = vld [vmem:[#allocation12 + $0xc] sm:$0xf]
        %v1935 = vld [vmem:[#allocation12 + $0x10] sm:$0xf]
        %v1936 = vld [vmem:[#allocation12 + $0x14] sm:$0xf]
        %v1937 = vld [vmem:[#allocation12 + $0x18] sm:$0xf]
        %v1938 = vld [vmem:[#allocation12 + $0x1c] sm:$0xf]
        %v1939 = vld [vmem:[#allocation12 + $0x20] sm:$0xf]
        %v1940 = vld [vmem:[#allocation12 + $0x24] sm:$0xf]
        %v1941 = vld [vmem:[#allocation12 + $0x28] sm:$0xf]
        %v1942 = vld [vmem:[#allocation12 + $0x2c] sm:$0xf]
        %v1943 = vld [vmem:[#allocation12 + $0x30] sm:$0xf]
        %v1944 = vld [vmem:[#allocation12 + $0x34] sm:$0xf]
        %v1945 = vld [vmem:[#allocation12 + $0x38] sm:$0xf]
        %v1946 = vld [vmem:[#allocation12 + $0x3c] sm:$0xf]
        %v1947 = vpack.c.bf16 %v1912, %v1912
        %v1948 = vld [vmem:[#allocation13] sm:$0xf]
        %v1949 = vld [vmem:[#allocation13 + $0x4] sm:$0xf]
        %v1950 = vld [vmem:[#allocation13 + $0x8] sm:$0xf]
        %v1951 = vld [vmem:[#allocation13 + $0xc] sm:$0xf]
        %v1952 = vld [vmem:[#allocation13 + $0x10] sm:$0xf]
        %v1953 = vld [vmem:[#allocation13 + $0x14] sm:$0xf]
        %v1954 = vld [vmem:[#allocation13 + $0x18] sm:$0xf]
        %v1955 = vld [vmem:[#allocation13 + $0x1c] sm:$0xf]
        %v1956 = vld [vmem:[#allocation13 + $0x20] sm:$0xf]
        %v1957 = vld [vmem:[#allocation13 + $0x24] sm:$0xf]
        %v1958 = vld [vmem:[#allocation13 + $0x28] sm:$0xf]
        %v1959 = vld [vmem:[#allocation13 + $0x2c] sm:$0xf]
        %v1960 = vld [vmem:[#allocation13 + $0x30] sm:$0xf]
        %v1961 = vld [vmem:[#allocation13 + $0x34] sm:$0xf]
        %v1962 = vld [vmem:[#allocation13 + $0x38] sm:$0xf]
        %v1963 = vld [vmem:[#allocation13 + $0x3c] sm:$0xf]
        %v1964 = vpack.c.bf16 %v1913, %v1913
        %v1981 = vunpack.c.l.b16 %v1948
        %v1982 = vunpack.c.l.b16 %v1949
        %v1983 = vunpack.c.l.b16 %v1950
        %v1984 = vunpack.c.l.b16 %v1951
        %v1985 = vunpack.c.l.b16 %v1952
        %v1986 = vunpack.c.l.b16 %v1953
        %v1987 = vunpack.c.l.b16 %v1954
        %v1988 = vunpack.c.l.b16 %v1955
        %v1989 = vunpack.c.l.b16 %v1956
        %v1990 = vunpack.c.l.b16 %v1957
        %v1991 = vunpack.c.l.b16 %v1958
        %v1992 = vunpack.c.l.b16 %v1959
        %v1993 = vunpack.c.l.b16 %v1960
        %v1994 = vunpack.c.l.b16 %v1961
        %v1995 = vunpack.c.l.b16 %v1962
        %v1996 = vunpack.c.l.b16 %v1963
        %v1997 = vpack.c.b16 %v1982, %v1981
        %v1998 = vpack.c.b16 %v1984, %v1983
        %v1999 = vpack.c.b16 %v1986, %v1985
        %v2000 = vpack.c.b16 %v1988, %v1987
        %v2001 = vpack.c.b16 %v1990, %v1989
        %v2002 = vpack.c.b16 %v1992, %v1991
        %v2003 = vpack.c.b16 %v1994, %v1993
        %v2004 = vpack.c.b16 %v1996, %v1995
        %2013 = vmatpush.bf16.msra.mxu0 %v2004
        %2014 = vmatpush.bf16.msra.mxu0 %v2003
        %2015 = vmatpush.bf16.msra.mxu0 %v2002
        %2016 = vmatpush.bf16.msra.mxu0 %v2001
        %2017 = vmatpush.bf16.msra.mxu0 %v2000
        %2018 = vmatpush.bf16.msra.mxu0 %v1999
        %2019 = vmatpush.bf16.msra.mxu0 %v1998
        %2020 = vmatpush.bf16.msra.mxu0 %v1997
        %2021 = vmatmul.bf16.gmra.mxu0 %v1964
        %v2022 = vpop.f32.mrf.mxu0
        %v2023 = vadd.f32 0.0, %v2022
        %v2024 = vpop.f32.mrf.mxu0
        %2025 = vdwg.mxu0
        %v2042 = vunpack.c.l.b16 %v1931
        %v2043 = vunpack.c.l.b16 %v1932
        %v2044 = vunpack.c.l.b16 %v1933
        %v2045 = vunpack.c.l.b16 %v1934
        %v2046 = vunpack.c.l.b16 %v1935
        %v2047 = vunpack.c.l.b16 %v1936
        %v2048 = vunpack.c.l.b16 %v1937
        %v2049 = vunpack.c.l.b16 %v1938
        %v2050 = vunpack.c.l.b16 %v1939
        %v2051 = vunpack.c.l.b16 %v1940
        %v2052 = vunpack.c.l.b16 %v1941
        %v2053 = vunpack.c.l.b16 %v1942
        %v2054 = vunpack.c.l.b16 %v1943
        %v2055 = vunpack.c.l.b16 %v1944
        %v2056 = vunpack.c.l.b16 %v1945
        %v2057 = vunpack.c.l.b16 %v1946
        %v2058 = vpack.c.b16 %v2043, %v2042
        %v2059 = vpack.c.b16 %v2045, %v2044
        %v2060 = vpack.c.b16 %v2047, %v2046
        %v2061 = vpack.c.b16 %v2049, %v2048
        %v2062 = vpack.c.b16 %v2051, %v2050
        %v2063 = vpack.c.b16 %v2053, %v2052
        %v2064 = vpack.c.b16 %v2055, %v2054
        %v2065 = vpack.c.b16 %v2057, %v2056
        %2074 = vmatpush.bf16.msra.mxu0 %v2065
        %2075 = vmatpush.bf16.msra.mxu0 %v2064
        %2076 = vmatpush.bf16.msra.mxu0 %v2063
        %2077 = vmatpush.bf16.msra.mxu0 %v2062
        %2078 = vmatpush.bf16.msra.mxu0 %v2061
        %2079 = vmatpush.bf16.msra.mxu0 %v2060
        %2080 = vmatpush.bf16.msra.mxu0 %v2059
        %2081 = vmatpush.bf16.msra.mxu0 %v2058
        %2082 = vmatmul.bf16.gmra.mxu0 %v1947
        %v2083 = vpop.f32.mrf.mxu0
        %v2084 = vadd.f32 %v2023, %v2083
        %v2085 = vpop.f32.mrf.mxu0
        %2086 = vdwg.mxu0
        %v2087 = vld [vmem:[%s11] sm:$0x1]
        %v2089 = vperm.slane %v2087, 0
        %v2091 = vadd.f32 %v2084, %v2089
        %v2092 = vld [vmem:[#allocation2] sm:$0xff]
        %v2093 = vadd.f32 %v2091, %v2092
        %v2094 = vld [vmem:[#allocation15] sm:$0xff]
        %v2095 = vld [vmem:[#allocation15 + $0x8] sm:$0xff]
        %v2096 = vld [vmem:[#allocation15 + $0x10] sm:$0xff]
        %v2097 = vld [vmem:[#allocation15 + $0x18] sm:$0xff]
        %v2098 = vld [vmem:[#allocation15 + $0x20] sm:$0xff]
        %v2099 = vld [vmem:[#allocation15 + $0x28] sm:$0xff]
        %v2100 = vld [vmem:[#allocation15 + $0x30] sm:$0xff]
        %v2101 = vld [vmem:[#allocation15 + $0x38] sm:$0xff]
        %v2102 = vld [vmem:[#allocation15 + $0x40] sm:$0xff]
        %v2103 = vld [vmem:[#allocation15 + $0x48] sm:$0xff]
        %v2104 = vld [vmem:[#allocation15 + $0x50] sm:$0xff]
        %v2105 = vld [vmem:[#allocation15 + $0x58] sm:$0xff]
        %v2106 = vld [vmem:[#allocation15 + $0x60] sm:$0xff]
        %v2107 = vld [vmem:[#allocation15 + $0x68] sm:$0xff]
        %v2108 = vld [vmem:[#allocation15 + $0x70] sm:$0xff]
        %v2109 = vld [vmem:[#allocation15 + $0x78] sm:$0xff]
        %v2110 = vld [vmem:[#allocation15 + $0x80] sm:$0xff]
        %v2111 = vld [vmem:[#allocation15 + $0x88] sm:$0xff]
        %v2112 = vld [vmem:[#allocation15 + $0x90] sm:$0xff]
        %v2113 = vld [vmem:[#allocation15 + $0x98] sm:$0xff]
        %v2114 = vld [vmem:[#allocation15 + $0xa0] sm:$0xff]
        %v2115 = vld [vmem:[#allocation15 + $0xa8] sm:$0xff]
        %v2116 = vld [vmem:[#allocation15 + $0xb0] sm:$0xff]
        %v2117 = vld [vmem:[#allocation15 + $0xb8] sm:$0xff]
        %v2118 = vld [vmem:[#allocation15 + $0xc0] sm:$0xff]
        %v2119 = vld [vmem:[#allocation15 + $0xc8] sm:$0xff]
        %v2120 = vld [vmem:[#allocation15 + $0xd0] sm:$0xff]
        %v2121 = vld [vmem:[#allocation15 + $0xd8] sm:$0xff]
        %v2122 = vld [vmem:[#allocation15 + $0xe0] sm:$0xff]
        %v2123 = vld [vmem:[#allocation15 + $0xe8] sm:$0xff]
        %v2124 = vld [vmem:[#allocation15 + $0xf0] sm:$0xff]
        %v2125 = vld [vmem:[#allocation15 + $0xf8] sm:$0xff]
        %v2126 = vpack.c.bf16 %v2093, %v2093
        %v2127 = vld [vmem:[%s13] sm:$0xf]
        %v2129 = vperm.slane %v2127, 0
        %v2130 = vperm.slane %v2127, 1
        %v2131 = vperm.slane %v2127, 2
        %v2132 = vperm.slane %v2127, 3
        %v2169 = vunpack.c.l.b16 %v2094
        %v2170 = vunpack.c.h.b16 %v2094
        %v2171 = vunpack.c.l.b16 %v2095
        %v2172 = vunpack.c.h.b16 %v2095
        %v2173 = vunpack.c.l.b16 %v2096
        %v2174 = vunpack.c.h.b16 %v2096
        %v2175 = vunpack.c.l.b16 %v2097
        %v2176 = vunpack.c.h.b16 %v2097
        %v2177 = vunpack.c.l.b16 %v2098
        %v2178 = vunpack.c.h.b16 %v2098
        %v2179 = vunpack.c.l.b16 %v2099
        %v2180 = vunpack.c.h.b16 %v2099
        %v2181 = vunpack.c.l.b16 %v2100
        %v2182 = vunpack.c.h.b16 %v2100
        %v2183 = vunpack.c.l.b16 %v2101
        %v2184 = vunpack.c.h.b16 %v2101
        %v2185 = vunpack.c.l.b16 %v2102
        %v2186 = vunpack.c.h.b16 %v2102
        %v2187 = vunpack.c.l.b16 %v2103
        %v2188 = vunpack.c.h.b16 %v2103
        %v2189 = vunpack.c.l.b16 %v2104
        %v2190 = vunpack.c.h.b16 %v2104
        %v2191 = vunpack.c.l.b16 %v2105
        %v2192 = vunpack.c.h.b16 %v2105
        %v2193 = vunpack.c.l.b16 %v2106
        %v2194 = vunpack.c.h.b16 %v2106
        %v2195 = vunpack.c.l.b16 %v2107
        %v2196 = vunpack.c.h.b16 %v2107
        %v2197 = vunpack.c.l.b16 %v2108
        %v2198 = vunpack.c.h.b16 %v2108
        %v2199 = vunpack.c.l.b16 %v2109
        %v2200 = vunpack.c.h.b16 %v2109
        %v2201 = vunpack.c.l.b16 %v2110
        %v2202 = vunpack.c.h.b16 %v2110
        %v2203 = vunpack.c.l.b16 %v2111
        %v2204 = vunpack.c.h.b16 %v2111
        %v2205 = vunpack.c.l.b16 %v2112
        %v2206 = vunpack.c.h.b16 %v2112
        %v2207 = vunpack.c.l.b16 %v2113
        %v2208 = vunpack.c.h.b16 %v2113
        %v2209 = vunpack.c.l.b16 %v2114
        %v2210 = vunpack.c.h.b16 %v2114
        %v2211 = vunpack.c.l.b16 %v2115
        %v2212 = vunpack.c.h.b16 %v2115
        %v2213 = vunpack.c.l.b16 %v2116
        %v2214 = vunpack.c.h.b16 %v2116
        %v2215 = vunpack.c.l.b16 %v2117
        %v2216 = vunpack.c.h.b16 %v2117
        %v2217 = vunpack.c.l.b16 %v2118
        %v2218 = vunpack.c.h.b16 %v2118
        %v2219 = vunpack.c.l.b16 %v2119
        %v2220 = vunpack.c.h.b16 %v2119
        %v2221 = vunpack.c.l.b16 %v2120
        %v2222 = vunpack.c.h.b16 %v2120
        %v2223 = vunpack.c.l.b16 %v2121
        %v2224 = vunpack.c.h.b16 %v2121
        %v2225 = vunpack.c.l.b16 %v2122
        %v2226 = vunpack.c.h.b16 %v2122
        %v2227 = vunpack.c.l.b16 %v2123
        %v2228 = vunpack.c.h.b16 %v2123
        %v2229 = vunpack.c.l.b16 %v2124
        %v2230 = vunpack.c.h.b16 %v2124
        %v2231 = vunpack.c.l.b16 %v2125
        %v2232 = vunpack.c.h.b16 %v2125
        %v2233 = vpack.c.b16 %v2173, %v2169
        %v2234 = vpack.c.b16 %v2174, %v2170
        %v2235 = vpack.c.b16 %v2175, %v2171
        %v2236 = vpack.c.b16 %v2176, %v2172
        %v2237 = vpack.c.b16 %v2181, %v2177
        %v2238 = vpack.c.b16 %v2182, %v2178
        %v2239 = vpack.c.b16 %v2183, %v2179
        %v2240 = vpack.c.b16 %v2184, %v2180
        %v2241 = vpack.c.b16 %v2189, %v2185
        %v2242 = vpack.c.b16 %v2190, %v2186
        %v2243 = vpack.c.b16 %v2191, %v2187
        %v2244 = vpack.c.b16 %v2192, %v2188
        %v2245 = vpack.c.b16 %v2197, %v2193
        %v2246 = vpack.c.b16 %v2198, %v2194
        %v2247 = vpack.c.b16 %v2199, %v2195
        %v2248 = vpack.c.b16 %v2200, %v2196
        %v2249 = vpack.c.b16 %v2205, %v2201
        %v2250 = vpack.c.b16 %v2206, %v2202
        %v2251 = vpack.c.b16 %v2207, %v2203
        %v2252 = vpack.c.b16 %v2208, %v2204
        %v2253 = vpack.c.b16 %v2213, %v2209
        %v2254 = vpack.c.b16 %v2214, %v2210
        %v2255 = vpack.c.b16 %v2215, %v2211
        %v2256 = vpack.c.b16 %v2216, %v2212
        %v2257 = vpack.c.b16 %v2221, %v2217
        %v2258 = vpack.c.b16 %v2222, %v2218
        %v2259 = vpack.c.b16 %v2223, %v2219
        %v2260 = vpack.c.b16 %v2224, %v2220
        %v2261 = vpack.c.b16 %v2229, %v2225
        %v2262 = vpack.c.b16 %v2230, %v2226
        %v2263 = vpack.c.b16 %v2231, %v2227
        %v2264 = vpack.c.b16 %v2232, %v2228
        %2297 = vmatpush.bf16.msra.mxu0 %v2261
        %2298 = vmatpush.bf16.msra.mxu0 %v2257
        %2299 = vmatpush.bf16.msra.mxu0 %v2253
        %2300 = vmatpush.bf16.msra.mxu0 %v2249
        %2301 = vmatpush.bf16.msra.mxu0 %v2245
        %2302 = vmatpush.bf16.msra.mxu0 %v2241
        %2303 = vmatpush.bf16.msra.mxu0 %v2237
        %2304 = vmatpush.bf16.msra.mxu0 %v2233
        %2305 = vmatmul.bf16.gmra.mxu0 %v2126
        %v2306 = vpop.f32.mrf.mxu0
        %v2307 = vadd.f32 %v2129, %v2306
        %v2308 = vpop.f32.mrf.mxu0
        %2309 = vdwg.mxu0
        %2310 = vmatpush.bf16.msra.mxu0 %v2262
        %2311 = vmatpush.bf16.msra.mxu0 %v2258
        %2312 = vmatpush.bf16.msra.mxu0 %v2254
        %2313 = vmatpush.bf16.msra.mxu0 %v2250
        %2314 = vmatpush.bf16.msra.mxu0 %v2246
        %2315 = vmatpush.bf16.msra.mxu0 %v2242
        %2316 = vmatpush.bf16.msra.mxu0 %v2238
        %2317 = vmatpush.bf16.msra.mxu0 %v2234
        %2318 = vmatmul.bf16.gmra.mxu0 %v2126
        %v2319 = vpop.f32.mrf.mxu0
        %v2320 = vadd.f32 %v2130, %v2319
        %v2321 = vpop.f32.mrf.mxu0
        %2322 = vdwg.mxu0
        %2323 = vmatpush.bf16.msra.mxu0 %v2263
        %2324 = vmatpush.bf16.msra.mxu0 %v2259
        %2325 = vmatpush.bf16.msra.mxu0 %v2255
        %2326 = vmatpush.bf16.msra.mxu0 %v2251
        %2327 = vmatpush.bf16.msra.mxu0 %v2247
        %2328 = vmatpush.bf16.msra.mxu0 %v2243
        %2329 = vmatpush.bf16.msra.mxu0 %v2239
        %2330 = vmatpush.bf16.msra.mxu0 %v2235
        %2331 = vmatmul.bf16.gmra.mxu0 %v2126
        %v2332 = vpop.f32.mrf.mxu0
        %v2333 = vadd.f32 %v2131, %v2332
        %v2334 = vpop.f32.mrf.mxu0
        %2335 = vdwg.mxu0
        %2336 = vmatpush.bf16.msra.mxu0 %v2264
        %2337 = vmatpush.bf16.msra.mxu0 %v2260
        %2338 = vmatpush.bf16.msra.mxu0 %v2256
        %2339 = vmatpush.bf16.msra.mxu0 %v2252
        %2340 = vmatpush.bf16.msra.mxu0 %v2248
        %2341 = vmatpush.bf16.msra.mxu0 %v2244
        %2342 = vmatpush.bf16.msra.mxu0 %v2240
        %2343 = vmatpush.bf16.msra.mxu0 %v2236
        %2344 = vmatmul.bf16.gmra.mxu0 %v2126
        %v2345 = vpop.f32.mrf.mxu0
        %v2346 = vadd.f32 %v2132, %v2345
        %v2347 = vpop.f32.mrf.mxu0
        %2348 = vdwg.mxu0
        %v2349 = vmul.f32 %v2307, 0.5
        %v2350 = vmul.f32 %v2320, 0.5
        %v2351 = vmul.f32 %v2333, 0.5
        %v2352 = vmul.f32 %v2346, 0.5
        %v2353 = vmul.f32 %v2307, 0.70710677
        %v2354 = vmul.f32 %v2320, 0.70710677
        %v2355 = vmul.f32 %v2333, 0.70710677
        %v2356 = vmul.f32 %v2346, 0.70710677
        %v2357 = vmul.f32 %v2353, %v2353
        %v2358 = vmin.f32 16.0, %v2357
        %v2359 = vmul.f32 %v2358, 2.1237322e-06
        %v2360 = vadd.f32 %v2359, 0.00028619796
        %v2361 = vmul.f32 %v2358, %v2360
        %v2362 = vadd.f32 %v2361, 0.0036580483
        %v2363 = vmul.f32 %v2358, %v2362
        %v2364 = vadd.f32 %v2363, 0.05243302
        %v2365 = vmul.f32 %v2358, %v2364
        %v2366 = vadd.f32 %v2365, 0.18741608
        %v2367 = vmul.f32 %v2358, %v2366
        %v2368 = vadd.f32 %v2367, 1.1283791
        %v2369 = vmul.f32 %v2353, %v2368
        %v2370 = vmul.f32 %v2358, 3.8918573e-05
        %v2371 = vadd.f32 %v2370, 0.001143296
        %v2372 = vmul.f32 %v2358, %v2371
        %v2373 = vadd.f32 %v2372, 0.014752088
        %v2374 = vmul.f32 %v2358, %v2373
        %v2375 = vadd.f32 %v2374, 0.112945676
        %v2376 = vmul.f32 %v2358, %v2375
        %v2377 = vadd.f32 %v2376, 0.4994258
        %v2378 = vmul.f32 %v2358, %v2377
        %v2379 = vadd.f32 %v2378, 1.0
        %v2380 = vrcp.pop %v2379
        %v2381 = vmul.f32 %v2379, %v2380
        %v2382 = vsub.f32 1.0, %v2381
        %v2383 = vmul.f32 %v2380, %v2382
        %v2384 = vadd.f32 %v2380, %v2383
        %vm2385 = vweird.f32 %v2379
        %vm2386 = vweird.f32 %v2380
        %vm2387 = vmor %vm2385, %vm2386
        %v2388 = vsel %vm2387, %v2380, %v2384
        %v2389 = vand.u32 2147483647, %v2379
        %vm2390 = vcmp.eq.f32.partialorder %v2389, 8.507059e+37
        %v2391 = vand.u32 %v2379, 2147483648
        %v2392 = vor.u32 1.1754944e-38, %v2391
        %v2393 = vsel %vm2390, %v2392, %v2388
        %v2394 = vmul.f32 %v2369, %v2393
        %v2395 = vmin.f32 %v2394, 1.0
        %v2396 = vmax.f32 %v2395, -1.0
        %v2397 = vmul.f32 %v2354, %v2354
        %v2398 = vmin.f32 16.0, %v2397
        %v2399 = vmul.f32 %v2398, 2.1237322e-06
        %v2400 = vadd.f32 %v2399, 0.00028619796
        %v2401 = vmul.f32 %v2398, %v2400
        %v2402 = vadd.f32 %v2401, 0.0036580483
        %v2403 = vmul.f32 %v2398, %v2402
        %v2404 = vadd.f32 %v2403, 0.05243302
        %v2405 = vmul.f32 %v2398, %v2404
        %v2406 = vadd.f32 %v2405, 0.18741608
        %v2407 = vmul.f32 %v2398, %v2406
        %v2408 = vadd.f32 %v2407, 1.1283791
        %v2409 = vmul.f32 %v2354, %v2408
        %v2410 = vmul.f32 %v2398, 3.8918573e-05
        %v2411 = vadd.f32 %v2410, 0.001143296
        %v2412 = vmul.f32 %v2398, %v2411
        %v2413 = vadd.f32 %v2412, 0.014752088
        %v2414 = vmul.f32 %v2398, %v2413
        %v2415 = vadd.f32 %v2414, 0.112945676
        %v2416 = vmul.f32 %v2398, %v2415
        %v2417 = vadd.f32 %v2416, 0.4994258
        %v2418 = vmul.f32 %v2398, %v2417
        %v2419 = vadd.f32 %v2418, 1.0
        %v2420 = vrcp.pop %v2419
        %v2421 = vmul.f32 %v2419, %v2420
        %v2422 = vsub.f32 1.0, %v2421
        %v2423 = vmul.f32 %v2420, %v2422
        %v2424 = vadd.f32 %v2420, %v2423
        %vm2425 = vweird.f32 %v2419
        %vm2426 = vweird.f32 %v2420
        %vm2427 = vmor %vm2425, %vm2426
        %v2428 = vsel %vm2427, %v2420, %v2424
        %v2429 = vand.u32 2147483647, %v2419
        %vm2430 = vcmp.eq.f32.partialorder %v2429, 8.507059e+37
        %v2431 = vand.u32 %v2419, 2147483648
        %v2432 = vor.u32 1.1754944e-38, %v2431
        %v2433 = vsel %vm2430, %v2432, %v2428
        %v2434 = vmul.f32 %v2409, %v2433
        %v2435 = vmin.f32 %v2434, 1.0
        %v2436 = vmax.f32 %v2435, -1.0
        %v2437 = vmul.f32 %v2355, %v2355
        %v2438 = vmin.f32 16.0, %v2437
        %v2439 = vmul.f32 %v2438, 2.1237322e-06
        %v2440 = vadd.f32 %v2439, 0.00028619796
        %v2441 = vmul.f32 %v2438, %v2440
        %v2442 = vadd.f32 %v2441, 0.0036580483
        %v2443 = vmul.f32 %v2438, %v2442
        %v2444 = vadd.f32 %v2443, 0.05243302
        %v2445 = vmul.f32 %v2438, %v2444
        %v2446 = vadd.f32 %v2445, 0.18741608
        %v2447 = vmul.f32 %v2438, %v2446
        %v2448 = vadd.f32 %v2447, 1.1283791
        %v2449 = vmul.f32 %v2355, %v2448
        %v2450 = vmul.f32 %v2438, 3.8918573e-05
        %v2451 = vadd.f32 %v2450, 0.001143296
        %v2452 = vmul.f32 %v2438, %v2451
        %v2453 = vadd.f32 %v2452, 0.014752088
        %v2454 = vmul.f32 %v2438, %v2453
        %v2455 = vadd.f32 %v2454, 0.112945676
        %v2456 = vmul.f32 %v2438, %v2455
        %v2457 = vadd.f32 %v2456, 0.4994258
        %v2458 = vmul.f32 %v2438, %v2457
        %v2459 = vadd.f32 %v2458, 1.0
        %v2460 = vrcp.pop %v2459
        %v2461 = vmul.f32 %v2459, %v2460
        %v2462 = vsub.f32 1.0, %v2461
        %v2463 = vmul.f32 %v2460, %v2462
        %v2464 = vadd.f32 %v2460, %v2463
        %vm2465 = vweird.f32 %v2459
        %vm2466 = vweird.f32 %v2460
        %vm2467 = vmor %vm2465, %vm2466
        %v2468 = vsel %vm2467, %v2460, %v2464
        %v2469 = vand.u32 2147483647, %v2459
        %vm2470 = vcmp.eq.f32.partialorder %v2469, 8.507059e+37
        %v2471 = vand.u32 %v2459, 2147483648
        %v2472 = vor.u32 1.1754944e-38, %v2471
        %v2473 = vsel %vm2470, %v2472, %v2468
        %v2474 = vmul.f32 %v2449, %v2473
        %v2475 = vmin.f32 %v2474, 1.0
        %v2476 = vmax.f32 %v2475, -1.0
        %v2477 = vmul.f32 %v2356, %v2356
        %v2478 = vmin.f32 16.0, %v2477
        %v2479 = vmul.f32 %v2478, 2.1237322e-06
        %v2480 = vadd.f32 %v2479, 0.00028619796
        %v2481 = vmul.f32 %v2478, %v2480
        %v2482 = vadd.f32 %v2481, 0.0036580483
        %v2483 = vmul.f32 %v2478, %v2482
        %v2484 = vadd.f32 %v2483, 0.05243302
        %v2485 = vmul.f32 %v2478, %v2484
        %v2486 = vadd.f32 %v2485, 0.18741608
        %v2487 = vmul.f32 %v2478, %v2486
        %v2488 = vadd.f32 %v2487, 1.1283791
        %v2489 = vmul.f32 %v2356, %v2488
        %v2490 = vmul.f32 %v2478, 3.8918573e-05
        %v2491 = vadd.f32 %v2490, 0.001143296
        %v2492 = vmul.f32 %v2478, %v2491
        %v2493 = vadd.f32 %v2492, 0.014752088
        %v2494 = vmul.f32 %v2478, %v2493
        %v2495 = vadd.f32 %v2494, 0.112945676
        %v2496 = vmul.f32 %v2478, %v2495
        %v2497 = vadd.f32 %v2496, 0.4994258
        %v2498 = vmul.f32 %v2478, %v2497
        %v2499 = vadd.f32 %v2498, 1.0
        %v2500 = vrcp.pop %v2499
        %v2501 = vmul.f32 %v2499, %v2500
        %v2502 = vsub.f32 1.0, %v2501
        %v2503 = vmul.f32 %v2500, %v2502
        %v2504 = vadd.f32 %v2500, %v2503
        %vm2505 = vweird.f32 %v2499
        %vm2506 = vweird.f32 %v2500
        %vm2507 = vmor %vm2505, %vm2506
        %v2508 = vsel %vm2507, %v2500, %v2504
        %v2509 = vand.u32 2147483647, %v2499
        %vm2510 = vcmp.eq.f32.partialorder %v2509, 8.507059e+37
        %v2511 = vand.u32 %v2499, 2147483648
        %v2512 = vor.u32 1.1754944e-38, %v2511
        %v2513 = vsel %vm2510, %v2512, %v2508
        %v2514 = vmul.f32 %v2489, %v2513
        %v2515 = vmin.f32 %v2514, 1.0
        %v2516 = vmax.f32 %v2515, -1.0
        %v2517 = vadd.f32 %v2396, 1.0
        %v2518 = vadd.f32 %v2436, 1.0
        %v2519 = vadd.f32 %v2476, 1.0
        %v2520 = vadd.f32 %v2516, 1.0
        %v2521 = vmul.f32 %v2349, %v2517
        %v2522 = vmul.f32 %v2350, %v2518
        %v2523 = vmul.f32 %v2351, %v2519
        %v2524 = vmul.f32 %v2352, %v2520
        %v2525 = vld [vmem:[#allocation16] sm:$0xf]
        %v2526 = vld [vmem:[#allocation16 + $0x4] sm:$0xf]
        %v2527 = vld [vmem:[#allocation16 + $0x8] sm:$0xf]
        %v2528 = vld [vmem:[#allocation16 + $0xc] sm:$0xf]
        %v2529 = vld [vmem:[#allocation16 + $0x10] sm:$0xf]
        %v2530 = vld [vmem:[#allocation16 + $0x14] sm:$0xf]
        %v2531 = vld [vmem:[#allocation16 + $0x18] sm:$0xf]
        %v2532 = vld [vmem:[#allocation16 + $0x1c] sm:$0xf]
        %v2533 = vld [vmem:[#allocation16 + $0x20] sm:$0xf]
        %v2534 = vld [vmem:[#allocation16 + $0x24] sm:$0xf]
        %v2535 = vld [vmem:[#allocation16 + $0x28] sm:$0xf]
        %v2536 = vld [vmem:[#allocation16 + $0x2c] sm:$0xf]
        %v2537 = vld [vmem:[#allocation16 + $0x30] sm:$0xf]
        %v2538 = vld [vmem:[#allocation16 + $0x34] sm:$0xf]
        %v2539 = vld [vmem:[#allocation16 + $0x38] sm:$0xf]
        %v2540 = vld [vmem:[#allocation16 + $0x3c] sm:$0xf]
        %v2541 = vld [vmem:[#allocation16 + $0x40] sm:$0xf]
        %v2542 = vld [vmem:[#allocation16 + $0x44] sm:$0xf]
        %v2543 = vld [vmem:[#allocation16 + $0x48] sm:$0xf]
        %v2544 = vld [vmem:[#allocation16 + $0x4c] sm:$0xf]
        %v2545 = vld [vmem:[#allocation16 + $0x50] sm:$0xf]
        %v2546 = vld [vmem:[#allocation16 + $0x54] sm:$0xf]
        %v2547 = vld [vmem:[#allocation16 + $0x58] sm:$0xf]
        %v2548 = vld [vmem:[#allocation16 + $0x5c] sm:$0xf]
        %v2549 = vld [vmem:[#allocation16 + $0x60] sm:$0xf]
        %v2550 = vld [vmem:[#allocation16 + $0x64] sm:$0xf]
        %v2551 = vld [vmem:[#allocation16 + $0x68] sm:$0xf]
        %v2552 = vld [vmem:[#allocation16 + $0x6c] sm:$0xf]
        %v2553 = vld [vmem:[#allocation16 + $0x70] sm:$0xf]
        %v2554 = vld [vmem:[#allocation16 + $0x74] sm:$0xf]
        %v2555 = vld [vmem:[#allocation16 + $0x78] sm:$0xf]
        %v2556 = vld [vmem:[#allocation16 + $0x7c] sm:$0xf]
        %v2557 = vld [vmem:[#allocation16 + $0x80] sm:$0xf]
        %v2558 = vld [vmem:[#allocation16 + $0x84] sm:$0xf]
        %v2559 = vld [vmem:[#allocation16 + $0x88] sm:$0xf]
        %v2560 = vld [vmem:[#allocation16 + $0x8c] sm:$0xf]
        %v2561 = vld [vmem:[#allocation16 + $0x90] sm:$0xf]
        %v2562 = vld [vmem:[#allocation16 + $0x94] sm:$0xf]
        %v2563 = vld [vmem:[#allocation16 + $0x98] sm:$0xf]
        %v2564 = vld [vmem:[#allocation16 + $0x9c] sm:$0xf]
        %v2565 = vld [vmem:[#allocation16 + $0xa0] sm:$0xf]
        %v2566 = vld [vmem:[#allocation16 + $0xa4] sm:$0xf]
        %v2567 = vld [vmem:[#allocation16 + $0xa8] sm:$0xf]
        %v2568 = vld [vmem:[#allocation16 + $0xac] sm:$0xf]
        %v2569 = vld [vmem:[#allocation16 + $0xb0] sm:$0xf]
        %v2570 = vld [vmem:[#allocation16 + $0xb4] sm:$0xf]
        %v2571 = vld [vmem:[#allocation16 + $0xb8] sm:$0xf]
        %v2572 = vld [vmem:[#allocation16 + $0xbc] sm:$0xf]
        %v2573 = vld [vmem:[#allocation16 + $0xc0] sm:$0xf]
        %v2574 = vld [vmem:[#allocation16 + $0xc4] sm:$0xf]
        %v2575 = vld [vmem:[#allocation16 + $0xc8] sm:$0xf]
        %v2576 = vld [vmem:[#allocation16 + $0xcc] sm:$0xf]
        %v2577 = vld [vmem:[#allocation16 + $0xd0] sm:$0xf]
        %v2578 = vld [vmem:[#allocation16 + $0xd4] sm:$0xf]
        %v2579 = vld [vmem:[#allocation16 + $0xd8] sm:$0xf]
        %v2580 = vld [vmem:[#allocation16 + $0xdc] sm:$0xf]
        %v2581 = vld [vmem:[#allocation16 + $0xe0] sm:$0xf]
        %v2582 = vld [vmem:[#allocation16 + $0xe4] sm:$0xf]
        %v2583 = vld [vmem:[#allocation16 + $0xe8] sm:$0xf]
        %v2584 = vld [vmem:[#allocation16 + $0xec] sm:$0xf]
        %v2585 = vld [vmem:[#allocation16 + $0xf0] sm:$0xf]
        %v2586 = vld [vmem:[#allocation16 + $0xf4] sm:$0xf]
        %v2587 = vld [vmem:[#allocation16 + $0xf8] sm:$0xf]
        %v2588 = vld [vmem:[#allocation16 + $0xfc] sm:$0xf]
        %v2589 = vpack.c.bf16 %v2521, %v2521
        %v2590 = vpack.c.bf16 %v2522, %v2522
        %v2591 = vpack.c.bf16 %v2523, %v2523
        %v2592 = vpack.c.bf16 %v2524, %v2524
        %v2593 = vld [vmem:[%s15] sm:$0x1]
        %v2595 = vperm.slane %v2593, 0
        %v2661 = vunpack.c.l.b16 %v2525
        %v2662 = vunpack.c.l.b16 %v2526
        %v2663 = vunpack.c.l.b16 %v2527
        %v2664 = vunpack.c.l.b16 %v2528
        %v2665 = vunpack.c.l.b16 %v2529
        %v2666 = vunpack.c.l.b16 %v2530
        %v2667 = vunpack.c.l.b16 %v2531
        %v2668 = vunpack.c.l.b16 %v2532
        %v2669 = vunpack.c.l.b16 %v2533
        %v2670 = vunpack.c.l.b16 %v2534
        %v2671 = vunpack.c.l.b16 %v2535
        %v2672 = vunpack.c.l.b16 %v2536
        %v2673 = vunpack.c.l.b16 %v2537
        %v2674 = vunpack.c.l.b16 %v2538
        %v2675 = vunpack.c.l.b16 %v2539
        %v2676 = vunpack.c.l.b16 %v2540
        %v2677 = vunpack.c.l.b16 %v2541
        %v2678 = vunpack.c.l.b16 %v2542
        %v2679 = vunpack.c.l.b16 %v2543
        %v2680 = vunpack.c.l.b16 %v2544
        %v2681 = vunpack.c.l.b16 %v2545
        %v2682 = vunpack.c.l.b16 %v2546
        %v2683 = vunpack.c.l.b16 %v2547
        %v2684 = vunpack.c.l.b16 %v2548
        %v2685 = vunpack.c.l.b16 %v2549
        %v2686 = vunpack.c.l.b16 %v2550
        %v2687 = vunpack.c.l.b16 %v2551
        %v2688 = vunpack.c.l.b16 %v2552
        %v2689 = vunpack.c.l.b16 %v2553
        %v2690 = vunpack.c.l.b16 %v2554
        %v2691 = vunpack.c.l.b16 %v2555
        %v2692 = vunpack.c.l.b16 %v2556
        %v2693 = vunpack.c.l.b16 %v2557
        %v2694 = vunpack.c.l.b16 %v2558
        %v2695 = vunpack.c.l.b16 %v2559
        %v2696 = vunpack.c.l.b16 %v2560
        %v2697 = vunpack.c.l.b16 %v2561
        %v2698 = vunpack.c.l.b16 %v2562
        %v2699 = vunpack.c.l.b16 %v2563
        %v2700 = vunpack.c.l.b16 %v2564
        %v2701 = vunpack.c.l.b16 %v2565
        %v2702 = vunpack.c.l.b16 %v2566
        %v2703 = vunpack.c.l.b16 %v2567
        %v2704 = vunpack.c.l.b16 %v2568
        %v2705 = vunpack.c.l.b16 %v2569
        %v2706 = vunpack.c.l.b16 %v2570
        %v2707 = vunpack.c.l.b16 %v2571
        %v2708 = vunpack.c.l.b16 %v2572
        %v2709 = vunpack.c.l.b16 %v2573
        %v2710 = vunpack.c.l.b16 %v2574
        %v2711 = vunpack.c.l.b16 %v2575
        %v2712 = vunpack.c.l.b16 %v2576
        %v2713 = vunpack.c.l.b16 %v2577
        %v2714 = vunpack.c.l.b16 %v2578
        %v2715 = vunpack.c.l.b16 %v2579
        %v2716 = vunpack.c.l.b16 %v2580
        %v2717 = vunpack.c.l.b16 %v2581
        %v2718 = vunpack.c.l.b16 %v2582
        %v2719 = vunpack.c.l.b16 %v2583
        %v2720 = vunpack.c.l.b16 %v2584
        %v2721 = vunpack.c.l.b16 %v2585
        %v2722 = vunpack.c.l.b16 %v2586
        %v2723 = vunpack.c.l.b16 %v2587
        %v2724 = vunpack.c.l.b16 %v2588
        %v2725 = vpack.c.b16 %v2662, %v2661
        %v2726 = vpack.c.b16 %v2664, %v2663
        %v2727 = vpack.c.b16 %v2666, %v2665
        %v2728 = vpack.c.b16 %v2668, %v2667
        %v2729 = vpack.c.b16 %v2670, %v2669
        %v2730 = vpack.c.b16 %v2672, %v2671
        %v2731 = vpack.c.b16 %v2674, %v2673
        %v2732 = vpack.c.b16 %v2676, %v2675
        %v2733 = vpack.c.b16 %v2678, %v2677
        %v2734 = vpack.c.b16 %v2680, %v2679
        %v2735 = vpack.c.b16 %v2682, %v2681
        %v2736 = vpack.c.b16 %v2684, %v2683
        %v2737 = vpack.c.b16 %v2686, %v2685
        %v2738 = vpack.c.b16 %v2688, %v2687
        %v2739 = vpack.c.b16 %v2690, %v2689
        %v2740 = vpack.c.b16 %v2692, %v2691
        %v2741 = vpack.c.b16 %v2694, %v2693
        %v2742 = vpack.c.b16 %v2696, %v2695
        %v2743 = vpack.c.b16 %v2698, %v2697
        %v2744 = vpack.c.b16 %v2700, %v2699
        %v2745 = vpack.c.b16 %v2702, %v2701
        %v2746 = vpack.c.b16 %v2704, %v2703
        %v2747 = vpack.c.b16 %v2706, %v2705
        %v2748 = vpack.c.b16 %v2708, %v2707
        %v2749 = vpack.c.b16 %v2710, %v2709
        %v2750 = vpack.c.b16 %v2712, %v2711
        %v2751 = vpack.c.b16 %v2714, %v2713
        %v2752 = vpack.c.b16 %v2716, %v2715
        %v2753 = vpack.c.b16 %v2718, %v2717
        %v2754 = vpack.c.b16 %v2720, %v2719
        %v2755 = vpack.c.b16 %v2722, %v2721
        %v2756 = vpack.c.b16 %v2724, %v2723
        %2789 = vmatpush.bf16.msra.mxu0 %v2732
        %2790 = vmatpush.bf16.msra.mxu0 %v2731
        %2791 = vmatpush.bf16.msra.mxu0 %v2730
        %2792 = vmatpush.bf16.msra.mxu0 %v2729
        %2793 = vmatpush.bf16.msra.mxu0 %v2728
        %2794 = vmatpush.bf16.msra.mxu0 %v2727
        %2795 = vmatpush.bf16.msra.mxu0 %v2726
        %2796 = vmatpush.bf16.msra.mxu0 %v2725
        %2797 = vmatmul.bf16.gmra.mxu0 %v2589
        %v2798 = vpop.f32.mrf.mxu0
        %v2799 = vadd.f32 %v2595, %v2798
        %v2800 = vpop.f32.mrf.mxu0
        %2801 = vdwg.mxu0
        %2802 = vmatpush.bf16.msra.mxu0 %v2740
        %2803 = vmatpush.bf16.msra.mxu0 %v2739
        %2804 = vmatpush.bf16.msra.mxu0 %v2738
        %2805 = vmatpush.bf16.msra.mxu0 %v2737
        %2806 = vmatpush.bf16.msra.mxu0 %v2736
        %2807 = vmatpush.bf16.msra.mxu0 %v2735
        %2808 = vmatpush.bf16.msra.mxu0 %v2734
        %2809 = vmatpush.bf16.msra.mxu0 %v2733
        %2810 = vmatmul.bf16.gmra.mxu0 %v2590
        %v2811 = vpop.f32.mrf.mxu0
        %v2812 = vadd.f32 %v2799, %v2811
        %v2813 = vpop.f32.mrf.mxu0
        %2814 = vdwg.mxu0
        %2815 = vmatpush.bf16.msra.mxu0 %v2748
        %2816 = vmatpush.bf16.msra.mxu0 %v2747
        %2817 = vmatpush.bf16.msra.mxu0 %v2746
        %2818 = vmatpush.bf16.msra.mxu0 %v2745
        %2819 = vmatpush.bf16.msra.mxu0 %v2744
        %2820 = vmatpush.bf16.msra.mxu0 %v2743
        %2821 = vmatpush.bf16.msra.mxu0 %v2742
        %2822 = vmatpush.bf16.msra.mxu0 %v2741
        %2823 = vmatmul.bf16.gmra.mxu0 %v2591
        %v2824 = vpop.f32.mrf.mxu0
        %v2825 = vadd.f32 %v2812, %v2824
        %v2826 = vpop.f32.mrf.mxu0
        %2827 = vdwg.mxu0
        %2828 = vmatpush.bf16.msra.mxu0 %v2756
        %2829 = vmatpush.bf16.msra.mxu0 %v2755
        %2830 = vmatpush.bf16.msra.mxu0 %v2754
        %2831 = vmatpush.bf16.msra.mxu0 %v2753
        %2832 = vmatpush.bf16.msra.mxu0 %v2752
        %2833 = vmatpush.bf16.msra.mxu0 %v2751
        %2834 = vmatpush.bf16.msra.mxu0 %v2750
        %2835 = vmatpush.bf16.msra.mxu0 %v2749
        %2836 = vmatmul.bf16.gmra.mxu0 %v2592
        %v2837 = vpop.f32.mrf.mxu0
        %v2838 = vadd.f32 %v2825, %v2837
        %v2839 = vpop.f32.mrf.mxu0
        %2840 = vdwg.mxu0
        %2841 = vadd.xlane.f32.xlu0 %v2838
        %v2842 = vpop.xlane.xlu0 %2841
        %v2843 = vmul.f32 %v2842, %v1877
        %v2844 = vsub.f32 %v2838, %v2843
        %v2845 = vmul.f32 %v2844, %v2844
        %2846 = vadd.xlane.f32.xlu0 %v2845
        %v2847 = vpop.xlane.xlu0 %2846
        %v2848 = vmul.f32 %v2847, %v1877
        %v2849 = vadd.f32 %v2848, 1e-05
        %v2850 = vrsqrt.pop %v2849
        %v2851 = vmul.f32 %v2850, %v2849
        %v2852 = vmul.f32 %v2851, %v2850
        %v2853 = vmul.f32 0.5, %v2852
        %v2854 = vsub.f32 1.5, %v2853
        %v2855 = vmul.f32 %v2850, %v2854
        %vm2856 = vweird.f32 %v2849
        %vm2857 = vweird.f32 %v2850
        %vm2858 = vmor %vm2856, %vm2857
        %v2859 = vsel %vm2858, %v2850, %v2855
        %v2860 = vmul.f32 %v2844, %v2859
        %v2861 = vld [vmem:[%s16] sm:$0x1]
        %v2863 = vperm.slane %v2861, 0
        %v2865 = vmul.f32 %v2860, %v2863
        %2866 = vadd.xlane.f32.xlu0 %v2865
        %v2867 = vpop.xlane.xlu0 %2866
        %v2868 = vld [vmem:[#allocation6] sm:$0x1]
        %v2870 = vperm.slane %v2868, 0
        %v2872 = vadd.f32 %v2867, %v2870
        %v2873 = vxor.u32 %v2872, 2147483648
        %v2874 = vmul.f32 %v2873, 1.442695
        %v2875 = vpow.pop %v2874
        %v2876 = vadd.f32 %v2875, 1.0
        %v2877 = vrcp.pop %v2876
        %v2878 = vmul.f32 %v2876, %v2877
        %v2879 = vsub.f32 1.0, %v2878
        %v2880 = vmul.f32 %v2877, %v2879
        %v2881 = vadd.f32 %v2877, %v2880
        %vm2882 = vweird.f32 %v2876
        %vm2883 = vweird.f32 %v2877
        %vm2884 = vmor %vm2882, %vm2883
        %v2885 = vsel %vm2884, %v2877, %v2881
        %v2886 = vand.u32 2147483647, %v2876
        %vm2887 = vcmp.eq.f32.partialorder %v2886, 8.507059e+37
        %v2888 = vand.u32 %v2876, 2147483648
        %v2889 = vor.u32 1.1754944e-38, %v2888
        %v2890 = vsel %vm2887, %v2889, %v2885
        %v2891 = vmul.f32 1.0, %v2890
        %v2892 = vmul.f32 %v2891, 8.0
        %v2893 = vrcp.pop %v2892
        %2895 = vset.pattern.permute.xlu0 0
        %2896 = vperm.xlu0 %2895, %v2893
        %v2897 = vpop.permute.xlu0 %2896
        %v2899 = vmul.f32 %v852, %v2897
        %v2900 = vmul.f32 %v851, %v2897
        %2901 = vmax.xlane.f32.xlu0 %v2899
        %v2902 = vpop.xlane.xlu0 %2901
        %v2903 = vsub.f32 %v2899, %v2902
        %2904 = vmax.xlane.f32.xlu0 %v2900
        %v2905 = vpop.xlane.xlu0 %2904
        %v2906 = vsub.f32 %v2900, %v2905
        %v2907 = vmul.f32 %v2903, 1.442695
        %v2908 = vpow.pop %v2907
        %v2909 = vmul.f32 %v2906, 1.442695
        %v2910 = vpow.pop %v2909
        %2911 = vadd.xlane.f32.xlu0 %v2908
        %v2912 = vpop.xlane.xlu0 %2911
        %2913 = vadd.xlane.f32.xlu0 %v2910
        %v2914 = vpop.xlane.xlu0 %2913
        %v2915 = vsub.f32 %v2906, %v2903
        %v2916 = vmul.f32 %v2910, %v2915
        %2917 = vadd.xlane.f32.xlu0 %v2916
        %v2918 = vpop.xlane.xlu0 %2917
        %v2919 = vrcp.pop %v2914
        %v2920 = vmul.f32 %v2918, %v2919
        %v2921 = vlog2.pop %v2912
        %v2922 = vmul.f32 %v2921, 0.6931472
        %v2923 = vadd.f32 %v2920, %v2922
        %v2924 = vlog2.pop %v2914
        %v2925 = vmul.f32 %v2924, 0.6931472
        %v2926 = vsub.f32 %v2923, %v2925
        %vm2927 = vcmask 7168
        %2928 = vst.msk [vmem:[%s704] sm:$0xff] %vm2927, %v2892
        %2929 = vst.msk [vmem:[%s708] sm:$0xff] %vm2927, %v2926
        %p2930 = scmp.lt.s32.totalorder %s45, 1
        %s2931 = scalar_select %p2930, %s45, 1
        %s2932 = smul.addr %s2931, 8
        %s2933 = scalar_lea.vmem %s18, %s2932
        %p2934 = scmp.lt.s32.totalorder %s45, 1
        %s2935 = scalar_select %p2934, %s45, 1
        %s2936 = smul.addr %s2935, 8
        %s2937 = scalar_lea.vmem %s19, %s2936
        // Predicated region
        $region179: #{learnable_kd_loss.1} parent=117 // pred_check
          %p2938 = pneg %p404
        $region180: #{learnable_kd_loss.1} parent=117 // pred_check_branch
          %2940 = sbr.rel (%p2938) target = $region182
        $region181: #{learnable_kd_loss.1} parent=117 // pred_region
          _
        $region182: #{learnable_kd_loss.1} parent=117 // pred_fallthru
          _
        // Predicated region
        $region183: #{learnable_kd_loss.1} parent=117 // pred_check
          %p2941 = pneg %p430
        $region184: #{learnable_kd_loss.1} parent=117 // pred_check_branch
          %2943 = sbr.rel (%p2941) target = $region186
        $region185: #{learnable_kd_loss.1} parent=117 // pred_region
          _
        $region186: #{learnable_kd_loss.1} parent=117 // pred_fallthru
          _
      $region118: #{learnable_kd_loss.1} parent=5 // pred_fallthru
        _
      %p2944 = scmp.le.s32.totalorder 2, %s40
      // Predicated region
      $region187: #{learnable_kd_loss.1} parent=5 // pred_check
        %p2945 = pneg %p2944
      $region188: #{learnable_kd_loss.1} parent=5 // pred_check_branch
        %2947 = sbr.rel (%p2945) target = $region190
      $region189: #{learnable_kd_loss.1} parent=5 // pred_region
        %s2948 = ssub.s32 %s40, 2
        // Predicated region
        $region191: #{learnable_kd_loss.1} parent=189 // pred_check
          %p2949 = pneg %p410
        $region192: #{learnable_kd_loss.1} parent=189 // pred_check_branch
          %2951 = sbr.rel (%p2949) target = $region194
        $region193: #{learnable_kd_loss.1} parent=189 // pred_region
          %p2952 = scmp.lt.s32.totalorder %s46, 1
          %s2953 = scalar_select %p2952, %s46, 1
          %s2954 = smul.addr %s2953, 8
          %s2955 = scalar_lea.vmem %s18, %s2954
        $region194: #{learnable_kd_loss.1} parent=189 // pred_fallthru
          _
        // Predicated region
        $region195: #{learnable_kd_loss.1} parent=189 // pred_check
          %p2956 = pneg %p436
        $region196: #{learnable_kd_loss.1} parent=189 // pred_check_branch
          %2958 = sbr.rel (%p2956) target = $region198
        $region197: #{learnable_kd_loss.1} parent=189 // pred_region
          %p2959 = scmp.lt.s32.totalorder %s46, 1
          %s2960 = scalar_select %p2959, %s46, 1
          %s2961 = smul.addr %s2960, 8
          %s2962 = scalar_lea.vmem %s19, %s2961
        $region198: #{learnable_kd_loss.1} parent=189 // pred_fallthru
          _
      $region190: #{learnable_kd_loss.1} parent=5 // pred_fallthru
        _
    $region6: #{learnable_kd_loss.1} parent=1 // loop_footer
      %s44 = sadd.s32 1, %s40
    $region7: #{learnable_kd_loss.1} parent=1 // loop_footer_branch
      %39 = sbr.rel target = $region3
    $region8: #{learnable_kd_loss.1} parent=1 // loop_exit
      _
    %2963 = vsyncpa [#allocation9], 1
    %s2964 = scalar_lea.sflag [#allocation9], 1
    %2965 = vsyncpa %s2964, 1
    %2966 = vsyncpa [#allocation11], 1
    %2967 = vsyncpa [#allocation14], 1
    %2968 = vsyncpa [#allocation17], 1
  %2969 = vsyncmov [#allocation3]
  %s2970 = vpop.sfrf %2969
  %p2971 = scmp.eq.s32.totalorder %s2970, 0
  %p2972 = pneg %p2971
  %2974 = shalt.err (%p2972)
  %s2975 = scalar_lea.sflag [#allocation3], 1
  %2976 = vsyncmov %s2975
  %s2977 = vpop.sfrf %2976
  %p2978 = scmp.eq.s32.totalorder %s2977, 0
  %p2979 = pneg %p2978
  %2981 = shalt.err (%p2979)
  %s2982 = scalar_lea.sflag [#allocation3], 2
  %2983 = vsyncmov %s2982
  %s2984 = vpop.sfrf %2983
  %p2985 = scmp.eq.s32.totalorder %s2984, 0
  %p2986 = pneg %p2985
  %2988 = shalt.err (%p2986)
  %s2989 = scalar_lea.sflag [#allocation3], 3
  %2990 = vsyncmov %s2989
  %s2991 = vpop.sfrf %2990
  %p2992 = scmp.eq.s32.totalorder %s2991, 0
  %p2993 = pneg %p2992
  %2995 = shalt.err (%p2993)
  %s2996 = scalar_lea.sflag [#allocation3], 4
  %2997 = vsyncmov %s2996
  %s2998 = vpop.sfrf %2997
  %p2999 = scmp.eq.s32.totalorder %s2998, 0
  %p3000 = pneg %p2999
  %3002 = shalt.err (%p3000)
  %s3003 = scalar_lea.sflag [#allocation3], 5
  %3004 = vsyncmov %s3003
  %s3005 = vpop.sfrf %3004
  %p3006 = scmp.eq.s32.totalorder %s3005, 0
  %p3007 = pneg %p3006
  %3009 = shalt.err (%p3007)
  %s3010 = scalar_lea.sflag [#allocation3], 6
  %3011 = vsyncmov %s3010
  %s3012 = vpop.sfrf %3011
  %p3013 = scmp.eq.s32.totalorder %s3012, 0
  %p3014 = pneg %p3013
  %3016 = shalt.err (%p3014)
  %s3017 = scalar_lea.sflag [#allocation3], 7
  %3018 = vsyncmov %s3017
  %s3019 = vpop.sfrf %3018
  %p3020 = scmp.eq.s32.totalorder %s3019, 0
  %p3021 = pneg %p3020
  %3023 = shalt.err (%p3021)

</llo_original>
